<compile_context>
chip_gen: v7x
topology: tpu7x:2x2x1
jax: 0.10.0
libtpu: 0.0.40
codegen_flags: <defaults>
</compile_context>

<pallas_src>
import functools

import numpy as np
import jax
import jax.numpy as jnp
from jax.experimental import pallas as pl
from jax.experimental.pallas import tpu as pltpu


# ----------------------------------------------------------------------------
# Fused UpBlock kernel (one batch element per grid step)
# ----------------------------------------------------------------------------
def _up_block_kernel(x_ref, skip_ref, uwT_ref, mask_ref,
                     w1_ref, b1_ref, w2_ref, b2_ref, o_ref,
                     cat_ref, h_ref, xw_ref, *, Cx, Cs, H, W, Cout, cdt):
    f32 = jnp.float32
    Cin = Cx + Cs
    Ho, Wo = 2 * H, 2 * W            # spatial size seen by the convs
    Hp, Wp = Ho + 2, Wo + 2          # zero-padded size (padding=1)
    L = (Ho - 1) * Wp + Wo           # row-strided matmul width (lane axis)

    # ---- 2x bilinear upsample of x (align_corners=False): W direction -----
    # One small matmul, kept in f32 (tiny; keeps parity with PyTorch tight).
    x2 = x_ref[0].astype(f32).reshape(Cx * H, W)
    xw_ref[...] = jnp.dot(x2, uwT_ref[...],
                          preferred_element_type=f32).reshape(Cx, H, Wo)

    # ---- maintain the zero border of the padded concat buffer -------------
    # Only O(Wp) lanes per step (not O(Hp*Wp)); redone every step so it is
    # correct regardless of how the "parallel" batch axis is split over cores.
    cat_ref[:, 0:Wp + 1] = jnp.zeros((Cin, Wp + 1), cdt)          # top pad row
    cat_ref[:, (Ho + 1) * Wp:] = jnp.zeros((Cin, Wp), cdt)        # bottom pad

    # ---- fill interior rows; H-direction 0.25/0.75 stencil fused here -----
    # cat_ref[c, r*Wp + q] == concat([up2x(x), skip])[c, r-1, q-1] in the
    # interior, 0 on the 1-pixel border.  Static lane offsets per row.
    for g in range(Ho):                                           # output row
        i = g // 2
        if g % 2 == 0:
            ia, ib, wa = max(i - 1, 0), i, 0.25
        else:
            ia, ib, wa = i, min(i + 1, H - 1), 0.75
        row = wa * xw_ref[:, ia, :] + (1.0 - wa) * xw_ref[:, ib, :]
        s = (g + 1) * Wp + 1
        cat_ref[0:Cx, s:s + Wo] = row.astype(cdt)
        cat_ref[Cx:Cin, s:s + Wo] = skip_ref[0, :, g, :].astype(cdt)
        # right pad of this row + left pad of the next row stay zero
        cat_ref[:, s + Wo:s + Wo + 2] = jnp.zeros((Cin, 2), cdt)

    # ---- 3x3 conv as 9 shifted-tap matmuls, accumulated in f32 ------------
    def conv3x3_relu(src_ref, wt_ref, b_ref):
        # src_ref: (C, Hp*Wp) zero-padded, spatially flattened activation.
        # wt_ref:  (9, Cout, C) tap-major weights,  b_ref: (Cout, 1) f32.
        acc = jnp.zeros((Cout, L), f32)
        for t in range(9):
            off = (t // 3) * Wp + (t % 3)
            acc = acc + jnp.dot(wt_ref[t], src_ref[:, off:off + L],
                                preferred_element_type=f32)
        return jnp.maximum(acc + b_ref[...], 0.0)                 # bias + ReLU

    # ---- conv1 + ReLU -> padded flat intermediate kept in VMEM ------------
    h1 = conv3x3_relu(cat_ref, w1_ref, b1_ref) * mask_ref[...]    # mask pads
    h_ref[:, 0:Wp + 1] = jnp.zeros((Cout, Wp + 1), cdt)
    h_ref[:, Wp + 1 + L:] = jnp.zeros((Cout, Hp * Wp - (Wp + 1 + L)), cdt)
    h_ref[:, Wp + 1:Wp + 1 + L] = h1.astype(cdt)

    # ---- conv2 + ReLU -> single lane-dense store (de-strided in wrapper) --
    y = conv3x3_relu(h_ref, w2_ref, b2_ref)                       # (Cout, L)
    o_ref[0, :, :] = y.astype(o_ref.dtype)


# ----------------------------------------------------------------------------
# Wrapper
# ----------------------------------------------------------------------------
def _bilinear2x_matrix(in_size):
    """(in_size, 2*in_size) interpolation matrix for F.interpolate 2x,
    mode='bilinear', align_corners=False (negative coords clamped)."""
    out_size = 2 * in_size
    o = np.arange(out_size, dtype=np.float64)
    s = np.maximum((o + 0.5) * (in_size / out_size) - 0.5, 0.0)
    i0 = np.clip(np.floor(s).astype(np.int64), 0, in_size - 1)
    i1 = np.clip(i0 + 1, 0, in_size - 1)
    frac = s - i0
    U = np.zeros((in_size, out_size), dtype=np.float32)
    U[i0, np.arange(out_size)] += (1.0 - frac).astype(np.float32)
    U[i1, np.arange(out_size)] += frac.astype(np.float32)
    return jnp.asarray(U)


def up_block_forward(x, skip, params, *, compute_dtype=jnp.bfloat16):
    """x: (N, Cx, H, W), skip: (N, Cs, 2H, 2W) -> (N, out_ch, 2H, 2W)."""
    N, Cx, H, W = x.shape
    Ns, Cs, Ho, Wo = skip.shape
    assert Ns == N and Ho == 2 * H and Wo == 2 * W
    w1, b1, w2, b2 = params["w1"], params["b1"], params["w2"], params["b2"]
    Cout, Cin = w1.shape[0], w1.shape[1]
    assert Cin == Cx + Cs

    Hp, Wp = Ho + 2, Wo + 2
    L = (Ho - 1) * Wp + Wo
    cdt = np.dtype(compute_dtype)

    # Tap-major weights (9, Cout, Cin), cast once to the MXU-rate dtype; these
    # stay resident in VMEM across the whole grid.
    w1t = jnp.transpose(w1, (2, 3, 0, 1)).reshape(9, Cout, Cin).astype(cdt)
    w2t = jnp.transpose(w2, (2, 3, 0, 1)).reshape(9, Cout, Cout).astype(cdt)
    b1c = b1.reshape(Cout, 1).astype(jnp.float32)
    b2c = b2.reshape(Cout, 1).astype(jnp.float32)
    uwT = _bilinear2x_matrix(W)                                 # (W, 2W) f32
    # Lane-validity mask for the row-strided conv1 output (1 on real columns,
    # 0 on the 2 pad columns aliased into each flattened row).
    mask = jnp.asarray(((np.arange(L) % Wp) < Wo).astype(np.float32)
                       ).reshape(1, L)

    kernel = functools.partial(_up_block_kernel, Cx=Cx, Cs=Cs, H=H, W=W,
                               Cout=Cout, cdt=cdt)

    # VMEM budget: double-buffered in/out blocks + scratch + headroom.
    def nbytes(shape, dt):
        return int(np.prod(shape)) * np.dtype(dt).itemsize
    blk = (nbytes((1, Cx, H, W), x.dtype) + nbytes((1, Cs, Ho, Wo), skip.dtype)
           + nbytes((W, Wo), jnp.float32) + nbytes((1, L), jnp.float32)
           + nbytes((9, Cout, Cin), cdt) + nbytes((9, Cout, Cout), cdt)
           + 2 * nbytes((Cout, 1), jnp.float32)
           + nbytes((1, Cout, L), x.dtype))
    scratch = (nbytes((Cin, Hp * Wp), cdt) + nbytes((Cout, Hp * Wp), cdt)
               + nbytes((Cx, H, Wo), jnp.float32))
    vmem_limit = int(min(2 * blk + scratch + (8 << 20), 100 * 1024 * 1024))

    flops = 2 * N * (Cx * H * W * Wo
                     + Ho * Wo * 9 * Cin * Cout
                     + Ho * Wo * 9 * Cout * Cout)
    bytes_accessed = int(x.size * x.dtype.itemsize
                         + skip.size * skip.dtype.itemsize
                         + N * Cout * L * x.dtype.itemsize
                         + (w1t.size + w2t.size) * cdt.itemsize
                         + 4 * (2 * Cout + uwT.size + L))

    y_flat = pl.pallas_call(
        kernel,
        out_shape=jax.ShapeDtypeStruct((N, Cout, L), x.dtype),
        grid_spec=pltpu.PrefetchScalarGridSpec(
            num_scalar_prefetch=0,
            grid=(N,),
            in_specs=[
                pl.BlockSpec((1, Cx, H, W), lambda n: (n, 0, 0, 0)),
                pl.BlockSpec((1, Cs, Ho, Wo), lambda n: (n, 0, 0, 0)),
                pl.BlockSpec((W, Wo), lambda n: (0, 0)),
                pl.BlockSpec((1, L), lambda n: (0, 0)),
                pl.BlockSpec((9, Cout, Cin), lambda n: (0, 0, 0)),
                pl.BlockSpec((Cout, 1), lambda n: (0, 0)),
                pl.BlockSpec((9, Cout, Cout), lambda n: (0, 0, 0)),
                pl.BlockSpec((Cout, 1), lambda n: (0, 0)),
            ],
            out_specs=pl.BlockSpec((1, Cout, L), lambda n: (n, 0, 0)),
            scratch_shapes=[
                pltpu.VMEM((Cin, Hp * Wp), cdt),    # padded concat buffer
                pltpu.VMEM((Cout, Hp * Wp), cdt),   # padded conv1 output
                pltpu.VMEM((Cx, H, Wo), jnp.float32),  # W-upsampled x rows
            ],
        ),
        compiler_params=pltpu.CompilerParams(
            dimension_semantics=("parallel",),
            vmem_limit_bytes=vmem_limit),
        cost_estimate=pl.CostEstimate(
            flops=flops, transcendentals=0, bytes_accessed=bytes_accessed),
    )(x, skip, uwT, mask, w1t, b1c, w2t, b2c)

    # De-stride the lane-dense flat output back to NCHW (free layout plumbing
    # in the wrapper: pad 2 lanes, reshape to rows of width Wp, drop pads).
    y_pad = jnp.pad(y_flat, ((0, 0), (0, 0), (0, Ho * Wp - L)))
    return y_pad.reshape(N, Cout, Ho, Wp)[:, :, :, :Wo]


def init_params(key, in_ch, out_ch):
    k1, k2, k3, k4 = jax.random.split(key, 4)
    fan1, fan2 = in_ch * 9, out_ch * 9
    # PyTorch Conv2d weight layout: (Cout, Cin, kh, kw)
    w1 = jax.random.normal(k1, (out_ch, in_ch, 3, 3), jnp.float32) / np.sqrt(fan1)
    b1 = jax.random.normal(k2, (out_ch,), jnp.float32) * 0.01
    w2 = jax.random.normal(k3, (out_ch, out_ch, 3, 3), jnp.float32) / np.sqrt(fan2)
    b2 = jax.random.normal(k4, (out_ch,), jnp.float32) * 0.01
    return {"w1": w1, "b1": b1, "w2": w2, "b2": b2}


# ----------------------------------------------------------------------------
# Pure-JAX reference (independent of the kernel's upsample implementation)
# ----------------------------------------------------------------------------
def _upsample2x_bilinear_ref(x):
    """Gather-based reference matching F.interpolate(scale_factor=2,
    mode='bilinear', align_corners=False); x is NCHW."""
    N, C, H, W = x.shape

    def coords(out_size, in_size):
        s = (jnp.arange(out_size, dtype=jnp.float32) + 0.5) * (in_size / out_size) - 0.5
        s = jnp.maximum(s, 0.0)
        i0 = jnp.clip(jnp.floor(s).astype(jnp.int32), 0, in_size - 1)
        i1 = jnp.clip(i0 + 1, 0, in_size - 1)
        return i0, i1, s - i0.astype(jnp.float32)

    y0, y1, wy = coords(2 * H, H)
    x0, x1, wx = coords(2 * W, W)
    top = (x[:, :, y0, :] * (1.0 - wy)[None, None, :, None]
           + x[:, :, y1, :] * wy[None, None, :, None])
    return top[:, :, :, x0] * (1.0 - wx) + top[:, :, :, x1] * wx


def _conv3x3_relu_ref(x, w, b):
    y = jax.lax.conv_general_dilated(
        x, w, window_strides=(1, 1), padding=((1, 1), (1, 1)),
        dimension_numbers=("NCHW", "OIHW", "NCHW"),
        precision=jax.lax.Precision.HIGHEST)
    return jnp.maximum(y + b[None, :, None, None], 0.0)


def up_block_ref(x, skip, params):
    cat = jnp.concatenate([_upsample2x_bilinear_ref(x), skip], axis=1)
    h = _conv3x3_relu_ref(cat, params["w1"], params["b1"])
    return _conv3x3_relu_ref(h, params["w2"], params["b2"])


if __name__ == "__main__":
    key = jax.random.PRNGKey(0)
    kx, ks, kp = jax.random.split(key, 3)

    # UpBlock(in_ch=8, out_ch=4): x has 4 channels at 8x8, skip has 4 channels
    # at 16x16, so after upsample + concat the convs see 8 channels at 16x16.
    N, Cx, H, W = 2, 4, 8, 8
    Cs = 4
    in_ch, out_ch = Cx + Cs, 4

    x = jax.random.normal(kx, (N, Cx, H, W), jnp.float32)
    skip = jax.random.normal(ks, (N, Cs, 2 * H, 2 * W), jnp.float32)
    params = init_params(kp, in_ch, out_ch)

    ref = jax.block_until_ready(up_block_ref(x, skip, params))
    ref_max = float(jnp.max(jnp.abs(ref)))

    # f32 path: exact-algorithm check against the pure-JAX reference.
    out_f32 = jax.block_until_ready(
        up_block_forward(x, skip, params, compute_dtype=jnp.float32))
    assert out_f32.shape == (N, out_ch, 2 * H, 2 * W), out_f32.shape
    err32 = float(jnp.max(jnp.abs(out_f32 - ref)))
    assert err32 < 1e-4, err32

    # bf16 fast path (MXU-rate operands, f32 accumulation): looser tolerance.
    out_bf16 = jax.block_until_ready(up_block_forward(x, skip, params))
    assert out_bf16.shape == (N, out_ch, 2 * H, 2 * W), out_bf16.shape
    errbf = float(jnp.max(jnp.abs(out_bf16 - ref)))
    assert errbf < 6e-2 * ref_max + 3e-2, (errbf, ref_max)

    print("KERNEL_OK")
</pallas_src>

<mosaic_0001>
module attributes {stable_mosaic.version = 11 : i64} {
  func.func @_up_block_kernel(%arg0: i32, %arg1: memref<1x4x8x8xf32, #tpu.memory_space<vmem>>, %arg2: memref<1x4x16x16xf32, #tpu.memory_space<vmem>>, %arg3: memref<8x16xf32, #tpu.memory_space<vmem>>, %arg4: memref<1x286xf32, #tpu.memory_space<vmem>>, %arg5: memref<9x4x8xf32, #tpu.memory_space<vmem>>, %arg6: memref<4x1xf32, #tpu.memory_space<vmem>>, %arg7: memref<9x4x4xf32, #tpu.memory_space<vmem>>, %arg8: memref<4x1xf32, #tpu.memory_space<vmem>>, %arg9: memref<1x4x286xf32, #tpu.memory_space<vmem>>, %arg10: memref<8x324xf32, #tpu.memory_space<vmem>>, %arg11: memref<4x324xf32, #tpu.memory_space<vmem>>, %arg12: memref<4x8x16xf32, #tpu.memory_space<vmem>>) attributes {dimension_semantics = [#tpu.dimension_semantics<parallel>], iteration_bounds = array<i64: 2>, scalar_prefetch = 0 : i64, scratch_operands = 3 : i64, tpu.core_type = #tpu.core_type<tc>, window_params = [{transform_indices = @transform_0, window_bounds = array<i64: 1, 4, 8, 8>}, {transform_indices = @transform_1, window_bounds = array<i64: 1, 4, 16, 16>}, {pipeline_mode = #tpu.pipeline_mode<synchronous>, transform_indices = @transform_2, window_bounds = array<i64: 8, 16>}, {pipeline_mode = #tpu.pipeline_mode<synchronous>, transform_indices = @transform_3, window_bounds = array<i64: 1, 286>}, {pipeline_mode = #tpu.pipeline_mode<synchronous>, transform_indices = @transform_4, window_bounds = array<i64: 9, 4, 8>}, {pipeline_mode = #tpu.pipeline_mode<synchronous>, transform_indices = @transform_5, window_bounds = array<i64: 4, 1>}, {pipeline_mode = #tpu.pipeline_mode<synchronous>, transform_indices = @transform_6, window_bounds = array<i64: 9, 4, 4>}, {pipeline_mode = #tpu.pipeline_mode<synchronous>, transform_indices = @transform_7, window_bounds = array<i64: 4, 1>}, {transform_indices = @transform_8, window_bounds = array<i64: 1, 4, 286>}]} {
    %c0 = arith.constant 0 : index
    %c0_0 = arith.constant 0 : index
    %c0_1 = arith.constant 0 : index
    %c0_2 = arith.constant 0 : index
    %0 = vector.load %arg1[%c0, %c0_0, %c0_1, %c0_2] : memref<1x4x8x8xf32, #tpu.memory_space<vmem>>, vector<1x4x8x8xf32>
    %1 = vector.shape_cast %0 : vector<1x4x8x8xf32> to vector<4x8x8xf32>
    %2 = vector.shape_cast %1 : vector<4x8x8xf32> to vector<32x8xf32>
    %c0_3 = arith.constant 0 : index
    %c0_4 = arith.constant 0 : index
    %3 = vector.load %arg3[%c0_3, %c0_4] : memref<8x16xf32, #tpu.memory_space<vmem>>, vector<8x16xf32>
    %cst = arith.constant dense<0.000000e+00> : vector<32x16xf32>
    %4 = tpu.matmul %2, %3, %cst {dimension_numbers = #tpu.dot_dimension_numbers<[1], [0], [0], [1], [0, 0, 1, 1], [], []>} : vector<32x8xf32>, vector<8x16xf32>, vector<32x16xf32> -> vector<32x16xf32>
    %5 = vector.shape_cast %4 : vector<32x16xf32> to vector<4x8x16xf32>
    %c0_5 = arith.constant 0 : index
    %c0_6 = arith.constant 0 : index
    %c0_7 = arith.constant 0 : index
    %6 = vector.load %arg12[%c0_5, %c0_6, %c0_7] : memref<4x8x16xf32, #tpu.memory_space<vmem>>, vector<4x8x16xf32>
    tpu.vector_store %arg12[%c0_5, %c0_6, %c0_7], %5 {strides = array<i32>} : memref<4x8x16xf32, #tpu.memory_space<vmem>>, vector<4x8x16xf32>,
    %cst_8 = arith.constant 0.000000e+00 : f32
    %7 = vector.broadcast %cst_8 : f32 to vector<8x19xf32>
    %c0_9 = arith.constant 0 : index
    %c0_10 = arith.constant 0 : index
    %8 = vector.load %arg10[%c0_9, %c0_10] : memref<8x324xf32, #tpu.memory_space<vmem>>, vector<8x19xf32>
    tpu.vector_store %arg10[%c0_9, %c0_10], %7 {strides = array<i32>} : memref<8x324xf32, #tpu.memory_space<vmem>>, vector<8x19xf32>,
    %cst_11 = arith.constant 0.000000e+00 : f32
    %9 = vector.broadcast %cst_11 : f32 to vector<8x18xf32>
    %c0_12 = arith.constant 0 : index
    %c306 = arith.constant 306 : index
    %10 = vector.load %arg10[%c0_12, %c306] : memref<8x324xf32, #tpu.memory_space<vmem>>, vector<8x18xf32>
    tpu.vector_store %arg10[%c0_12, %c306], %9 {strides = array<i32>} : memref<8x324xf32, #tpu.memory_space<vmem>>, vector<8x18xf32>,
    %c0_13 = arith.constant 0 : index
    %c0_14 = arith.constant 0 : index
    %c0_15 = arith.constant 0 : index
    %11 = vector.load %arg12[%c0_13, %c0_14, %c0_15] : memref<4x8x16xf32, #tpu.memory_space<vmem>>, vector<4x1x16xf32>
    %12 = vector.shape_cast %11 : vector<4x1x16xf32> to vector<4x16xf32>
    %cst_16 = arith.constant 2.500000e-01 : f32
    %13 = vector.broadcast %cst_16 : f32 to vector<4x16xf32>
    %14 = arith.mulf %13, %12 : vector<4x16xf32>
    %c0_17 = arith.constant 0 : index
    %c0_18 = arith.constant 0 : index
    %c0_19 = arith.constant 0 : index
    %15 = vector.load %arg12[%c0_17, %c0_18, %c0_19] : memref<4x8x16xf32, #tpu.memory_space<vmem>>, vector<4x1x16xf32>
    %16 = vector.shape_cast %15 : vector<4x1x16xf32> to vector<4x16xf32>
    %cst_20 = arith.constant 7.500000e-01 : f32
    %17 = vector.broadcast %cst_20 : f32 to vector<4x16xf32>
    %18 = arith.mulf %17, %16 : vector<4x16xf32>
    %19 = arith.addf %14, %18 : vector<4x16xf32>
    %c0_21 = arith.constant 0 : index
    %c19 = arith.constant 19 : index
    %20 = vector.load %arg10[%c0_21, %c19] : memref<8x324xf32, #tpu.memory_space<vmem>>, vector<4x16xf32>
    tpu.vector_store %arg10[%c0_21, %c19], %19 {strides = array<i32>} : memref<8x324xf32, #tpu.memory_space<vmem>>, vector<4x16xf32>,
    %c0_22 = arith.constant 0 : index
    %c0_23 = arith.constant 0 : index
    %c0_24 = arith.constant 0 : index
    %c0_25 = arith.constant 0 : index
    %21 = vector.load %arg2[%c0_22, %c0_23, %c0_24, %c0_25] : memref<1x4x16x16xf32, #tpu.memory_space<vmem>>, vector<1x4x1x16xf32>
    %22 = vector.shape_cast %21 : vector<1x4x1x16xf32> to vector<4x16xf32>
    %c4 = arith.constant 4 : index
    %c19_26 = arith.constant 19 : index
    %23 = vector.load %arg10[%c4, %c19_26] : memref<8x324xf32, #tpu.memory_space<vmem>>, vector<4x16xf32>
    tpu.vector_store %arg10[%c4, %c19_26], %22 {strides = array<i32>} : memref<8x324xf32, #tpu.memory_space<vmem>>, vector<4x16xf32>,
    %cst_27 = arith.constant 0.000000e+00 : f32
    %24 = vector.broadcast %cst_27 : f32 to vector<8x2xf32>
    %c0_28 = arith.constant 0 : index
    %c35 = arith.constant 35 : index
    %25 = vector.load %arg10[%c0_28, %c35] : memref<8x324xf32, #tpu.memory_space<vmem>>, vector<8x2xf32>
    tpu.vector_store %arg10[%c0_28, %c35], %24 {strides = array<i32>} : memref<8x324xf32, #tpu.memory_space<vmem>>, vector<8x2xf32>,
    %c0_29 = arith.constant 0 : index
    %c0_30 = arith.constant 0 : index
    %c0_31 = arith.constant 0 : index
    %26 = vector.load %arg12[%c0_29, %c0_30, %c0_31] : memref<4x8x16xf32, #tpu.memory_space<vmem>>, vector<4x1x16xf32>
    %27 = vector.shape_cast %26 : vector<4x1x16xf32> to vector<4x16xf32>
    %cst_32 = arith.constant 7.500000e-01 : f32
    %28 = vector.broadcast %cst_32 : f32 to vector<4x16xf32>
    %29 = arith.mulf %28, %27 : vector<4x16xf32>
    %c0_33 = arith.constant 0 : index
    %c1 = arith.constant 1 : index
    %c0_34 = arith.constant 0 : index
    %30 = vector.load %arg12[%c0_33, %c1, %c0_34] : memref<4x8x16xf32, #tpu.memory_space<vmem>>, vector<4x1x16xf32>
    %31 = vector.shape_cast %30 : vector<4x1x16xf32> to vector<4x16xf32>
    %cst_35 = arith.constant 2.500000e-01 : f32
    %32 = vector.broadcast %cst_35 : f32 to vector<4x16xf32>
    %33 = arith.mulf %32, %31 : vector<4x16xf32>
    %34 = arith.addf %29, %33 : vector<4x16xf32>
    %c0_36 = arith.constant 0 : index
    %c37 = arith.constant 37 : index
    %35 = vector.load %arg10[%c0_36, %c37] : memref<8x324xf32, #tpu.memory_space<vmem>>, vector<4x16xf32>
    tpu.vector_store %arg10[%c0_36, %c37], %34 {strides = array<i32>} : memref<8x324xf32, #tpu.memory_space<vmem>>, vector<4x16xf32>,
    %c0_37 = arith.constant 0 : index
    %c0_38 = arith.constant 0 : index
    %c1_39 = arith.constant 1 : index
    %c0_40 = arith.constant 0 : index
    %36 = vector.load %arg2[%c0_37, %c0_38, %c1_39, %c0_40] : memref<1x4x16x16xf32, #tpu.memory_space<vmem>>, vector<1x4x1x16xf32>
    %37 = vector.shape_cast %36 : vector<1x4x1x16xf32> to vector<4x16xf32>
    %c4_41 = arith.constant 4 : index
    %c37_42 = arith.constant 37 : index
    %38 = vector.load %arg10[%c4_41, %c37_42] : memref<8x324xf32, #tpu.memory_space<vmem>>, vector<4x16xf32>
    tpu.vector_store %arg10[%c4_41, %c37_42], %37 {strides = array<i32>} : memref<8x324xf32, #tpu.memory_space<vmem>>, vector<4x16xf32>,
    %cst_43 = arith.constant 0.000000e+00 : f32
    %39 = vector.broadcast %cst_43 : f32 to vector<8x2xf32>
    %c0_44 = arith.constant 0 : index
    %c53 = arith.constant 53 : index
    %40 = vector.load %arg10[%c0_44, %c53] : memref<8x324xf32, #tpu.memory_space<vmem>>, vector<8x2xf32>
    tpu.vector_store %arg10[%c0_44, %c53], %39 {strides = array<i32>} : memref<8x324xf32, #tpu.memory_space<vmem>>, vector<8x2xf32>,
    %c0_45 = arith.constant 0 : index
    %c0_46 = arith.constant 0 : index
    %c0_47 = arith.constant 0 : index
    %41 = vector.load %arg12[%c0_45, %c0_46, %c0_47] : memref<4x8x16xf32, #tpu.memory_space<vmem>>, vector<4x1x16xf32>
    %42 = vector.shape_cast %41 : vector<4x1x16xf32> to vector<4x16xf32>
    %cst_48 = arith.constant 2.500000e-01 : f32
    %43 = vector.broadcast %cst_48 : f32 to vector<4x16xf32>
    %44 = arith.mulf %43, %42 : vector<4x16xf32>
    %c0_49 = arith.constant 0 : index
    %c1_50 = arith.constant 1 : index
    %c0_51 = arith.constant 0 : index
    %45 = vector.load %arg12[%c0_49, %c1_50, %c0_51] : memref<4x8x16xf32, #tpu.memory_space<vmem>>, vector<4x1x16xf32>
    %46 = vector.shape_cast %45 : vector<4x1x16xf32> to vector<4x16xf32>
    %cst_52 = arith.constant 7.500000e-01 : f32
    %47 = vector.broadcast %cst_52 : f32 to vector<4x16xf32>
    %48 = arith.mulf %47, %46 : vector<4x16xf32>
    %49 = arith.addf %44, %48 : vector<4x16xf32>
    %c0_53 = arith.constant 0 : index
    %c55 = arith.constant 55 : index
    %50 = vector.load %arg10[%c0_53, %c55] : memref<8x324xf32, #tpu.memory_space<vmem>>, vector<4x16xf32>
    tpu.vector_store %arg10[%c0_53, %c55], %49 {strides = array<i32>} : memref<8x324xf32, #tpu.memory_space<vmem>>, vector<4x16xf32>,
    %c0_54 = arith.constant 0 : index
    %c0_55 = arith.constant 0 : index
    %c2 = arith.constant 2 : index
    %c0_56 = arith.constant 0 : index
    %51 = vector.load %arg2[%c0_54, %c0_55, %c2, %c0_56] : memref<1x4x16x16xf32, #tpu.memory_space<vmem>>, vector<1x4x1x16xf32>
    %52 = vector.shape_cast %51 : vector<1x4x1x16xf32> to vector<4x16xf32>
    %c4_57 = arith.constant 4 : index
    %c55_58 = arith.constant 55 : index
    %53 = vector.load %arg10[%c4_57, %c55_58] : memref<8x324xf32, #tpu.memory_space<vmem>>, vector<4x16xf32>
    tpu.vector_store %arg10[%c4_57, %c55_58], %52 {strides = array<i32>} : memref<8x324xf32, #tpu.memory_space<vmem>>, vector<4x16xf32>,
    %cst_59 = arith.constant 0.000000e+00 : f32
    %54 = vector.broadcast %cst_59 : f32 to vector<8x2xf32>
    %c0_60 = arith.constant 0 : index
    %c71 = arith.constant 71 : index
    %55 = vector.load %arg10[%c0_60, %c71] : memref<8x324xf32, #tpu.memory_space<vmem>>, vector<8x2xf32>
    tpu.vector_store %arg10[%c0_60, %c71], %54 {strides = array<i32>} : memref<8x324xf32, #tpu.memory_space<vmem>>, vector<8x2xf32>,
    %c0_61 = arith.constant 0 : index
    %c1_62 = arith.constant 1 : index
    %c0_63 = arith.constant 0 : index
    %56 = vector.load %arg12[%c0_61, %c1_62, %c0_63] : memref<4x8x16xf32, #tpu.memory_space<vmem>>, vector<4x1x16xf32>
    %57 = vector.shape_cast %56 : vector<4x1x16xf32> to vector<4x16xf32>
    %cst_64 = arith.constant 7.500000e-01 : f32
    %58 = vector.broadcast %cst_64 : f32 to vector<4x16xf32>
    %59 = arith.mulf %58, %57 : vector<4x16xf32>
    %c0_65 = arith.constant 0 : index
    %c2_66 = arith.constant 2 : index
    %c0_67 = arith.constant 0 : index
    %60 = vector.load %arg12[%c0_65, %c2_66, %c0_67] : memref<4x8x16xf32, #tpu.memory_space<vmem>>, vector<4x1x16xf32>
    %61 = vector.shape_cast %60 : vector<4x1x16xf32> to vector<4x16xf32>
    %cst_68 = arith.constant 2.500000e-01 : f32
    %62 = vector.broadcast %cst_68 : f32 to vector<4x16xf32>
    %63 = arith.mulf %62, %61 : vector<4x16xf32>
    %64 = arith.addf %59, %63 : vector<4x16xf32>
    %c0_69 = arith.constant 0 : index
    %c73 = arith.constant 73 : index
    %65 = vector.load %arg10[%c0_69, %c73] : memref<8x324xf32, #tpu.memory_space<vmem>>, vector<4x16xf32>
    tpu.vector_store %arg10[%c0_69, %c73], %64 {strides = array<i32>} : memref<8x324xf32, #tpu.memory_space<vmem>>, vector<4x16xf32>,
    %c0_70 = arith.constant 0 : index
    %c0_71 = arith.constant 0 : index
    %c3 = arith.constant 3 : index
    %c0_72 = arith.constant 0 : index
    %66 = vector.load %arg2[%c0_70, %c0_71, %c3, %c0_72] : memref<1x4x16x16xf32, #tpu.memory_space<vmem>>, vector<1x4x1x16xf32>
    %67 = vector.shape_cast %66 : vector<1x4x1x16xf32> to vector<4x16xf32>
    %c4_73 = arith.constant 4 : index
    %c73_74 = arith.constant 73 : index
    %68 = vector.load %arg10[%c4_73, %c73_74] : memref<8x324xf32, #tpu.memory_space<vmem>>, vector<4x16xf32>
    tpu.vector_store %arg10[%c4_73, %c73_74], %67 {strides = array<i32>} : memref<8x324xf32, #tpu.memory_space<vmem>>, vector<4x16xf32>,
    %cst_75 = arith.constant 0.000000e+00 : f32
    %69 = vector.broadcast %cst_75 : f32 to vector<8x2xf32>
    %c0_76 = arith.constant 0 : index
    %c89 = arith.constant 89 : index
    %70 = vector.load %arg10[%c0_76, %c89] : memref<8x324xf32, #tpu.memory_space<vmem>>, vector<8x2xf32>
    tpu.vector_store %arg10[%c0_76, %c89], %69 {strides = array<i32>} : memref<8x324xf32, #tpu.memory_space<vmem>>, vector<8x2xf32>,
    %c0_77 = arith.constant 0 : index
    %c1_78 = arith.constant 1 : index
    %c0_79 = arith.constant 0 : index
    %71 = vector.load %arg12[%c0_77, %c1_78, %c0_79] : memref<4x8x16xf32, #tpu.memory_space<vmem>>, vector<4x1x16xf32>
    %72 = vector.shape_cast %71 : vector<4x1x16xf32> to vector<4x16xf32>
    %cst_80 = arith.constant 2.500000e-01 : f32
    %73 = vector.broadcast %cst_80 : f32 to vector<4x16xf32>
    %74 = arith.mulf %73, %72 : vector<4x16xf32>
    %c0_81 = arith.constant 0 : index
    %c2_82 = arith.constant 2 : index
    %c0_83 = arith.constant 0 : index
    %75 = vector.load %arg12[%c0_81, %c2_82, %c0_83] : memref<4x8x16xf32, #tpu.memory_space<vmem>>, vector<4x1x16xf32>
    %76 = vector.shape_cast %75 : vector<4x1x16xf32> to vector<4x16xf32>
    %cst_84 = arith.constant 7.500000e-01 : f32
    %77 = vector.broadcast %cst_84 : f32 to vector<4x16xf32>
    %78 = arith.mulf %77, %76 : vector<4x16xf32>
    %79 = arith.addf %74, %78 : vector<4x16xf32>
    %c0_85 = arith.constant 0 : index
    %c91 = arith.constant 91 : index
    %80 = vector.load %arg10[%c0_85, %c91] : memref<8x324xf32, #tpu.memory_space<vmem>>, vector<4x16xf32>
    tpu.vector_store %arg10[%c0_85, %c91], %79 {strides = array<i32>} : memref<8x324xf32, #tpu.memory_space<vmem>>, vector<4x16xf32>,
    %c0_86 = arith.constant 0 : index
    %c0_87 = arith.constant 0 : index
    %c4_88 = arith.constant 4 : index
    %c0_89 = arith.constant 0 : index
    %81 = vector.load %arg2[%c0_86, %c0_87, %c4_88, %c0_89] : memref<1x4x16x16xf32, #tpu.memory_space<vmem>>, vector<1x4x1x16xf32>
    %82 = vector.shape_cast %81 : vector<1x4x1x16xf32> to vector<4x16xf32>
    %c4_90 = arith.constant 4 : index
    %c91_91 = arith.constant 91 : index
    %83 = vector.load %arg10[%c4_90, %c91_91] : memref<8x324xf32, #tpu.memory_space<vmem>>, vector<4x16xf32>
    tpu.vector_store %arg10[%c4_90, %c91_91], %82 {strides = array<i32>} : memref<8x324xf32, #tpu.memory_space<vmem>>, vector<4x16xf32>,
    %cst_92 = arith.constant 0.000000e+00 : f32
    %84 = vector.broadcast %cst_92 : f32 to vector<8x2xf32>
    %c0_93 = arith.constant 0 : index
    %c107 = arith.constant 107 : index
    %85 = vector.load %arg10[%c0_93, %c107] : memref<8x324xf32, #tpu.memory_space<vmem>>, vector<8x2xf32>
    tpu.vector_store %arg10[%c0_93, %c107], %84 {strides = array<i32>} : memref<8x324xf32, #tpu.memory_space<vmem>>, vector<8x2xf32>,
    %c0_94 = arith.constant 0 : index
    %c2_95 = arith.constant 2 : index
    %c0_96 = arith.constant 0 : index
    %86 = vector.load %arg12[%c0_94, %c2_95, %c0_96] : memref<4x8x16xf32, #tpu.memory_space<vmem>>, vector<4x1x16xf32>
    %87 = vector.shape_cast %86 : vector<4x1x16xf32> to vector<4x16xf32>
    %cst_97 = arith.constant 7.500000e-01 : f32
    %88 = vector.broadcast %cst_97 : f32 to vector<4x16xf32>
    %89 = arith.mulf %88, %87 : vector<4x16xf32>
    %c0_98 = arith.constant 0 : index
    %c3_99 = arith.constant 3 : index
    %c0_100 = arith.constant 0 : index
    %90 = vector.load %arg12[%c0_98, %c3_99, %c0_100] : memref<4x8x16xf32, #tpu.memory_space<vmem>>, vector<4x1x16xf32>
    %91 = vector.shape_cast %90 : vector<4x1x16xf32> to vector<4x16xf32>
    %cst_101 = arith.constant 2.500000e-01 : f32
    %92 = vector.broadcast %cst_101 : f32 to vector<4x16xf32>
    %93 = arith.mulf %92, %91 : vector<4x16xf32>
    %94 = arith.addf %89, %93 : vector<4x16xf32>
    %c0_102 = arith.constant 0 : index
    %c109 = arith.constant 109 : index
    %95 = vector.load %arg10[%c0_102, %c109] : memref<8x324xf32, #tpu.memory_space<vmem>>, vector<4x16xf32>
    tpu.vector_store %arg10[%c0_102, %c109], %94 {strides = array<i32>} : memref<8x324xf32, #tpu.memory_space<vmem>>, vector<4x16xf32>,
    %c0_103 = arith.constant 0 : index
    %c0_104 = arith.constant 0 : index
    %c5 = arith.constant 5 : index
    %c0_105 = arith.constant 0 : index
    %96 = vector.load %arg2[%c0_103, %c0_104, %c5, %c0_105] : memref<1x4x16x16xf32, #tpu.memory_space<vmem>>, vector<1x4x1x16xf32>
    %97 = vector.shape_cast %96 : vector<1x4x1x16xf32> to vector<4x16xf32>
    %c4_106 = arith.constant 4 : index
    %c109_107 = arith.constant 109 : index
    %98 = vector.load %arg10[%c4_106, %c109_107] : memref<8x324xf32, #tpu.memory_space<vmem>>, vector<4x16xf32>
    tpu.vector_store %arg10[%c4_106, %c109_107], %97 {strides = array<i32>} : memref<8x324xf32, #tpu.memory_space<vmem>>, vector<4x16xf32>,
    %cst_108 = arith.constant 0.000000e+00 : f32
    %99 = vector.broadcast %cst_108 : f32 to vector<8x2xf32>
    %c0_109 = arith.constant 0 : index
    %c125 = arith.constant 125 : index
    %100 = vector.load %arg10[%c0_109, %c125] : memref<8x324xf32, #tpu.memory_space<vmem>>, vector<8x2xf32>
    tpu.vector_store %arg10[%c0_109, %c125], %99 {strides = array<i32>} : memref<8x324xf32, #tpu.memory_space<vmem>>, vector<8x2xf32>,
    %c0_110 = arith.constant 0 : index
    %c2_111 = arith.constant 2 : index
    %c0_112 = arith.constant 0 : index
    %101 = vector.load %arg12[%c0_110, %c2_111, %c0_112] : memref<4x8x16xf32, #tpu.memory_space<vmem>>, vector<4x1x16xf32>
    %102 = vector.shape_cast %101 : vector<4x1x16xf32> to vector<4x16xf32>
    %cst_113 = arith.constant 2.500000e-01 : f32
    %103 = vector.broadcast %cst_113 : f32 to vector<4x16xf32>
    %104 = arith.mulf %103, %102 : vector<4x16xf32>
    %c0_114 = arith.constant 0 : index
    %c3_115 = arith.constant 3 : index
    %c0_116 = arith.constant 0 : index
    %105 = vector.load %arg12[%c0_114, %c3_115, %c0_116] : memref<4x8x16xf32, #tpu.memory_space<vmem>>, vector<4x1x16xf32>
    %106 = vector.shape_cast %105 : vector<4x1x16xf32> to vector<4x16xf32>
    %cst_117 = arith.constant 7.500000e-01 : f32
    %107 = vector.broadcast %cst_117 : f32 to vector<4x16xf32>
    %108 = arith.mulf %107, %106 : vector<4x16xf32>
    %109 = arith.addf %104, %108 : vector<4x16xf32>
    %c0_118 = arith.constant 0 : index
    %c127 = arith.constant 127 : index
    %110 = vector.load %arg10[%c0_118, %c127] : memref<8x324xf32, #tpu.memory_space<vmem>>, vector<4x16xf32>
    tpu.vector_store %arg10[%c0_118, %c127], %109 {strides = array<i32>} : memref<8x324xf32, #tpu.memory_space<vmem>>, vector<4x16xf32>,
    %c0_119 = arith.constant 0 : index
    %c0_120 = arith.constant 0 : index
    %c6 = arith.constant 6 : index
    %c0_121 = arith.constant 0 : index
    %111 = vector.load %arg2[%c0_119, %c0_120, %c6, %c0_121] : memref<1x4x16x16xf32, #tpu.memory_space<vmem>>, vector<1x4x1x16xf32>
    %112 = vector.shape_cast %111 : vector<1x4x1x16xf32> to vector<4x16xf32>
    %c4_122 = arith.constant 4 : index
    %c127_123 = arith.constant 127 : index
    %113 = vector.load %arg10[%c4_122, %c127_123] : memref<8x324xf32, #tpu.memory_space<vmem>>, vector<4x16xf32>
    tpu.vector_store %arg10[%c4_122, %c127_123], %112 {strides = array<i32>} : memref<8x324xf32, #tpu.memory_space<vmem>>, vector<4x16xf32>,
    %cst_124 = arith.constant 0.000000e+00 : f32
    %114 = vector.broadcast %cst_124 : f32 to vector<8x2xf32>
    %c0_125 = arith.constant 0 : index
    %c143 = arith.constant 143 : index
    %115 = vector.load %arg10[%c0_125, %c143] : memref<8x324xf32, #tpu.memory_space<vmem>>, vector<8x2xf32>
    tpu.vector_store %arg10[%c0_125, %c143], %114 {strides = array<i32>} : memref<8x324xf32, #tpu.memory_space<vmem>>, vector<8x2xf32>,
    %c0_126 = arith.constant 0 : index
    %c3_127 = arith.constant 3 : index
    %c0_128 = arith.constant 0 : index
    %116 = vector.load %arg12[%c0_126, %c3_127, %c0_128] : memref<4x8x16xf32, #tpu.memory_space<vmem>>, vector<4x1x16xf32>
    %117 = vector.shape_cast %116 : vector<4x1x16xf32> to vector<4x16xf32>
    %cst_129 = arith.constant 7.500000e-01 : f32
    %118 = vector.broadcast %cst_129 : f32 to vector<4x16xf32>
    %119 = arith.mulf %118, %117 : vector<4x16xf32>
    %c0_130 = arith.constant 0 : index
    %c4_131 = arith.constant 4 : index
    %c0_132 = arith.constant 0 : index
    %120 = vector.load %arg12[%c0_130, %c4_131, %c0_132] : memref<4x8x16xf32, #tpu.memory_space<vmem>>, vector<4x1x16xf32>
    %121 = vector.shape_cast %120 : vector<4x1x16xf32> to vector<4x16xf32>
    %cst_133 = arith.constant 2.500000e-01 : f32
    %122 = vector.broadcast %cst_133 : f32 to vector<4x16xf32>
    %123 = arith.mulf %122, %121 : vector<4x16xf32>
    %124 = arith.addf %119, %123 : vector<4x16xf32>
    %c0_134 = arith.constant 0 : index
    %c145 = arith.constant 145 : index
    %125 = vector.load %arg10[%c0_134, %c145] : memref<8x324xf32, #tpu.memory_space<vmem>>, vector<4x16xf32>
    tpu.vector_store %arg10[%c0_134, %c145], %124 {strides = array<i32>} : memref<8x324xf32, #tpu.memory_space<vmem>>, vector<4x16xf32>,
    %c0_135 = arith.constant 0 : index
    %c0_136 = arith.constant 0 : index
    %c7 = arith.constant 7 : index
    %c0_137 = arith.constant 0 : index
    %126 = vector.load %arg2[%c0_135, %c0_136, %c7, %c0_137] : memref<1x4x16x16xf32, #tpu.memory_space<vmem>>, vector<1x4x1x16xf32>
    %127 = vector.shape_cast %126 : vector<1x4x1x16xf32> to vector<4x16xf32>
    %c4_138 = arith.constant 4 : index
    %c145_139 = arith.constant 145 : index
    %128 = vector.load %arg10[%c4_138, %c145_139] : memref<8x324xf32, #tpu.memory_space<vmem>>, vector<4x16xf32>
    tpu.vector_store %arg10[%c4_138, %c145_139], %127 {strides = array<i32>} : memref<8x324xf32, #tpu.memory_space<vmem>>, vector<4x16xf32>,
    %cst_140 = arith.constant 0.000000e+00 : f32
    %129 = vector.broadcast %cst_140 : f32 to vector<8x2xf32>
    %c0_141 = arith.constant 0 : index
    %c161 = arith.constant 161 : index
    %130 = vector.load %arg10[%c0_141, %c161] : memref<8x324xf32, #tpu.memory_space<vmem>>, vector<8x2xf32>
    tpu.vector_store %arg10[%c0_141, %c161], %129 {strides = array<i32>} : memref<8x324xf32, #tpu.memory_space<vmem>>, vector<8x2xf32>,
    %c0_142 = arith.constant 0 : index
    %c3_143 = arith.constant 3 : index
    %c0_144 = arith.constant 0 : index
    %131 = vector.load %arg12[%c0_142, %c3_143, %c0_144] : memref<4x8x16xf32, #tpu.memory_space<vmem>>, vector<4x1x16xf32>
    %132 = vector.shape_cast %131 : vector<4x1x16xf32> to vector<4x16xf32>
    %cst_145 = arith.constant 2.500000e-01 : f32
    %133 = vector.broadcast %cst_145 : f32 to vector<4x16xf32>
    %134 = arith.mulf %133, %132 : vector<4x16xf32>
    %c0_146 = arith.constant 0 : index
    %c4_147 = arith.constant 4 : index
    %c0_148 = arith.constant 0 : index
    %135 = vector.load %arg12[%c0_146, %c4_147, %c0_148] : memref<4x8x16xf32, #tpu.memory_space<vmem>>, vector<4x1x16xf32>
    %136 = vector.shape_cast %135 : vector<4x1x16xf32> to vector<4x16xf32>
    %cst_149 = arith.constant 7.500000e-01 : f32
    %137 = vector.broadcast %cst_149 : f32 to vector<4x16xf32>
    %138 = arith.mulf %137, %136 : vector<4x16xf32>
    %139 = arith.addf %134, %138 : vector<4x16xf32>
    %c0_150 = arith.constant 0 : index
    %c163 = arith.constant 163 : index
    %140 = vector.load %arg10[%c0_150, %c163] : memref<8x324xf32, #tpu.memory_space<vmem>>, vector<4x16xf32>
    tpu.vector_store %arg10[%c0_150, %c163], %139 {strides = array<i32>} : memref<8x324xf32, #tpu.memory_space<vmem>>, vector<4x16xf32>,
    %c0_151 = arith.constant 0 : index
    %c0_152 = arith.constant 0 : index
    %c8 = arith.constant 8 : index
    %c0_153 = arith.constant 0 : index
    %141 = vector.load %arg2[%c0_151, %c0_152, %c8, %c0_153] : memref<1x4x16x16xf32, #tpu.memory_space<vmem>>, vector<1x4x1x16xf32>
    %142 = vector.shape_cast %141 : vector<1x4x1x16xf32> to vector<4x16xf32>
    %c4_154 = arith.constant 4 : index
    %c163_155 = arith.constant 163 : index
    %143 = vector.load %arg10[%c4_154, %c163_155] : memref<8x324xf32, #tpu.memory_space<vmem>>, vector<4x16xf32>
    tpu.vector_store %arg10[%c4_154, %c163_155], %142 {strides = array<i32>} : memref<8x324xf32, #tpu.memory_space<vmem>>, vector<4x16xf32>,
    %cst_156 = arith.constant 0.000000e+00 : f32
    %144 = vector.broadcast %cst_156 : f32 to vector<8x2xf32>
    %c0_157 = arith.constant 0 : index
    %c179 = arith.constant 179 : index
    %145 = vector.load %arg10[%c0_157, %c179] : memref<8x324xf32, #tpu.memory_space<vmem>>, vector<8x2xf32>
    tpu.vector_store %arg10[%c0_157, %c179], %144 {strides = array<i32>} : memref<8x324xf32, #tpu.memory_space<vmem>>, vector<8x2xf32>,
    %c0_158 = arith.constant 0 : index
    %c4_159 = arith.constant 4 : index
    %c0_160 = arith.constant 0 : index
    %146 = vector.load %arg12[%c0_158, %c4_159, %c0_160] : memref<4x8x16xf32, #tpu.memory_space<vmem>>, vector<4x1x16xf32>
    %147 = vector.shape_cast %146 : vector<4x1x16xf32> to vector<4x16xf32>
    %cst_161 = arith.constant 7.500000e-01 : f32
    %148 = vector.broadcast %cst_161 : f32 to vector<4x16xf32>
    %149 = arith.mulf %148, %147 : vector<4x16xf32>
    %c0_162 = arith.constant 0 : index
    %c5_163 = arith.constant 5 : index
    %c0_164 = arith.constant 0 : index
    %150 = vector.load %arg12[%c0_162, %c5_163, %c0_164] : memref<4x8x16xf32, #tpu.memory_space<vmem>>, vector<4x1x16xf32>
    %151 = vector.shape_cast %150 : vector<4x1x16xf32> to vector<4x16xf32>
    %cst_165 = arith.constant 2.500000e-01 : f32
    %152 = vector.broadcast %cst_165 : f32 to vector<4x16xf32>
    %153 = arith.mulf %152, %151 : vector<4x16xf32>
    %154 = arith.addf %149, %153 : vector<4x16xf32>
    %c0_166 = arith.constant 0 : index
    %c181 = arith.constant 181 : index
    %155 = vector.load %arg10[%c0_166, %c181] : memref<8x324xf32, #tpu.memory_space<vmem>>, vector<4x16xf32>
    tpu.vector_store %arg10[%c0_166, %c181], %154 {strides = array<i32>} : memref<8x324xf32, #tpu.memory_space<vmem>>, vector<4x16xf32>,
    %c0_167 = arith.constant 0 : index
    %c0_168 = arith.constant 0 : index
    %c9 = arith.constant 9 : index
    %c0_169 = arith.constant 0 : index
    %156 = vector.load %arg2[%c0_167, %c0_168, %c9, %c0_169] : memref<1x4x16x16xf32, #tpu.memory_space<vmem>>, vector<1x4x1x16xf32>
    %157 = vector.shape_cast %156 : vector<1x4x1x16xf32> to vector<4x16xf32>
    %c4_170 = arith.constant 4 : index
    %c181_171 = arith.constant 181 : index
    %158 = vector.load %arg10[%c4_170, %c181_171] : memref<8x324xf32, #tpu.memory_space<vmem>>, vector<4x16xf32>
    tpu.vector_store %arg10[%c4_170, %c181_171], %157 {strides = array<i32>} : memref<8x324xf32, #tpu.memory_space<vmem>>, vector<4x16xf32>,
    %cst_172 = arith.constant 0.000000e+00 : f32
    %159 = vector.broadcast %cst_172 : f32 to vector<8x2xf32>
    %c0_173 = arith.constant 0 : index
    %c197 = arith.constant 197 : index
    %160 = vector.load %arg10[%c0_173, %c197] : memref<8x324xf32, #tpu.memory_space<vmem>>, vector<8x2xf32>
    tpu.vector_store %arg10[%c0_173, %c197], %159 {strides = array<i32>} : memref<8x324xf32, #tpu.memory_space<vmem>>, vector<8x2xf32>,
    %c0_174 = arith.constant 0 : index
    %c4_175 = arith.constant 4 : index
    %c0_176 = arith.constant 0 : index
    %161 = vector.load %arg12[%c0_174, %c4_175, %c0_176] : memref<4x8x16xf32, #tpu.memory_space<vmem>>, vector<4x1x16xf32>
    %162 = vector.shape_cast %161 : vector<4x1x16xf32> to vector<4x16xf32>
    %cst_177 = arith.constant 2.500000e-01 : f32
    %163 = vector.broadcast %cst_177 : f32 to vector<4x16xf32>
    %164 = arith.mulf %163, %162 : vector<4x16xf32>
    %c0_178 = arith.constant 0 : index
    %c5_179 = arith.constant 5 : index
    %c0_180 = arith.constant 0 : index
    %165 = vector.load %arg12[%c0_178, %c5_179, %c0_180] : memref<4x8x16xf32, #tpu.memory_space<vmem>>, vector<4x1x16xf32>
    %166 = vector.shape_cast %165 : vector<4x1x16xf32> to vector<4x16xf32>
    %cst_181 = arith.constant 7.500000e-01 : f32
    %167 = vector.broadcast %cst_181 : f32 to vector<4x16xf32>
    %168 = arith.mulf %167, %166 : vector<4x16xf32>
    %169 = arith.addf %164, %168 : vector<4x16xf32>
    %c0_182 = arith.constant 0 : index
    %c199 = arith.constant 199 : index
    %170 = vector.load %arg10[%c0_182, %c199] : memref<8x324xf32, #tpu.memory_space<vmem>>, vector<4x16xf32>
    tpu.vector_store %arg10[%c0_182, %c199], %169 {strides = array<i32>} : memref<8x324xf32, #tpu.memory_space<vmem>>, vector<4x16xf32>,
    %c0_183 = arith.constant 0 : index
    %c0_184 = arith.constant 0 : index
    %c10 = arith.constant 10 : index
    %c0_185 = arith.constant 0 : index
    %171 = vector.load %arg2[%c0_183, %c0_184, %c10, %c0_185] : memref<1x4x16x16xf32, #tpu.memory_space<vmem>>, vector<1x4x1x16xf32>
    %172 = vector.shape_cast %171 : vector<1x4x1x16xf32> to vector<4x16xf32>
    %c4_186 = arith.constant 4 : index
    %c199_187 = arith.constant 199 : index
    %173 = vector.load %arg10[%c4_186, %c199_187] : memref<8x324xf32, #tpu.memory_space<vmem>>, vector<4x16xf32>
    tpu.vector_store %arg10[%c4_186, %c199_187], %172 {strides = array<i32>} : memref<8x324xf32, #tpu.memory_space<vmem>>, vector<4x16xf32>,
    %cst_188 = arith.constant 0.000000e+00 : f32
    %174 = vector.broadcast %cst_188 : f32 to vector<8x2xf32>
    %c0_189 = arith.constant 0 : index
    %c215 = arith.constant 215 : index
    %175 = vector.load %arg10[%c0_189, %c215] : memref<8x324xf32, #tpu.memory_space<vmem>>, vector<8x2xf32>
    tpu.vector_store %arg10[%c0_189, %c215], %174 {strides = array<i32>} : memref<8x324xf32, #tpu.memory_space<vmem>>, vector<8x2xf32>,
    %c0_190 = arith.constant 0 : index
    %c5_191 = arith.constant 5 : index
    %c0_192 = arith.constant 0 : index
    %176 = vector.load %arg12[%c0_190, %c5_191, %c0_192] : memref<4x8x16xf32, #tpu.memory_space<vmem>>, vector<4x1x16xf32>
    %177 = vector.shape_cast %176 : vector<4x1x16xf32> to vector<4x16xf32>
    %cst_193 = arith.constant 7.500000e-01 : f32
    %178 = vector.broadcast %cst_193 : f32 to vector<4x16xf32>
    %179 = arith.mulf %178, %177 : vector<4x16xf32>
    %c0_194 = arith.constant 0 : index
    %c6_195 = arith.constant 6 : index
    %c0_196 = arith.constant 0 : index
    %180 = vector.load %arg12[%c0_194, %c6_195, %c0_196] : memref<4x8x16xf32, #tpu.memory_space<vmem>>, vector<4x1x16xf32>
    %181 = vector.shape_cast %180 : vector<4x1x16xf32> to vector<4x16xf32>
    %cst_197 = arith.constant 2.500000e-01 : f32
    %182 = vector.broadcast %cst_197 : f32 to vector<4x16xf32>
    %183 = arith.mulf %182, %181 : vector<4x16xf32>
    %184 = arith.addf %179, %183 : vector<4x16xf32>
    %c0_198 = arith.constant 0 : index
    %c217 = arith.constant 217 : index
    %185 = vector.load %arg10[%c0_198, %c217] : memref<8x324xf32, #tpu.memory_space<vmem>>, vector<4x16xf32>
    tpu.vector_store %arg10[%c0_198, %c217], %184 {strides = array<i32>} : memref<8x324xf32, #tpu.memory_space<vmem>>, vector<4x16xf32>,
    %c0_199 = arith.constant 0 : index
    %c0_200 = arith.constant 0 : index
    %c11 = arith.constant 11 : index
    %c0_201 = arith.constant 0 : index
    %186 = vector.load %arg2[%c0_199, %c0_200, %c11, %c0_201] : memref<1x4x16x16xf32, #tpu.memory_space<vmem>>, vector<1x4x1x16xf32>
    %187 = vector.shape_cast %186 : vector<1x4x1x16xf32> to vector<4x16xf32>
    %c4_202 = arith.constant 4 : index
    %c217_203 = arith.constant 217 : index
    %188 = vector.load %arg10[%c4_202, %c217_203] : memref<8x324xf32, #tpu.memory_space<vmem>>, vector<4x16xf32>
    tpu.vector_store %arg10[%c4_202, %c217_203], %187 {strides = array<i32>} : memref<8x324xf32, #tpu.memory_space<vmem>>, vector<4x16xf32>,
    %cst_204 = arith.constant 0.000000e+00 : f32
    %189 = vector.broadcast %cst_204 : f32 to vector<8x2xf32>
    %c0_205 = arith.constant 0 : index
    %c233 = arith.constant 233 : index
    %190 = vector.load %arg10[%c0_205, %c233] : memref<8x324xf32, #tpu.memory_space<vmem>>, vector<8x2xf32>
    tpu.vector_store %arg10[%c0_205, %c233], %189 {strides = array<i32>} : memref<8x324xf32, #tpu.memory_space<vmem>>, vector<8x2xf32>,
    %c0_206 = arith.constant 0 : index
    %c5_207 = arith.constant 5 : index
    %c0_208 = arith.constant 0 : index
    %191 = vector.load %arg12[%c0_206, %c5_207, %c0_208] : memref<4x8x16xf32, #tpu.memory_space<vmem>>, vector<4x1x16xf32>
    %192 = vector.shape_cast %191 : vector<4x1x16xf32> to vector<4x16xf32>
    %cst_209 = arith.constant 2.500000e-01 : f32
    %193 = vector.broadcast %cst_209 : f32 to vector<4x16xf32>
    %194 = arith.mulf %193, %192 : vector<4x16xf32>
    %c0_210 = arith.constant 0 : index
    %c6_211 = arith.constant 6 : index
    %c0_212 = arith.constant 0 : index
    %195 = vector.load %arg12[%c0_210, %c6_211, %c0_212] : memref<4x8x16xf32, #tpu.memory_space<vmem>>, vector<4x1x16xf32>
    %196 = vector.shape_cast %195 : vector<4x1x16xf32> to vector<4x16xf32>
    %cst_213 = arith.constant 7.500000e-01 : f32
    %197 = vector.broadcast %cst_213 : f32 to vector<4x16xf32>
    %198 = arith.mulf %197, %196 : vector<4x16xf32>
    %199 = arith.addf %194, %198 : vector<4x16xf32>
    %c0_214 = arith.constant 0 : index
    %c235 = arith.constant 235 : index
    %200 = vector.load %arg10[%c0_214, %c235] : memref<8x324xf32, #tpu.memory_space<vmem>>, vector<4x16xf32>
    tpu.vector_store %arg10[%c0_214, %c235], %199 {strides = array<i32>} : memref<8x324xf32, #tpu.memory_space<vmem>>, vector<4x16xf32>,
    %c0_215 = arith.constant 0 : index
    %c0_216 = arith.constant 0 : index
    %c12 = arith.constant 12 : index
    %c0_217 = arith.constant 0 : index
    %201 = vector.load %arg2[%c0_215, %c0_216, %c12, %c0_217] : memref<1x4x16x16xf32, #tpu.memory_space<vmem>>, vector<1x4x1x16xf32>
    %202 = vector.shape_cast %201 : vector<1x4x1x16xf32> to vector<4x16xf32>
    %c4_218 = arith.constant 4 : index
    %c235_219 = arith.constant 235 : index
    %203 = vector.load %arg10[%c4_218, %c235_219] : memref<8x324xf32, #tpu.memory_space<vmem>>, vector<4x16xf32>
    tpu.vector_store %arg10[%c4_218, %c235_219], %202 {strides = array<i32>} : memref<8x324xf32, #tpu.memory_space<vmem>>, vector<4x16xf32>,
    %cst_220 = arith.constant 0.000000e+00 : f32
    %204 = vector.broadcast %cst_220 : f32 to vector<8x2xf32>
    %c0_221 = arith.constant 0 : index
    %c251 = arith.constant 251 : index
    %205 = vector.load %arg10[%c0_221, %c251] : memref<8x324xf32, #tpu.memory_space<vmem>>, vector<8x2xf32>
    tpu.vector_store %arg10[%c0_221, %c251], %204 {strides = array<i32>} : memref<8x324xf32, #tpu.memory_space<vmem>>, vector<8x2xf32>,
    %c0_222 = arith.constant 0 : index
    %c6_223 = arith.constant 6 : index
    %c0_224 = arith.constant 0 : index
    %206 = vector.load %arg12[%c0_222, %c6_223, %c0_224] : memref<4x8x16xf32, #tpu.memory_space<vmem>>, vector<4x1x16xf32>
    %207 = vector.shape_cast %206 : vector<4x1x16xf32> to vector<4x16xf32>
    %cst_225 = arith.constant 7.500000e-01 : f32
    %208 = vector.broadcast %cst_225 : f32 to vector<4x16xf32>
    %209 = arith.mulf %208, %207 : vector<4x16xf32>
    %c0_226 = arith.constant 0 : index
    %c7_227 = arith.constant 7 : index
    %c0_228 = arith.constant 0 : index
    %210 = vector.load %arg12[%c0_226, %c7_227, %c0_228] : memref<4x8x16xf32, #tpu.memory_space<vmem>>, vector<4x1x16xf32>
    %211 = vector.shape_cast %210 : vector<4x1x16xf32> to vector<4x16xf32>
    %cst_229 = arith.constant 2.500000e-01 : f32
    %212 = vector.broadcast %cst_229 : f32 to vector<4x16xf32>
    %213 = arith.mulf %212, %211 : vector<4x16xf32>
    %214 = arith.addf %209, %213 : vector<4x16xf32>
    %c0_230 = arith.constant 0 : index
    %c253 = arith.constant 253 : index
    %215 = vector.load %arg10[%c0_230, %c253] : memref<8x324xf32, #tpu.memory_space<vmem>>, vector<4x16xf32>
    tpu.vector_store %arg10[%c0_230, %c253], %214 {strides = array<i32>} : memref<8x324xf32, #tpu.memory_space<vmem>>, vector<4x16xf32>,
    %c0_231 = arith.constant 0 : index
    %c0_232 = arith.constant 0 : index
    %c13 = arith.constant 13 : index
    %c0_233 = arith.constant 0 : index
    %216 = vector.load %arg2[%c0_231, %c0_232, %c13, %c0_233] : memref<1x4x16x16xf32, #tpu.memory_space<vmem>>, vector<1x4x1x16xf32>
    %217 = vector.shape_cast %216 : vector<1x4x1x16xf32> to vector<4x16xf32>
    %c4_234 = arith.constant 4 : index
    %c253_235 = arith.constant 253 : index
    %218 = vector.load %arg10[%c4_234, %c253_235] : memref<8x324xf32, #tpu.memory_space<vmem>>, vector<4x16xf32>
    tpu.vector_store %arg10[%c4_234, %c253_235], %217 {strides = array<i32>} : memref<8x324xf32, #tpu.memory_space<vmem>>, vector<4x16xf32>,
    %cst_236 = arith.constant 0.000000e+00 : f32
    %219 = vector.broadcast %cst_236 : f32 to vector<8x2xf32>
    %c0_237 = arith.constant 0 : index
    %c269 = arith.constant 269 : index
    %220 = vector.load %arg10[%c0_237, %c269] : memref<8x324xf32, #tpu.memory_space<vmem>>, vector<8x2xf32>
    tpu.vector_store %arg10[%c0_237, %c269], %219 {strides = array<i32>} : memref<8x324xf32, #tpu.memory_space<vmem>>, vector<8x2xf32>,
    %c0_238 = arith.constant 0 : index
    %c6_239 = arith.constant 6 : index
    %c0_240 = arith.constant 0 : index
    %221 = vector.load %arg12[%c0_238, %c6_239, %c0_240] : memref<4x8x16xf32, #tpu.memory_space<vmem>>, vector<4x1x16xf32>
    %222 = vector.shape_cast %221 : vector<4x1x16xf32> to vector<4x16xf32>
    %cst_241 = arith.constant 2.500000e-01 : f32
    %223 = vector.broadcast %cst_241 : f32 to vector<4x16xf32>
    %224 = arith.mulf %223, %222 : vector<4x16xf32>
    %c0_242 = arith.constant 0 : index
    %c7_243 = arith.constant 7 : index
    %c0_244 = arith.constant 0 : index
    %225 = vector.load %arg12[%c0_242, %c7_243, %c0_244] : memref<4x8x16xf32, #tpu.memory_space<vmem>>, vector<4x1x16xf32>
    %226 = vector.shape_cast %225 : vector<4x1x16xf32> to vector<4x16xf32>
    %cst_245 = arith.constant 7.500000e-01 : f32
    %227 = vector.broadcast %cst_245 : f32 to vector<4x16xf32>
    %228 = arith.mulf %227, %226 : vector<4x16xf32>
    %229 = arith.addf %224, %228 : vector<4x16xf32>
    %c0_246 = arith.constant 0 : index
    %c271 = arith.constant 271 : index
    %230 = vector.load %arg10[%c0_246, %c271] : memref<8x324xf32, #tpu.memory_space<vmem>>, vector<4x16xf32>
    tpu.vector_store %arg10[%c0_246, %c271], %229 {strides = array<i32>} : memref<8x324xf32, #tpu.memory_space<vmem>>, vector<4x16xf32>,
    %c0_247 = arith.constant 0 : index
    %c0_248 = arith.constant 0 : index
    %c14 = arith.constant 14 : index
    %c0_249 = arith.constant 0 : index
    %231 = vector.load %arg2[%c0_247, %c0_248, %c14, %c0_249] : memref<1x4x16x16xf32, #tpu.memory_space<vmem>>, vector<1x4x1x16xf32>
    %232 = vector.shape_cast %231 : vector<1x4x1x16xf32> to vector<4x16xf32>
    %c4_250 = arith.constant 4 : index
    %c271_251 = arith.constant 271 : index
    %233 = vector.load %arg10[%c4_250, %c271_251] : memref<8x324xf32, #tpu.memory_space<vmem>>, vector<4x16xf32>
    tpu.vector_store %arg10[%c4_250, %c271_251], %232 {strides = array<i32>} : memref<8x324xf32, #tpu.memory_space<vmem>>, vector<4x16xf32>,
    %cst_252 = arith.constant 0.000000e+00 : f32
    %234 = vector.broadcast %cst_252 : f32 to vector<8x2xf32>
    %c0_253 = arith.constant 0 : index
    %c287 = arith.constant 287 : index
    %235 = vector.load %arg10[%c0_253, %c287] : memref<8x324xf32, #tpu.memory_space<vmem>>, vector<8x2xf32>
    tpu.vector_store %arg10[%c0_253, %c287], %234 {strides = array<i32>} : memref<8x324xf32, #tpu.memory_space<vmem>>, vector<8x2xf32>,
    %c0_254 = arith.constant 0 : index
    %c7_255 = arith.constant 7 : index
    %c0_256 = arith.constant 0 : index
    %236 = vector.load %arg12[%c0_254, %c7_255, %c0_256] : memref<4x8x16xf32, #tpu.memory_space<vmem>>, vector<4x1x16xf32>
    %237 = vector.shape_cast %236 : vector<4x1x16xf32> to vector<4x16xf32>
    %cst_257 = arith.constant 7.500000e-01 : f32
    %238 = vector.broadcast %cst_257 : f32 to vector<4x16xf32>
    %239 = arith.mulf %238, %237 : vector<4x16xf32>
    %c0_258 = arith.constant 0 : index
    %c7_259 = arith.constant 7 : index
    %c0_260 = arith.constant 0 : index
    %240 = vector.load %arg12[%c0_258, %c7_259, %c0_260] : memref<4x8x16xf32, #tpu.memory_space<vmem>>, vector<4x1x16xf32>
    %241 = vector.shape_cast %240 : vector<4x1x16xf32> to vector<4x16xf32>
    %cst_261 = arith.constant 2.500000e-01 : f32
    %242 = vector.broadcast %cst_261 : f32 to vector<4x16xf32>
    %243 = arith.mulf %242, %241 : vector<4x16xf32>
    %244 = arith.addf %239, %243 : vector<4x16xf32>
    %c0_262 = arith.constant 0 : index
    %c289 = arith.constant 289 : index
    %245 = vector.load %arg10[%c0_262, %c289] : memref<8x324xf32, #tpu.memory_space<vmem>>, vector<4x16xf32>
    tpu.vector_store %arg10[%c0_262, %c289], %244 {strides = array<i32>} : memref<8x324xf32, #tpu.memory_space<vmem>>, vector<4x16xf32>,
    %c0_263 = arith.constant 0 : index
    %c0_264 = arith.constant 0 : index
    %c15 = arith.constant 15 : index
    %c0_265 = arith.constant 0 : index
    %246 = vector.load %arg2[%c0_263, %c0_264, %c15, %c0_265] : memref<1x4x16x16xf32, #tpu.memory_space<vmem>>, vector<1x4x1x16xf32>
    %247 = vector.shape_cast %246 : vector<1x4x1x16xf32> to vector<4x16xf32>
    %c4_266 = arith.constant 4 : index
    %c289_267 = arith.constant 289 : index
    %248 = vector.load %arg10[%c4_266, %c289_267] : memref<8x324xf32, #tpu.memory_space<vmem>>, vector<4x16xf32>
    tpu.vector_store %arg10[%c4_266, %c289_267], %247 {strides = array<i32>} : memref<8x324xf32, #tpu.memory_space<vmem>>, vector<4x16xf32>,
    %cst_268 = arith.constant 0.000000e+00 : f32
    %249 = vector.broadcast %cst_268 : f32 to vector<8x2xf32>
    %c0_269 = arith.constant 0 : index
    %c305 = arith.constant 305 : index
    %250 = vector.load %arg10[%c0_269, %c305] : memref<8x324xf32, #tpu.memory_space<vmem>>, vector<8x2xf32>
    tpu.vector_store %arg10[%c0_269, %c305], %249 {strides = array<i32>} : memref<8x324xf32, #tpu.memory_space<vmem>>, vector<8x2xf32>,
    %cst_270 = arith.constant 0.000000e+00 : f32
    %251 = vector.broadcast %cst_270 : f32 to vector<4x286xf32>
    %c0_271 = arith.constant 0 : index
    %c0_272 = arith.constant 0 : index
    %c0_273 = arith.constant 0 : index
    %252 = vector.load %arg5[%c0_271, %c0_272, %c0_273] : memref<9x4x8xf32, #tpu.memory_space<vmem>>, vector<1x4x8xf32>
    %253 = vector.shape_cast %252 : vector<1x4x8xf32> to vector<4x8xf32>
    %c0_274 = arith.constant 0 : index
    %c0_275 = arith.constant 0 : index
    %254 = vector.load %arg10[%c0_274, %c0_275] : memref<8x324xf32, #tpu.memory_space<vmem>>, vector<8x286xf32>
    %cst_276 = arith.constant dense<0.000000e+00> : vector<4x286xf32>
    %255 = tpu.matmul %253, %254, %cst_276 {dimension_numbers = #tpu.dot_dimension_numbers<[1], [0], [0], [1], [0, 0, 1, 1], [], []>} : vector<4x8xf32>, vector<8x286xf32>, vector<4x286xf32> -> vector<4x286xf32>
    %256 = arith.addf %251, %255 : vector<4x286xf32>
    %c1_277 = arith.constant 1 : index
    %c0_278 = arith.constant 0 : index
    %c0_279 = arith.constant 0 : index
    %257 = vector.load %arg5[%c1_277, %c0_278, %c0_279] : memref<9x4x8xf32, #tpu.memory_space<vmem>>, vector<1x4x8xf32>
    %258 = vector.shape_cast %257 : vector<1x4x8xf32> to vector<4x8xf32>
    %c0_280 = arith.constant 0 : index
    %c1_281 = arith.constant 1 : index
    %259 = vector.load %arg10[%c0_280, %c1_281] : memref<8x324xf32, #tpu.memory_space<vmem>>, vector<8x286xf32>
    %cst_282 = arith.constant dense<0.000000e+00> : vector<4x286xf32>
    %260 = tpu.matmul %258, %259, %cst_282 {dimension_numbers = #tpu.dot_dimension_numbers<[1], [0], [0], [1], [0, 0, 1, 1], [], []>} : vector<4x8xf32>, vector<8x286xf32>, vector<4x286xf32> -> vector<4x286xf32>
    %261 = arith.addf %256, %260 : vector<4x286xf32>
    %c2_283 = arith.constant 2 : index
    %c0_284 = arith.constant 0 : index
    %c0_285 = arith.constant 0 : index
    %262 = vector.load %arg5[%c2_283, %c0_284, %c0_285] : memref<9x4x8xf32, #tpu.memory_space<vmem>>, vector<1x4x8xf32>
    %263 = vector.shape_cast %262 : vector<1x4x8xf32> to vector<4x8xf32>
    %c0_286 = arith.constant 0 : index
    %c2_287 = arith.constant 2 : index
    %264 = vector.load %arg10[%c0_286, %c2_287] : memref<8x324xf32, #tpu.memory_space<vmem>>, vector<8x286xf32>
    %cst_288 = arith.constant dense<0.000000e+00> : vector<4x286xf32>
    %265 = tpu.matmul %263, %264, %cst_288 {dimension_numbers = #tpu.dot_dimension_numbers<[1], [0], [0], [1], [0, 0, 1, 1], [], []>} : vector<4x8xf32>, vector<8x286xf32>, vector<4x286xf32> -> vector<4x286xf32>
    %266 = arith.addf %261, %265 : vector<4x286xf32>
    %c3_289 = arith.constant 3 : index
    %c0_290 = arith.constant 0 : index
    %c0_291 = arith.constant 0 : index
    %267 = vector.load %arg5[%c3_289, %c0_290, %c0_291] : memref<9x4x8xf32, #tpu.memory_space<vmem>>, vector<1x4x8xf32>
    %268 = vector.shape_cast %267 : vector<1x4x8xf32> to vector<4x8xf32>
    %c0_292 = arith.constant 0 : index
    %c18 = arith.constant 18 : index
    %269 = vector.load %arg10[%c0_292, %c18] : memref<8x324xf32, #tpu.memory_space<vmem>>, vector<8x286xf32>
    %cst_293 = arith.constant dense<0.000000e+00> : vector<4x286xf32>
    %270 = tpu.matmul %268, %269, %cst_293 {dimension_numbers = #tpu.dot_dimension_numbers<[1], [0], [0], [1], [0, 0, 1, 1], [], []>} : vector<4x8xf32>, vector<8x286xf32>, vector<4x286xf32> -> vector<4x286xf32>
    %271 = arith.addf %266, %270 : vector<4x286xf32>
    %c4_294 = arith.constant 4 : index
    %c0_295 = arith.constant 0 : index
    %c0_296 = arith.constant 0 : index
    %272 = vector.load %arg5[%c4_294, %c0_295, %c0_296] : memref<9x4x8xf32, #tpu.memory_space<vmem>>, vector<1x4x8xf32>
    %273 = vector.shape_cast %272 : vector<1x4x8xf32> to vector<4x8xf32>
    %c0_297 = arith.constant 0 : index
    %c19_298 = arith.constant 19 : index
    %274 = vector.load %arg10[%c0_297, %c19_298] : memref<8x324xf32, #tpu.memory_space<vmem>>, vector<8x286xf32>
    %cst_299 = arith.constant dense<0.000000e+00> : vector<4x286xf32>
    %275 = tpu.matmul %273, %274, %cst_299 {dimension_numbers = #tpu.dot_dimension_numbers<[1], [0], [0], [1], [0, 0, 1, 1], [], []>} : vector<4x8xf32>, vector<8x286xf32>, vector<4x286xf32> -> vector<4x286xf32>
    %276 = arith.addf %271, %275 : vector<4x286xf32>
    %c5_300 = arith.constant 5 : index
    %c0_301 = arith.constant 0 : index
    %c0_302 = arith.constant 0 : index
    %277 = vector.load %arg5[%c5_300, %c0_301, %c0_302] : memref<9x4x8xf32, #tpu.memory_space<vmem>>, vector<1x4x8xf32>
    %278 = vector.shape_cast %277 : vector<1x4x8xf32> to vector<4x8xf32>
    %c0_303 = arith.constant 0 : index
    %c20 = arith.constant 20 : index
    %279 = vector.load %arg10[%c0_303, %c20] : memref<8x324xf32, #tpu.memory_space<vmem>>, vector<8x286xf32>
    %cst_304 = arith.constant dense<0.000000e+00> : vector<4x286xf32>
    %280 = tpu.matmul %278, %279, %cst_304 {dimension_numbers = #tpu.dot_dimension_numbers<[1], [0], [0], [1], [0, 0, 1, 1], [], []>} : vector<4x8xf32>, vector<8x286xf32>, vector<4x286xf32> -> vector<4x286xf32>
    %281 = arith.addf %276, %280 : vector<4x286xf32>
    %c6_305 = arith.constant 6 : index
    %c0_306 = arith.constant 0 : index
    %c0_307 = arith.constant 0 : index
    %282 = vector.load %arg5[%c6_305, %c0_306, %c0_307] : memref<9x4x8xf32, #tpu.memory_space<vmem>>, vector<1x4x8xf32>
    %283 = vector.shape_cast %282 : vector<1x4x8xf32> to vector<4x8xf32>
    %c0_308 = arith.constant 0 : index
    %c36 = arith.constant 36 : index
    %284 = vector.load %arg10[%c0_308, %c36] : memref<8x324xf32, #tpu.memory_space<vmem>>, vector<8x286xf32>
    %cst_309 = arith.constant dense<0.000000e+00> : vector<4x286xf32>
    %285 = tpu.matmul %283, %284, %cst_309 {dimension_numbers = #tpu.dot_dimension_numbers<[1], [0], [0], [1], [0, 0, 1, 1], [], []>} : vector<4x8xf32>, vector<8x286xf32>, vector<4x286xf32> -> vector<4x286xf32>
    %286 = arith.addf %281, %285 : vector<4x286xf32>
    %c7_310 = arith.constant 7 : index
    %c0_311 = arith.constant 0 : index
    %c0_312 = arith.constant 0 : index
    %287 = vector.load %arg5[%c7_310, %c0_311, %c0_312] : memref<9x4x8xf32, #tpu.memory_space<vmem>>, vector<1x4x8xf32>
    %288 = vector.shape_cast %287 : vector<1x4x8xf32> to vector<4x8xf32>
    %c0_313 = arith.constant 0 : index
    %c37_314 = arith.constant 37 : index
    %289 = vector.load %arg10[%c0_313, %c37_314] : memref<8x324xf32, #tpu.memory_space<vmem>>, vector<8x286xf32>
    %cst_315 = arith.constant dense<0.000000e+00> : vector<4x286xf32>
    %290 = tpu.matmul %288, %289, %cst_315 {dimension_numbers = #tpu.dot_dimension_numbers<[1], [0], [0], [1], [0, 0, 1, 1], [], []>} : vector<4x8xf32>, vector<8x286xf32>, vector<4x286xf32> -> vector<4x286xf32>
    %291 = arith.addf %286, %290 : vector<4x286xf32>
    %c8_316 = arith.constant 8 : index
    %c0_317 = arith.constant 0 : index
    %c0_318 = arith.constant 0 : index
    %292 = vector.load %arg5[%c8_316, %c0_317, %c0_318] : memref<9x4x8xf32, #tpu.memory_space<vmem>>, vector<1x4x8xf32>
    %293 = vector.shape_cast %292 : vector<1x4x8xf32> to vector<4x8xf32>
    %c0_319 = arith.constant 0 : index
    %c38 = arith.constant 38 : index
    %294 = vector.load %arg10[%c0_319, %c38] : memref<8x324xf32, #tpu.memory_space<vmem>>, vector<8x286xf32>
    %cst_320 = arith.constant dense<0.000000e+00> : vector<4x286xf32>
    %295 = tpu.matmul %293, %294, %cst_320 {dimension_numbers = #tpu.dot_dimension_numbers<[1], [0], [0], [1], [0, 0, 1, 1], [], []>} : vector<4x8xf32>, vector<8x286xf32>, vector<4x286xf32> -> vector<4x286xf32>
    %296 = arith.addf %291, %295 : vector<4x286xf32>
    %c0_321 = arith.constant 0 : index
    %c0_322 = arith.constant 0 : index
    %297 = vector.load %arg6[%c0_321, %c0_322] : memref<4x1xf32, #tpu.memory_space<vmem>>, vector<4x1xf32>
    %298 = vector.broadcast %297 : vector<4x1xf32> to vector<4x286xf32>
    %299 = arith.addf %296, %298 : vector<4x286xf32>
    %cst_323 = arith.constant 0.000000e+00 : f32
    %300 = vector.broadcast %cst_323 : f32 to vector<4x286xf32>
    %301 = arith.maximumf %299, %300 : vector<4x286xf32>
    %c0_324 = arith.constant 0 : index
    %c0_325 = arith.constant 0 : index
    %302 = vector.load %arg4[%c0_324, %c0_325] : memref<1x286xf32, #tpu.memory_space<vmem>>, vector<1x286xf32>
    %303 = vector.broadcast %302 : vector<1x286xf32> to vector<4x286xf32>
    %304 = arith.mulf %301, %303 : vector<4x286xf32>
    %cst_326 = arith.constant 0.000000e+00 : f32
    %305 = vector.broadcast %cst_326 : f32 to vector<4x19xf32>
    %c0_327 = arith.constant 0 : index
    %c0_328 = arith.constant 0 : index
    %306 = vector.load %arg11[%c0_327, %c0_328] : memref<4x324xf32, #tpu.memory_space<vmem>>, vector<4x19xf32>
    tpu.vector_store %arg11[%c0_327, %c0_328], %305 {strides = array<i32>} : memref<4x324xf32, #tpu.memory_space<vmem>>, vector<4x19xf32>,
    %cst_329 = arith.constant 0.000000e+00 : f32
    %307 = vector.broadcast %cst_329 : f32 to vector<4x19xf32>
    %c0_330 = arith.constant 0 : index
    %c305_331 = arith.constant 305 : index
    %308 = vector.load %arg11[%c0_330, %c305_331] : memref<4x324xf32, #tpu.memory_space<vmem>>, vector<4x19xf32>
    tpu.vector_store %arg11[%c0_330, %c305_331], %307 {strides = array<i32>} : memref<4x324xf32, #tpu.memory_space<vmem>>, vector<4x19xf32>,
    %c0_332 = arith.constant 0 : index
    %c19_333 = arith.constant 19 : index
    %309 = vector.load %arg11[%c0_332, %c19_333] : memref<4x324xf32, #tpu.memory_space<vmem>>, vector<4x286xf32>
    tpu.vector_store %arg11[%c0_332, %c19_333], %304 {strides = array<i32>} : memref<4x324xf32, #tpu.memory_space<vmem>>, vector<4x286xf32>,
    %cst_334 = arith.constant 0.000000e+00 : f32
    %310 = vector.broadcast %cst_334 : f32 to vector<4x286xf32>
    %c0_335 = arith.constant 0 : index
    %c0_336 = arith.constant 0 : index
    %c0_337 = arith.constant 0 : index
    %311 = vector.load %arg7[%c0_335, %c0_336, %c0_337] : memref<9x4x4xf32, #tpu.memory_space<vmem>>, vector<1x4x4xf32>
    %312 = vector.shape_cast %311 : vector<1x4x4xf32> to vector<4x4xf32>
    %c0_338 = arith.constant 0 : index
    %c0_339 = arith.constant 0 : index
    %313 = vector.load %arg11[%c0_338, %c0_339] : memref<4x324xf32, #tpu.memory_space<vmem>>, vector<4x286xf32>
    %cst_340 = arith.constant dense<0.000000e+00> : vector<4x286xf32>
    %314 = tpu.matmul %312, %313, %cst_340 {dimension_numbers = #tpu.dot_dimension_numbers<[1], [0], [0], [1], [0, 0, 1, 1], [], []>} : vector<4x4xf32>, vector<4x286xf32>, vector<4x286xf32> -> vector<4x286xf32>
    %315 = arith.addf %310, %314 : vector<4x286xf32>
    %c1_341 = arith.constant 1 : index
    %c0_342 = arith.constant 0 : index
    %c0_343 = arith.constant 0 : index
    %316 = vector.load %arg7[%c1_341, %c0_342, %c0_343] : memref<9x4x4xf32, #tpu.memory_space<vmem>>, vector<1x4x4xf32>
    %317 = vector.shape_cast %316 : vector<1x4x4xf32> to vector<4x4xf32>
    %c0_344 = arith.constant 0 : index
    %c1_345 = arith.constant 1 : index
    %318 = vector.load %arg11[%c0_344, %c1_345] : memref<4x324xf32, #tpu.memory_space<vmem>>, vector<4x286xf32>
    %cst_346 = arith.constant dense<0.000000e+00> : vector<4x286xf32>
    %319 = tpu.matmul %317, %318, %cst_346 {dimension_numbers = #tpu.dot_dimension_numbers<[1], [0], [0], [1], [0, 0, 1, 1], [], []>} : vector<4x4xf32>, vector<4x286xf32>, vector<4x286xf32> -> vector<4x286xf32>
    %320 = arith.addf %315, %319 : vector<4x286xf32>
    %c2_347 = arith.constant 2 : index
    %c0_348 = arith.constant 0 : index
    %c0_349 = arith.constant 0 : index
    %321 = vector.load %arg7[%c2_347, %c0_348, %c0_349] : memref<9x4x4xf32, #tpu.memory_space<vmem>>, vector<1x4x4xf32>
    %322 = vector.shape_cast %321 : vector<1x4x4xf32> to vector<4x4xf32>
    %c0_350 = arith.constant 0 : index
    %c2_351 = arith.constant 2 : index
    %323 = vector.load %arg11[%c0_350, %c2_351] : memref<4x324xf32, #tpu.memory_space<vmem>>, vector<4x286xf32>
    %cst_352 = arith.constant dense<0.000000e+00> : vector<4x286xf32>
    %324 = tpu.matmul %322, %323, %cst_352 {dimension_numbers = #tpu.dot_dimension_numbers<[1], [0], [0], [1], [0, 0, 1, 1], [], []>} : vector<4x4xf32>, vector<4x286xf32>, vector<4x286xf32> -> vector<4x286xf32>
    %325 = arith.addf %320, %324 : vector<4x286xf32>
    %c3_353 = arith.constant 3 : index
    %c0_354 = arith.constant 0 : index
    %c0_355 = arith.constant 0 : index
    %326 = vector.load %arg7[%c3_353, %c0_354, %c0_355] : memref<9x4x4xf32, #tpu.memory_space<vmem>>, vector<1x4x4xf32>
    %327 = vector.shape_cast %326 : vector<1x4x4xf32> to vector<4x4xf32>
    %c0_356 = arith.constant 0 : index
    %c18_357 = arith.constant 18 : index
    %328 = vector.load %arg11[%c0_356, %c18_357] : memref<4x324xf32, #tpu.memory_space<vmem>>, vector<4x286xf32>
    %cst_358 = arith.constant dense<0.000000e+00> : vector<4x286xf32>
    %329 = tpu.matmul %327, %328, %cst_358 {dimension_numbers = #tpu.dot_dimension_numbers<[1], [0], [0], [1], [0, 0, 1, 1], [], []>} : vector<4x4xf32>, vector<4x286xf32>, vector<4x286xf32> -> vector<4x286xf32>
    %330 = arith.addf %325, %329 : vector<4x286xf32>
    %c4_359 = arith.constant 4 : index
    %c0_360 = arith.constant 0 : index
    %c0_361 = arith.constant 0 : index
    %331 = vector.load %arg7[%c4_359, %c0_360, %c0_361] : memref<9x4x4xf32, #tpu.memory_space<vmem>>, vector<1x4x4xf32>
    %332 = vector.shape_cast %331 : vector<1x4x4xf32> to vector<4x4xf32>
    %c0_362 = arith.constant 0 : index
    %c19_363 = arith.constant 19 : index
    %333 = vector.load %arg11[%c0_362, %c19_363] : memref<4x324xf32, #tpu.memory_space<vmem>>, vector<4x286xf32>
    %cst_364 = arith.constant dense<0.000000e+00> : vector<4x286xf32>
    %334 = tpu.matmul %332, %333, %cst_364 {dimension_numbers = #tpu.dot_dimension_numbers<[1], [0], [0], [1], [0, 0, 1, 1], [], []>} : vector<4x4xf32>, vector<4x286xf32>, vector<4x286xf32> -> vector<4x286xf32>
    %335 = arith.addf %330, %334 : vector<4x286xf32>
    %c5_365 = arith.constant 5 : index
    %c0_366 = arith.constant 0 : index
    %c0_367 = arith.constant 0 : index
    %336 = vector.load %arg7[%c5_365, %c0_366, %c0_367] : memref<9x4x4xf32, #tpu.memory_space<vmem>>, vector<1x4x4xf32>
    %337 = vector.shape_cast %336 : vector<1x4x4xf32> to vector<4x4xf32>
    %c0_368 = arith.constant 0 : index
    %c20_369 = arith.constant 20 : index
    %338 = vector.load %arg11[%c0_368, %c20_369] : memref<4x324xf32, #tpu.memory_space<vmem>>, vector<4x286xf32>
    %cst_370 = arith.constant dense<0.000000e+00> : vector<4x286xf32>
    %339 = tpu.matmul %337, %338, %cst_370 {dimension_numbers = #tpu.dot_dimension_numbers<[1], [0], [0], [1], [0, 0, 1, 1], [], []>} : vector<4x4xf32>, vector<4x286xf32>, vector<4x286xf32> -> vector<4x286xf32>
    %340 = arith.addf %335, %339 : vector<4x286xf32>
    %c6_371 = arith.constant 6 : index
    %c0_372 = arith.constant 0 : index
    %c0_373 = arith.constant 0 : index
    %341 = vector.load %arg7[%c6_371, %c0_372, %c0_373] : memref<9x4x4xf32, #tpu.memory_space<vmem>>, vector<1x4x4xf32>
    %342 = vector.shape_cast %341 : vector<1x4x4xf32> to vector<4x4xf32>
    %c0_374 = arith.constant 0 : index
    %c36_375 = arith.constant 36 : index
    %343 = vector.load %arg11[%c0_374, %c36_375] : memref<4x324xf32, #tpu.memory_space<vmem>>, vector<4x286xf32>
    %cst_376 = arith.constant dense<0.000000e+00> : vector<4x286xf32>
    %344 = tpu.matmul %342, %343, %cst_376 {dimension_numbers = #tpu.dot_dimension_numbers<[1], [0], [0], [1], [0, 0, 1, 1], [], []>} : vector<4x4xf32>, vector<4x286xf32>, vector<4x286xf32> -> vector<4x286xf32>
    %345 = arith.addf %340, %344 : vector<4x286xf32>
    %c7_377 = arith.constant 7 : index
    %c0_378 = arith.constant 0 : index
    %c0_379 = arith.constant 0 : index
    %346 = vector.load %arg7[%c7_377, %c0_378, %c0_379] : memref<9x4x4xf32, #tpu.memory_space<vmem>>, vector<1x4x4xf32>
    %347 = vector.shape_cast %346 : vector<1x4x4xf32> to vector<4x4xf32>
    %c0_380 = arith.constant 0 : index
    %c37_381 = arith.constant 37 : index
    %348 = vector.load %arg11[%c0_380, %c37_381] : memref<4x324xf32, #tpu.memory_space<vmem>>, vector<4x286xf32>
    %cst_382 = arith.constant dense<0.000000e+00> : vector<4x286xf32>
    %349 = tpu.matmul %347, %348, %cst_382 {dimension_numbers = #tpu.dot_dimension_numbers<[1], [0], [0], [1], [0, 0, 1, 1], [], []>} : vector<4x4xf32>, vector<4x286xf32>, vector<4x286xf32> -> vector<4x286xf32>
    %350 = arith.addf %345, %349 : vector<4x286xf32>
    %c8_383 = arith.constant 8 : index
    %c0_384 = arith.constant 0 : index
    %c0_385 = arith.constant 0 : index
    %351 = vector.load %arg7[%c8_383, %c0_384, %c0_385] : memref<9x4x4xf32, #tpu.memory_space<vmem>>, vector<1x4x4xf32>
    %352 = vector.shape_cast %351 : vector<1x4x4xf32> to vector<4x4xf32>
    %c0_386 = arith.constant 0 : index
    %c38_387 = arith.constant 38 : index
    %353 = vector.load %arg11[%c0_386, %c38_387] : memref<4x324xf32, #tpu.memory_space<vmem>>, vector<4x286xf32>
    %cst_388 = arith.constant dense<0.000000e+00> : vector<4x286xf32>
    %354 = tpu.matmul %352, %353, %cst_388 {dimension_numbers = #tpu.dot_dimension_numbers<[1], [0], [0], [1], [0, 0, 1, 1], [], []>} : vector<4x4xf32>, vector<4x286xf32>, vector<4x286xf32> -> vector<4x286xf32>
    %355 = arith.addf %350, %354 : vector<4x286xf32>
    %c0_389 = arith.constant 0 : index
    %c0_390 = arith.constant 0 : index
    %356 = vector.load %arg8[%c0_389, %c0_390] : memref<4x1xf32, #tpu.memory_space<vmem>>, vector<4x1xf32>
    %357 = vector.broadcast %356 : vector<4x1xf32> to vector<4x286xf32>
    %358 = arith.addf %355, %357 : vector<4x286xf32>
    %cst_391 = arith.constant 0.000000e+00 : f32
    %359 = vector.broadcast %cst_391 : f32 to vector<4x286xf32>
    %360 = arith.maximumf %358, %359 : vector<4x286xf32>
    %c0_392 = arith.constant 0 : index
    %c0_393 = arith.constant 0 : index
    %c0_394 = arith.constant 0 : index
    %361 = vector.load %arg9[%c0_392, %c0_393, %c0_394] : memref<1x4x286xf32, #tpu.memory_space<vmem>>, vector<1x4x286xf32>
    %362 = vector.shape_cast %361 : vector<1x4x286xf32> to vector<4x286xf32>
    %363 = vector.shape_cast %360 : vector<4x286xf32> to vector<1x4x286xf32>
    tpu.vector_store %arg9[%c0_392, %c0_393, %c0_394], %363 {strides = array<i32>} : memref<1x4x286xf32, #tpu.memory_space<vmem>>, vector<1x4x286xf32>,
    return
  }
  func.func @transform_0(%arg0: i32) -> (i32, i32, i32, i32) {
    %c0_i32 = arith.constant 0 : i32
    %c0_i32_0 = arith.constant 0 : i32
    %c0_i32_1 = arith.constant 0 : i32
    %c0_i32_2 = arith.constant 0 : i32
    return %arg0, %c0_i32, %c0_i32_0, %c0_i32_1 : i32, i32, i32, i32
  }
  func.func @transform_1(%arg0: i32) -> (i32, i32, i32, i32) {
    %c0_i32 = arith.constant 0 : i32
    %c0_i32_0 = arith.constant 0 : i32
    %c0_i32_1 = arith.constant 0 : i32
    %c0_i32_2 = arith.constant 0 : i32
    return %arg0, %c0_i32, %c0_i32_0, %c0_i32_1 : i32, i32, i32, i32
  }
  func.func @transform_2(%arg0: i32) -> (i32, i32) {
    %c0_i32 = arith.constant 0 : i32
    %c0_i32_0 = arith.constant 0 : i32
    %c0_i32_1 = arith.constant 0 : i32
    return %c0_i32, %c0_i32_0 : i32, i32
  }
  func.func @transform_3(%arg0: i32) -> (i32, i32) {
    %c0_i32 = arith.constant 0 : i32
    %c0_i32_0 = arith.constant 0 : i32
    %c0_i32_1 = arith.constant 0 : i32
    return %c0_i32, %c0_i32_0 : i32, i32
  }
  func.func @transform_4(%arg0: i32) -> (i32, i32, i32) {
    %c0_i32 = arith.constant 0 : i32
    %c0_i32_0 = arith.constant 0 : i32
    %c0_i32_1 = arith.constant 0 : i32
    %c0_i32_2 = arith.constant 0 : i32
    return %c0_i32, %c0_i32_0, %c0_i32_1 : i32, i32, i32
  }
  func.func @transform_5(%arg0: i32) -> (i32, i32) {
    %c0_i32 = arith.constant 0 : i32
    %c0_i32_0 = arith.constant 0 : i32
    %c0_i32_1 = arith.constant 0 : i32
    return %c0_i32, %c0_i32_0 : i32, i32
  }
  func.func @transform_6(%arg0: i32) -> (i32, i32, i32) {
    %c0_i32 = arith.constant 0 : i32
    %c0_i32_0 = arith.constant 0 : i32
    %c0_i32_1 = arith.constant 0 : i32
    %c0_i32_2 = arith.constant 0 : i32
    return %c0_i32, %c0_i32_0, %c0_i32_1 : i32, i32, i32
  }
  func.func @transform_7(%arg0: i32) -> (i32, i32) {
    %c0_i32 = arith.constant 0 : i32
    %c0_i32_0 = arith.constant 0 : i32
    %c0_i32_1 = arith.constant 0 : i32
    return %c0_i32, %c0_i32_0 : i32, i32
  }
  func.func @transform_8(%arg0: i32) -> (i32, i32, i32) {
    %c0_i32 = arith.constant 0 : i32
    %c0_i32_0 = arith.constant 0 : i32
    %c0_i32_1 = arith.constant 0 : i32
    return %arg0, %c0_i32, %c0_i32_0 : i32, i32, i32
  }
}

</mosaic_0001>

<llo_original>
// kernel: tpu_custom_call.1
$region0: #{tpu_custom_call.1}
  #allocation0 [shape = 'u32[]', space=smem, size = 0x4, offset = 0x4, fixed_abs, tag = 'smem constant byte address 0x4 - core index']
  #allocation1 [shape = 'u32[144,128]{1,0:T(1,128)}', space=vmem, size = 0x12000, scoped, tag = 'internal scratch']
  #allocation2 [shape = 'f32[8,324]{1,0:T(8,128)}', space=vmem, size = 0x3000, scoped, tag = 'scratch operand']
  #allocation3 [shape = 'f32[4,324]{1,0:T(4,128)}', space=vmem, size = 0x1800, scoped, tag = 'scratch operand']
  #allocation4 [shape = 'f32[4,8,16]{2,1,0:T(8,128)}', space=vmem, size = 0x4000, scoped, tag = 'scratch operand']
  %s0 = inlined_call_operand.hbm [shape: f32[2,4,8,8], index: 0, kind: input, shape index: {}]
  %s1 = inlined_call_operand.vmem [shape: f32[2,4,16,16], index: 1, kind: input, shape index: {}]
  %s2 = inlined_call_operand.hbm [shape: f32[8,16], index: 2, kind: input, shape index: {}]
  %s3 = inlined_call_operand.hbm [shape: f32[1,286], index: 3, kind: input, shape index: {}]
  %s4 = inlined_call_operand.vmem [shape: f32[9,4,8], index: 4, kind: input, shape index: {}]
  %s5 = inlined_call_operand.vmem [shape: f32[4,1], index: 5, kind: input, shape index: {}]
  %s6 = inlined_call_operand.vmem [shape: f32[9,4,4], index: 6, kind: input, shape index: {}]
  %s7 = inlined_call_operand.vmem [shape: f32[4,1], index: 7, kind: input, shape index: {}]
  %s8 = inlined_call_operand.hbm [shape: f32[2,4,286], index: 8, kind: output, shape index: {}]
  %s9 = sld [smem:[#allocation0]]
  $region77: #{tpu_custom_call.1} parent=0
    _
  %s11 = ssub.s32 1, %s9
  %s12 = scalar_select 0, %s11, %s9
  $region1: #{tpu_custom_call.1} parent=0
    #allocation5 [shape = 'u8[32768]{0}', space=vmem, size = 0x8000, scoped, tag = 'input window, operand 0']
    #allocation6 [shape = 's32[2]{0}', space=sflag, size = 0x8, scoped, tag = 'scoped memory for tpu_custom_call.1']
    #allocation7 [shape = 's32[2]{0}', space=sflag, size = 0x8, scoped, tag = 'scoped memory for tpu_custom_call.1']
    #allocation8 [shape = 'u8[4096]{0}', space=vmem, size = 0x1000, scoped, tag = 'input window, operand 2, single buffered']
    #allocation9 [shape = 's32[1]{0}', space=sflag, size = 0x4, scoped, tag = 'scoped memory for tpu_custom_call.1']
    #allocation10 [shape = 'u8[1536]{0}', space=vmem, size = 0x800, scoped, tag = 'input window, operand 3, single buffered']
    #allocation11 [shape = 'u8[12288]{0}', space=vmem, size = 0x3000, scoped, tag = 'output window, operand 0']
    %13 = vsyncpa [#allocation6], 0
    %s14 = scalar_lea.sflag [#allocation6], 1
    %15 = vsyncpa %s14, 0
    %16 = vsyncpa [#allocation9], 0
    %17 = vsyncpa [#allocation7], 0
    %s18 = scalar_lea.sflag [#allocation7], 1
    %19 = vsyncpa %s18, 0
    loop: start=0, step=1, limit=4
    $region2: #{tpu_custom_call.1} parent=1 // loop_pre_header
      _
    $region3: #{tpu_custom_call.1} parent=1 // loop_header
      %s21 = sphi 0, %s25
      %p22 = scmp.ge.s32.totalorder %s21, 4
      %s31 = sphi 0, %s33
      %s34 = sphi 0, %s31
      %s35 = sphi 0, %s34
      %s51 = sphi 0, %s35
      %s57 = sphi 0, %s59
      %s60 = sphi 0, %s57
      %s61 = sphi 0, %s60
      %s77 = sphi 0, %s61
      %s81 = sphi 0, %s81
      %s83 = sphi 0, %s81
      %s84 = sphi 0, %s83
      %s98 = sphi 0, %s84
      %s102 = sphi 0, %s102
      %s104 = sphi 0, %s102
      %s105 = sphi 0, %s104
      %s119 = sphi 0, %s105
      %s123 = sphi 0, %s123
      %s125 = sphi 0, %s123
      %s126 = sphi 0, %s125
      %s140 = sphi 0, %s126
      %s144 = sphi 0, %s144
      %s146 = sphi 0, %s144
      %s147 = sphi 0, %s146
      %s161 = sphi 0, %s147
      %s165 = sphi 0, %s165
      %s167 = sphi 0, %s165
      %s168 = sphi 0, %s167
      %s182 = sphi 0, %s168
      %s186 = sphi 0, %s186
      %s188 = sphi 0, %s186
      %s189 = sphi 0, %s188
      %s203 = sphi 0, %s189
      %s209 = sphi 0, %s211
      %s212 = sphi 0, %s209
      %s213 = sphi 0, %s212
      %s229 = sphi 0, %s213
    $region4: #{tpu_custom_call.1} parent=1 // loop_header_branch
      %24 = sbr.rel (%p22) target = $region8
    $region5: #{tpu_custom_call.1} parent=1 // loop_body
      %s26 = ssub.s32 %s21, 1
      %s27 = ssub.s32 %s21, 2
      %s28 = sadd.s32 %s21, 1
      %s29 = ssub.s32 %s21, %s28
      %p30 = scmp.eq.s32.totalorder %s29, 0
      %s32 = sadd.s32 %s31, 1
      %s33 = scalar_select %p30, %s31, %s32
      %p36 = pneg %p30
      %p37 = scmp.eq.s32.totalorder %s21, 1
      %p38 = por %p36, %p37
      %p39 = scmp.ne.s32.totalorder %s31, %s34
      %p40 = scmp.eq.s32.totalorder %s21, 0
      %p41 = por %p39, %p40
      %p42 = scmp.ne.s32.totalorder %s31, %s34
      %p43 = scmp.eq.s32.totalorder %s26, 1
      %p44 = por %p42, %p43
      %p45 = scmp.ne.s32.totalorder %s34, %s35
      %p46 = scmp.eq.s32.totalorder %s26, 0
      %p47 = por %p45, %p46
      %p48 = scmp.ne.s32.totalorder %s34, %s35
      %p49 = scmp.eq.s32.totalorder %s27, 1
      %p50 = por %p48, %p49
      %p52 = scmp.ne.s32.totalorder %s35, %s51
      %p53 = scmp.eq.s32.totalorder %s27, 0
      %p54 = por %p52, %p53
      %s55 = ssub.s32 %s21, %s28
      %p56 = scmp.eq.s32.totalorder %s55, 0
      %s58 = sadd.s32 %s57, 1
      %s59 = scalar_select %p56, %s57, %s58
      %p62 = pneg %p56
      %p63 = scmp.eq.s32.totalorder %s21, 1
      %p64 = por %p62, %p63
      %p65 = scmp.ne.s32.totalorder %s57, %s60
      %p66 = scmp.eq.s32.totalorder %s21, 0
      %p67 = por %p65, %p66
      %p68 = scmp.ne.s32.totalorder %s57, %s60
      %p69 = scmp.eq.s32.totalorder %s26, 1
      %p70 = por %p68, %p69
      %p71 = scmp.ne.s32.totalorder %s60, %s61
      %p72 = scmp.eq.s32.totalorder %s26, 0
      %p73 = por %p71, %p72
      %p74 = scmp.ne.s32.totalorder %s60, %s61
      %p75 = scmp.eq.s32.totalorder %s27, 1
      %p76 = por %p74, %p75
      %p78 = scmp.ne.s32.totalorder %s61, %s77
      %p79 = scmp.eq.s32.totalorder %s27, 0
      %p80 = por %p78, %p79
      %s82 = sadd.s32 %s81, 1
      %p85 = scmp.eq.s32.totalorder %s21, 1
      %p86 = scmp.ne.s32.totalorder %s81, %s83
      %p87 = scmp.eq.s32.totalorder %s21, 0
      %p88 = por %p86, %p87
      %p89 = scmp.ne.s32.totalorder %s81, %s83
      %p90 = scmp.eq.s32.totalorder %s26, 1
      %p91 = por %p89, %p90
      %p92 = scmp.ne.s32.totalorder %s83, %s84
      %p93 = scmp.eq.s32.totalorder %s26, 0
      %p94 = por %p92, %p93
      %p95 = scmp.ne.s32.totalorder %s83, %s84
      %p96 = scmp.eq.s32.totalorder %s27, 1
      %p97 = por %p95, %p96
      %p99 = scmp.ne.s32.totalorder %s84, %s98
      %p100 = scmp.eq.s32.totalorder %s27, 0
      %p101 = por %p99, %p100
      %s103 = sadd.s32 %s102, 1
      %p106 = scmp.eq.s32.totalorder %s21, 1
      %p107 = scmp.ne.s32.totalorder %s102, %s104
      %p108 = scmp.eq.s32.totalorder %s21, 0
      %p109 = por %p107, %p108
      %p110 = scmp.ne.s32.totalorder %s102, %s104
      %p111 = scmp.eq.s32.totalorder %s26, 1
      %p112 = por %p110, %p111
      %p113 = scmp.ne.s32.totalorder %s104, %s105
      %p114 = scmp.eq.s32.totalorder %s26, 0
      %p115 = por %p113, %p114
      %p116 = scmp.ne.s32.totalorder %s104, %s105
      %p117 = scmp.eq.s32.totalorder %s27, 1
      %p118 = por %p116, %p117
      %p120 = scmp.ne.s32.totalorder %s105, %s119
      %p121 = scmp.eq.s32.totalorder %s27, 0
      %p122 = por %p120, %p121
      %s124 = sadd.s32 %s123, 1
      %p127 = scmp.eq.s32.totalorder %s21, 1
      %p128 = scmp.ne.s32.totalorder %s123, %s125
      %p129 = scmp.eq.s32.totalorder %s21, 0
      %p130 = por %p128, %p129
      %p131 = scmp.ne.s32.totalorder %s123, %s125
      %p132 = scmp.eq.s32.totalorder %s26, 1
      %p133 = por %p131, %p132
      %p134 = scmp.ne.s32.totalorder %s125, %s126
      %p135 = scmp.eq.s32.totalorder %s26, 0
      %p136 = por %p134, %p135
      %p137 = scmp.ne.s32.totalorder %s125, %s126
      %p138 = scmp.eq.s32.totalorder %s27, 1
      %p139 = por %p137, %p138
      %p141 = scmp.ne.s32.totalorder %s126, %s140
      %p142 = scmp.eq.s32.totalorder %s27, 0
      %p143 = por %p141, %p142
      %s145 = sadd.s32 %s144, 1
      %p148 = scmp.eq.s32.totalorder %s21, 1
      %p149 = scmp.ne.s32.totalorder %s144, %s146
      %p150 = scmp.eq.s32.totalorder %s21, 0
      %p151 = por %p149, %p150
      %p152 = scmp.ne.s32.totalorder %s144, %s146
      %p153 = scmp.eq.s32.totalorder %s26, 1
      %p154 = por %p152, %p153
      %p155 = scmp.ne.s32.totalorder %s146, %s147
      %p156 = scmp.eq.s32.totalorder %s26, 0
      %p157 = por %p155, %p156
      %p158 = scmp.ne.s32.totalorder %s146, %s147
      %p159 = scmp.eq.s32.totalorder %s27, 1
      %p160 = por %p158, %p159
      %p162 = scmp.ne.s32.totalorder %s147, %s161
      %p163 = scmp.eq.s32.totalorder %s27, 0
      %p164 = por %p162, %p163
      %s166 = sadd.s32 %s165, 1
      %p169 = scmp.eq.s32.totalorder %s21, 1
      %p170 = scmp.ne.s32.totalorder %s165, %s167
      %p171 = scmp.eq.s32.totalorder %s21, 0
      %p172 = por %p170, %p171
      %p173 = scmp.ne.s32.totalorder %s165, %s167
      %p174 = scmp.eq.s32.totalorder %s26, 1
      %p175 = por %p173, %p174
      %p176 = scmp.ne.s32.totalorder %s167, %s168
      %p177 = scmp.eq.s32.totalorder %s26, 0
      %p178 = por %p176, %p177
      %p179 = scmp.ne.s32.totalorder %s167, %s168
      %p180 = scmp.eq.s32.totalorder %s27, 1
      %p181 = por %p179, %p180
      %p183 = scmp.ne.s32.totalorder %s168, %s182
      %p184 = scmp.eq.s32.totalorder %s27, 0
      %p185 = por %p183, %p184
      %s187 = sadd.s32 %s186, 1
      %p190 = scmp.eq.s32.totalorder %s21, 1
      %p191 = scmp.ne.s32.totalorder %s186, %s188
      %p192 = scmp.eq.s32.totalorder %s21, 0
      %p193 = por %p191, %p192
      %p194 = scmp.ne.s32.totalorder %s186, %s188
      %p195 = scmp.eq.s32.totalorder %s26, 1
      %p196 = por %p194, %p195
      %p197 = scmp.ne.s32.totalorder %s188, %s189
      %p198 = scmp.eq.s32.totalorder %s26, 0
      %p199 = por %p197, %p198
      %p200 = scmp.ne.s32.totalorder %s188, %s189
      %p201 = scmp.eq.s32.totalorder %s27, 1
      %p202 = por %p200, %p201
      %p204 = scmp.ne.s32.totalorder %s189, %s203
      %p205 = scmp.eq.s32.totalorder %s27, 0
      %p206 = por %p204, %p205
      %s207 = ssub.s32 %s21, %s28
      %p208 = scmp.eq.s32.totalorder %s207, 0
      %s210 = sadd.s32 %s209, 1
      %s211 = scalar_select %p208, %s209, %s210
      %p214 = pneg %p208
      %p215 = scmp.eq.s32.totalorder %s21, 1
      %p216 = por %p214, %p215
      %p217 = scmp.ne.s32.totalorder %s209, %s212
      %p218 = scmp.eq.s32.totalorder %s21, 0
      %p219 = por %p217, %p218
      %p220 = scmp.ne.s32.totalorder %s209, %s212
      %p221 = scmp.eq.s32.totalorder %s26, 1
      %p222 = por %p220, %p221
      %p223 = scmp.ne.s32.totalorder %s212, %s213
      %p224 = scmp.eq.s32.totalorder %s26, 0
      %p225 = por %p223, %p224
      %p226 = scmp.ne.s32.totalorder %s212, %s213
      %p227 = scmp.eq.s32.totalorder %s27, 1
      %p228 = por %p226, %p227
      %p230 = scmp.ne.s32.totalorder %s213, %s229
      %p231 = scmp.eq.s32.totalorder %s27, 0
      %p232 = por %p230, %p231
      %p233 = scmp.le.s32.totalorder 1, %s21
      %p234 = scmp.lt.s32.totalorder %s21, 3
      %p235 = pnand %p233, %p234
      %p236 = pneg %p235
      // Predicated region
      $region9: #{tpu_custom_call.1} parent=5 // pred_check
        _
      $region10: #{tpu_custom_call.1} parent=5 // pred_check_branch
        %238 = sbr.rel (%p235) target = $region12
      $region11: #{tpu_custom_call.1} parent=5 // pred_region
        %s239 = ssub.s32 %s21, 1
        // Predicated region
        $region13: #{tpu_custom_call.1} parent=11 // pred_check
          %p240 = pneg %p94
        $region14: #{tpu_custom_call.1} parent=11 // pred_check_branch
          %242 = sbr.rel (%p240) target = $region16
        $region15: #{tpu_custom_call.1} parent=11 // pred_region
          %s244 = ssub.s32 128, 128
          %245 = vsyncadd [#allocation9], %s244
          %s247 = sshll.u32 [#allocation8], 4
          %s248 = int_to_ptr.vmem [resolvable:$true] %s247
          %250 = dma.hbm_to_vmem [thread:$0]  %s2, 128, %s248, [#allocation9]
        $region16: #{tpu_custom_call.1} parent=11 // pred_fallthru
          _
        // Predicated region
        $region17: #{tpu_custom_call.1} parent=11 // pred_check
          %p251 = pneg %p115
        $region18: #{tpu_custom_call.1} parent=11 // pred_check_branch
          %253 = sbr.rel (%p251) target = $region20
        $region19: #{tpu_custom_call.1} parent=11 // pred_region
          %s255 = ssub.s32 48, 48
          %256 = vsyncadd [#allocation9], %s255
          %s258 = sshll.u32 [#allocation10], 4
          %s259 = int_to_ptr.vmem [resolvable:$true] %s258
          %261 = dma.hbm_to_vmem [thread:$0]  %s3, 48, %s259, [#allocation9]
        $region20: #{tpu_custom_call.1} parent=11 // pred_fallthru
          _
        // Predicated region
        $region21: #{tpu_custom_call.1} parent=11 // pred_check
          %p262 = pneg %p136
        $region22: #{tpu_custom_call.1} parent=11 // pred_check_branch
          %264 = sbr.rel (%p262) target = $region24
        $region23: #{tpu_custom_call.1} parent=11 // pred_region
          _
        $region24: #{tpu_custom_call.1} parent=11 // pred_fallthru
          _
        // Predicated region
        $region25: #{tpu_custom_call.1} parent=11 // pred_check
          %p265 = pneg %p157
        $region26: #{tpu_custom_call.1} parent=11 // pred_check_branch
          %267 = sbr.rel (%p265) target = $region28
        $region27: #{tpu_custom_call.1} parent=11 // pred_region
          _
        $region28: #{tpu_custom_call.1} parent=11 // pred_fallthru
          _
        // Predicated region
        $region29: #{tpu_custom_call.1} parent=11 // pred_check
          %p268 = pneg %p178
        $region30: #{tpu_custom_call.1} parent=11 // pred_check_branch
          %270 = sbr.rel (%p268) target = $region32
        $region31: #{tpu_custom_call.1} parent=11 // pred_region
          _
        $region32: #{tpu_custom_call.1} parent=11 // pred_fallthru
          _
        // Predicated region
        $region33: #{tpu_custom_call.1} parent=11 // pred_check
          %p271 = pneg %p199
        $region34: #{tpu_custom_call.1} parent=11 // pred_check_branch
          %273 = sbr.rel (%p271) target = $region36
        $region35: #{tpu_custom_call.1} parent=11 // pred_region
          _
        $region36: #{tpu_custom_call.1} parent=11 // pred_fallthru
          _
      $region12: #{tpu_custom_call.1} parent=5 // pred_fallthru
        _
      %p274 = scmp.lt.s32.totalorder %s21, 2
      // Predicated region
      $region37: #{tpu_custom_call.1} parent=5 // pred_check
        %p275 = pneg %p274
      $region38: #{tpu_custom_call.1} parent=5 // pred_check_branch
        %277 = sbr.rel (%p275) target = $region40
      $region39: #{tpu_custom_call.1} parent=5 // pred_region
        // Predicated region
        $region41: #{tpu_custom_call.1} parent=39 // pred_check
          %p278 = pneg %p41
        $region42: #{tpu_custom_call.1} parent=39 // pred_check_branch
          %280 = sbr.rel (%p278) target = $region44
        $region43: #{tpu_custom_call.1} parent=39 // pred_region
          %s281 = sand.u32 %s31, 1
          %s282 = scalar_lea.sflag [#allocation6], %s281
          %s283 = sand.u32 %s31, 1
          %s284 = smul.addr %s283, 32
          %s285 = scalar_lea.vmem [#allocation5], %s284
          %s287 = ssub.s32 512, 512
          %288 = vsyncadd %s282, %s287
          %s289 = smul.addr %s21, 4
          %s290 = smul.addr %s289, 128
          %s291 = scalar_lea.hbm %s0, %s290
          %s292 = sshll.u32 %s285, 4
          %s293 = int_to_ptr.vmem [resolvable:$true] %s292
          %298 = dma.hbm_to_vmem [thread:$0]  %s291, 512, %s293, %s282, 128, 128, 8
        $region44: #{tpu_custom_call.1} parent=39 // pred_fallthru
          _
        // Predicated region
        $region45: #{tpu_custom_call.1} parent=39 // pred_check
          %p299 = pneg %p67
        $region46: #{tpu_custom_call.1} parent=39 // pred_check_branch
          %301 = sbr.rel (%p299) target = $region48
        $region47: #{tpu_custom_call.1} parent=39 // pred_region
          %p302 = scmp.lt.s32.totalorder %s21, 1
          %s303 = scalar_select %p302, %s21, 1
          %s304 = smul.addr %s303, 8
          %s305 = smul.addr %s304, 8
          %s306 = scalar_lea.vmem %s1, %s305
        $region48: #{tpu_custom_call.1} parent=39 // pred_fallthru
          _
      $region40: #{tpu_custom_call.1} parent=5 // pred_fallthru
        _
      %p307 = scmp.le.s32.totalorder 1, %s21
      %p308 = scmp.lt.s32.totalorder %s21, 3
      %p309 = pnand %p307, %p308
      %p310 = pneg %p309
      // Predicated region
      $region49: #{tpu_custom_call.1} parent=5 // pred_check
        _
      $region50: #{tpu_custom_call.1} parent=5 // pred_check_branch
        %312 = sbr.rel (%p309) target = $region52
      $region51: #{tpu_custom_call.1} parent=5 // pred_region
        %s313 = ssub.s32 %s21, 1
        %s314 = sand.u32 %s34, 1
        %s315 = scalar_lea.sflag [#allocation6], %s314
        %s316 = sand.u32 %s34, 1
        %s317 = smul.addr %s316, 32
        %s318 = scalar_lea.vmem [#allocation5], %s317
        // Predicated region
        $region53: #{tpu_custom_call.1} parent=51 // pred_check
          %p319 = pneg %p47
        $region54: #{tpu_custom_call.1} parent=51 // pred_check_branch
          %321 = sbr.rel (%p319) target = $region56
        $region55: #{tpu_custom_call.1} parent=51 // pred_region
          %322 = dma.done %s315, 512
        $region56: #{tpu_custom_call.1} parent=51 // pred_fallthru
          _
        // Predicated region
        $region57: #{tpu_custom_call.1} parent=51 // pred_check
          %p323 = pneg %p94
        $region58: #{tpu_custom_call.1} parent=51 // pred_check_branch
          %325 = sbr.rel (%p323) target = $region60
        $region59: #{tpu_custom_call.1} parent=51 // pred_region
          %326 = dma.done [#allocation9], 128
        $region60: #{tpu_custom_call.1} parent=51 // pred_fallthru
          _
        // Predicated region
        $region61: #{tpu_custom_call.1} parent=51 // pred_check
          %p327 = pneg %p115
        $region62: #{tpu_custom_call.1} parent=51 // pred_check_branch
          %329 = sbr.rel (%p327) target = $region64
        $region63: #{tpu_custom_call.1} parent=51 // pred_region
          %330 = dma.done [#allocation9], 48
        $region64: #{tpu_custom_call.1} parent=51 // pred_fallthru
          _
        %s331 = sand.u32 %s34, 1
        %s332 = scalar_lea.sflag [#allocation6], %s331
        %s333 = sand.u32 %s34, 1
        %s334 = smul.addr %s333, 32
        %s335 = scalar_lea.vmem [#allocation5], %s334
        %p336 = pneg %p47
        %p337 = pneg %p44
        %p338 = scmp.lt.s32.totalorder %s26, 1
        %s339 = scalar_select %p338, %s26, 1
        %s340 = smul.addr %s339, 8
        %s341 = smul.addr %s340, 8
        %s342 = scalar_lea.vmem %s1, %s341
        %p343 = pneg %p73
        %p344 = pneg %p70
        %p345 = pneg %p94
        %p346 = pneg %p91
        %p347 = pneg %p115
        %p348 = pneg %p112
        %p349 = pneg %p136
        %p350 = pneg %p133
        %p351 = pneg %p157
        %p352 = pneg %p154
        %p353 = pneg %p178
        %p354 = pneg %p175
        %p355 = pneg %p199
        %p356 = pneg %p196
        %p357 = pneg %p225
        %p358 = pneg %p222
        %s359 = sand.u32 %s212, 1
        %s360 = scalar_lea.sflag [#allocation7], %s359
        %s361 = sand.u32 %s212, 1
        %s362 = smul.addr %s361, 12
        %s363 = scalar_lea.vmem [#allocation11], %s362
        %p364 = scmp.lt.s32.totalorder %s26, 1
        %s365 = scalar_select %p364, %s26, 1
        %s366 = smul.addr %s365, 8
        %s367 = smul.addr %s366, 8
        %s368 = scalar_lea.vmem %s1, %s367
        %v369 = vld [vmem:[%s318] sm:$0xff]
        %v370 = vld [vmem:[%s318 + $0x8] sm:$0xff]
        %v371 = vld [vmem:[%s318 + $0x10] sm:$0xff]
        %v372 = vld [vmem:[%s318 + $0x18] sm:$0xff]
        %v373 = vld [vmem:[#allocation8] sm:$0xff]
        %vm374 = vcmask 64512
        %v376 = vsel %vm374, %v369, 0
        %v379 = vsel %vm374, %v370, 0
        %v382 = vsel %vm374, %v371, 0
        %v385 = vsel %vm374, %v372, 0
        %387 = vmatprep.subr.mxu0 0.0
        %388 = vmatpush1.msra.mxu0 %v373
        %389 = vmatprep.subr.mxu0 0.0
        %390 = vmatpush1.msra.mxu0 0.0
        %391 = vmatprep.subr.mxu0 0.0
        %392 = vmatpush1.msra.mxu0 0.0
        %393 = vmatprep.subr.mxu0 0.0
        %394 = vmatpush1.msra.mxu0 0.0
        %395 = vmatprep.subr.mxu0 0.0
        %396 = vmatpush1.msra.mxu0 0.0
        %397 = vmatprep.subr.mxu0 0.0
        %398 = vmatpush1.msra.mxu0 0.0
        %399 = vmatprep.subr.mxu0 0.0
        %400 = vmatpush1.msra.mxu0 0.0
        %401 = vmatprep.subr.mxu0 0.0
        %402 = vmatpush1.msra.mxu0 0.0
        %403 = vmatprep.subr.mxu0 0.0
        %404 = vmatpush1.msra.mxu0 0.0
        %405 = vmatprep.subr.mxu0 0.0
        %406 = vmatpush1.msra.mxu0 0.0
        %407 = vmatprep.subr.mxu0 0.0
        %408 = vmatpush1.msra.mxu0 0.0
        %409 = vmatprep.subr.mxu0 0.0
        %410 = vmatpush1.msra.mxu0 0.0
        %411 = vmatprep.subr.mxu0 0.0
        %412 = vmatpush1.msra.mxu0 0.0
        %413 = vmatprep.subr.mxu0 0.0
        %414 = vmatpush1.msra.mxu0 0.0
        %415 = vmatprep.subr.mxu0 0.0
        %416 = vmatpush1.msra.mxu0 0.0
        %417 = vmatprep.subr.mxu0 0.0
        %418 = vmatpush1.msra.mxu0 0.0
        %419 = vmatprep.subr.mxu0 0.0
        %420 = vmatpush1.msra.mxu0 0.0
        %421 = vmatprep.subr.mxu0 0.0
        %422 = vmatpush1.msra.mxu0 0.0
        %423 = vmatprep.subr.mxu0 0.0
        %424 = vmatpush1.msra.mxu0 0.0
        %425 = vmatprep.subr.mxu0 0.0
        %426 = vmatpush1.msra.mxu0 0.0
        %427 = vmatprep.subr.mxu0 0.0
        %428 = vmatpush1.msra.mxu0 0.0
        %429 = vmatprep.subr.mxu0 0.0
        %430 = vmatpush1.msra.mxu0 0.0
        %431 = vmatprep.subr.mxu0 0.0
        %432 = vmatpush1.msra.mxu0 0.0
        %433 = vmatprep.subr.mxu0 0.0
        %434 = vmatpush1.msra.mxu0 0.0
        %435 = vmatprep.subr.mxu0 0.0
        %436 = vmatpush1.msra.mxu0 0.0
        %437 = vmatprep.subr.mxu0 0.0
        %438 = vmatpush1.msra.mxu0 0.0
        %439 = vmatprep.subr.mxu0 0.0
        %440 = vmatpush1.msra.mxu0 0.0
        %441 = vmatprep.subr.mxu0 0.0
        %442 = vmatpush1.msra.mxu0 0.0
        %443 = vmatprep.subr.mxu0 0.0
        %444 = vmatpush1.msra.mxu0 0.0
        %445 = vmatprep.subr.mxu0 0.0
        %446 = vmatpush1.msra.mxu0 0.0
        %447 = vmatprep.subr.mxu0 0.0
        %448 = vmatpush1.msra.mxu0 0.0
        %449 = vmatprep.subr.mxu0 0.0
        %450 = vmatpush1.msra.mxu0 0.0
        %451 = vmatprep.mubr.f32.mxu0 0.0
        %452 = vmatmul.mubr.f32.gmra.mrb[0].mxu0 %v376
        %v453 = vpop.f32.mrb[0].mxu0
        %v454 = vadd.f32 0.0, %v453
        %v455 = vpop.f32.mrb[0].mxu0
        %456 = vmatprep.mubr.f32.mxu0 0.0
        %457 = vmatmul.mubr.f32.gmra.mrb[0].mxu0 %v379
        %v458 = vpop.f32.mrb[0].mxu0
        %v459 = vadd.f32 0.0, %v458
        %v460 = vpop.f32.mrb[0].mxu0
        %461 = vmatprep.mubr.f32.mxu0 0.0
        %462 = vmatmul.mubr.f32.gmra.mrb[0].mxu0 %v382
        %v463 = vpop.f32.mrb[0].mxu0
        %v464 = vadd.f32 0.0, %v463
        %v465 = vpop.f32.mrb[0].mxu0
        %466 = vmatprep.mubr.f32.mxu0 0.0
        %467 = vmatmul.mubr.f32.gmra.mrb[0].mxu0 %v385
        %v468 = vpop.f32.mrb[0].mxu0
        %v469 = vadd.f32 0.0, %v468
        %v470 = vpop.f32.mrb[0].mxu0
        %471 = vdwg.mxu0
        %vm472 = vcmask 130048
        %473 = vst.msk [vmem:[#allocation4] sm:$0xff] %vm472, %v454
        %474 = vst.msk [vmem:[#allocation4 + $0x8] sm:$0xff] %vm472, %v459
        %475 = vst.msk [vmem:[#allocation4 + $0x10] sm:$0xff] %vm472, %v464
        %476 = vst.msk [vmem:[#allocation4 + $0x18] sm:$0xff] %vm472, %v469
        %vm477 = vcmask 154624
        %478 = vst.msk [vmem:[#allocation2] sm:$0xff] %vm477, 0.0
        %vm479 = vcmask 556432
        %480 = vst.msk [vmem:[#allocation2 + $0x10] sm:$0xff] %vm479, 0.0
        %v481 = vld [vmem:[#allocation4] sm:$0x1]
        %v482 = vld [vmem:[#allocation4 + $0x8] sm:$0x1]
        %v483 = vld [vmem:[#allocation4 + $0x10] sm:$0x1]
        %v484 = vld [vmem:[#allocation4 + $0x18] sm:$0x1]
        %v485 = vmul.f32 %v481, 0.25
        %v486 = vmul.f32 %v482, 0.25
        %v487 = vmul.f32 %v483, 0.25
        %v488 = vmul.f32 %v484, 0.25
        %v489 = vmul.f32 %v481, 0.75
        %v490 = vmul.f32 %v482, 0.75
        %v491 = vmul.f32 %v483, 0.75
        %v492 = vmul.f32 %v484, 0.75
        %v493 = vadd.f32 %v485, %v489
        %v494 = vadd.f32 %v486, %v490
        %v495 = vadd.f32 %v487, %v491
        %v496 = vadd.f32 %v488, %v492
        %v501 = vrot.slane %v494, 7
        %vm502 = vcmask 1041409
        %v503 = vsel %vm502, %v501, %v493
        %v504 = vrot.slane %v495, 6
        %vm505 = vcmask 1042434
        %v506 = vsel %vm505, %v504, %v503
        %v507 = vrot.slane %v496, 5
        %vm508 = vcmask 1043459
        %v509 = vsel %vm508, %v507, %v506
        %510 = vrot.lane.b32.xlu0 %v509, 19
        %v511 = vpop.permute.xlu0 %510
        %vm513 = vcmask 281752
        %514 = vst.msk [vmem:[#allocation2] sm:$0xf] %vm513, %v511
        %v515 = vld [vmem:[%s368] sm:$0x1]
        %v516 = vld [vmem:[%s368 + $0x10] sm:$0x1]
        %v517 = vld [vmem:[%s368 + $0x20] sm:$0x1]
        %v518 = vld [vmem:[%s368 + $0x30] sm:$0x1]
        %v523 = vrot.slane %v515, 4
        %v524 = vrot.slane %v516, 3
        %vm525 = vcmask 1045509
        %v526 = vsel %vm525, %v524, %v523
        %v527 = vrot.slane %v517, 2
        %vm528 = vcmask 1046534
        %v529 = vsel %vm528, %v527, %v526
        %v530 = vrot.slane %v518, 1
        %vm531 = vcmask 1047559
        %v532 = vsel %vm531, %v530, %v529
        %533 = vrot.lane.b32.xlu0 %v532, 19
        %v534 = vpop.permute.xlu0 %533
        %vm536 = vcmask 285852
        %537 = vst.msk [vmem:[#allocation2] sm:$0xf0] %vm536, %v534
        %vm538 = vcmask 302360
        %539 = vst.msk [vmem:[#allocation2] sm:$0xff] %vm538, 0.0
        %v540 = vld [vmem:[#allocation4] sm:$0x1]
        %v541 = vld [vmem:[#allocation4 + $0x8] sm:$0x1]
        %v542 = vld [vmem:[#allocation4 + $0x10] sm:$0x1]
        %v543 = vld [vmem:[#allocation4 + $0x18] sm:$0x1]
        %v544 = vmul.f32 %v540, 0.75
        %v545 = vmul.f32 %v541, 0.75
        %v546 = vmul.f32 %v542, 0.75
        %v547 = vmul.f32 %v543, 0.75
        %v548 = vld [vmem:[#allocation4 + $0x1] sm:$0x1]
        %v549 = vld [vmem:[#allocation4 + $0x9] sm:$0x1]
        %v550 = vld [vmem:[#allocation4 + $0x11] sm:$0x1]
        %v551 = vld [vmem:[#allocation4 + $0x19] sm:$0x1]
        %v552 = vmul.f32 %v548, 0.25
        %v553 = vmul.f32 %v549, 0.25
        %v554 = vmul.f32 %v550, 0.25
        %v555 = vmul.f32 %v551, 0.25
        %v556 = vadd.f32 %v544, %v552
        %v557 = vadd.f32 %v545, %v553
        %v558 = vadd.f32 %v546, %v554
        %v559 = vadd.f32 %v547, %v555
        %v564 = vrot.slane %v557, 7
        %v565 = vsel %vm502, %v564, %v556
        %v566 = vrot.slane %v558, 6
        %v567 = vsel %vm505, %v566, %v565
        %v568 = vrot.slane %v559, 5
        %v569 = vsel %vm508, %v568, %v567
        %570 = vrot.lane.b32.xlu0 %v569, 37
        %v571 = vpop.permute.xlu0 %570
        %vm573 = vcmask 429352
        %574 = vst.msk [vmem:[#allocation2] sm:$0xf] %vm573, %v571
        %v575 = vld [vmem:[%s368 + $0x1] sm:$0x1]
        %v576 = vld [vmem:[%s368 + $0x11] sm:$0x1]
        %v577 = vld [vmem:[%s368 + $0x21] sm:$0x1]
        %v578 = vld [vmem:[%s368 + $0x31] sm:$0x1]
        %v583 = vrot.slane %v575, 4
        %v584 = vrot.slane %v576, 3
        %v585 = vsel %vm525, %v584, %v583
        %v586 = vrot.slane %v577, 2
        %v587 = vsel %vm528, %v586, %v585
        %v588 = vrot.slane %v578, 1
        %v589 = vsel %vm531, %v588, %v587
        %590 = vrot.lane.b32.xlu0 %v589, 37
        %v591 = vpop.permute.xlu0 %590
        %vm593 = vcmask 433452
        %594 = vst.msk [vmem:[#allocation2] sm:$0xf0] %vm593, %v591
        %vm595 = vcmask 449960
        %596 = vst.msk [vmem:[#allocation2] sm:$0xff] %vm595, 0.0
        %v597 = vld [vmem:[#allocation4] sm:$0x1]
        %v598 = vld [vmem:[#allocation4 + $0x8] sm:$0x1]
        %v599 = vld [vmem:[#allocation4 + $0x10] sm:$0x1]
        %v600 = vld [vmem:[#allocation4 + $0x18] sm:$0x1]
        %v601 = vmul.f32 %v597, 0.25
        %v602 = vmul.f32 %v598, 0.25
        %v603 = vmul.f32 %v599, 0.25
        %v604 = vmul.f32 %v600, 0.25
        %v605 = vld [vmem:[#allocation4 + $0x1] sm:$0x1]
        %v606 = vld [vmem:[#allocation4 + $0x9] sm:$0x1]
        %v607 = vld [vmem:[#allocation4 + $0x11] sm:$0x1]
        %v608 = vld [vmem:[#allocation4 + $0x19] sm:$0x1]
        %v609 = vmul.f32 %v605, 0.75
        %v610 = vmul.f32 %v606, 0.75
        %v611 = vmul.f32 %v607, 0.75
        %v612 = vmul.f32 %v608, 0.75
        %v613 = vadd.f32 %v601, %v609
        %v614 = vadd.f32 %v602, %v610
        %v615 = vadd.f32 %v603, %v611
        %v616 = vadd.f32 %v604, %v612
        %v621 = vrot.slane %v614, 7
        %v622 = vsel %vm502, %v621, %v613
        %v623 = vrot.slane %v615, 6
        %v624 = vsel %vm505, %v623, %v622
        %v625 = vrot.slane %v616, 5
        %v626 = vsel %vm508, %v625, %v624
        %627 = vrot.lane.b32.xlu0 %v626, 55
        %v628 = vpop.permute.xlu0 %627
        %vm630 = vcmask 576952
        %631 = vst.msk [vmem:[#allocation2] sm:$0xf] %vm630, %v628
        %v632 = vld [vmem:[%s368 + $0x2] sm:$0x1]
        %v633 = vld [vmem:[%s368 + $0x12] sm:$0x1]
        %v634 = vld [vmem:[%s368 + $0x22] sm:$0x1]
        %v635 = vld [vmem:[%s368 + $0x32] sm:$0x1]
        %v640 = vrot.slane %v632, 4
        %v641 = vrot.slane %v633, 3
        %v642 = vsel %vm525, %v641, %v640
        %v643 = vrot.slane %v634, 2
        %v644 = vsel %vm528, %v643, %v642
        %v645 = vrot.slane %v635, 1
        %v646 = vsel %vm531, %v645, %v644
        %647 = vrot.lane.b32.xlu0 %v646, 55
        %v648 = vpop.permute.xlu0 %647
        %vm650 = vcmask 581052
        %651 = vst.msk [vmem:[#allocation2] sm:$0xf0] %vm650, %v648
        %vm652 = vcmask 597560
        %653 = vst.msk [vmem:[#allocation2] sm:$0xff] %vm652, 0.0
        %v654 = vld [vmem:[#allocation4 + $0x1] sm:$0x1]
        %v655 = vld [vmem:[#allocation4 + $0x9] sm:$0x1]
        %v656 = vld [vmem:[#allocation4 + $0x11] sm:$0x1]
        %v657 = vld [vmem:[#allocation4 + $0x19] sm:$0x1]
        %v658 = vmul.f32 %v654, 0.75
        %v659 = vmul.f32 %v655, 0.75
        %v660 = vmul.f32 %v656, 0.75
        %v661 = vmul.f32 %v657, 0.75
        %v662 = vld [vmem:[#allocation4 + $0x2] sm:$0x1]
        %v663 = vld [vmem:[#allocation4 + $0xa] sm:$0x1]
        %v664 = vld [vmem:[#allocation4 + $0x12] sm:$0x1]
        %v665 = vld [vmem:[#allocation4 + $0x1a] sm:$0x1]
        %v666 = vmul.f32 %v662, 0.25
        %v667 = vmul.f32 %v663, 0.25
        %v668 = vmul.f32 %v664, 0.25
        %v669 = vmul.f32 %v665, 0.25
        %v670 = vadd.f32 %v658, %v666
        %v671 = vadd.f32 %v659, %v667
        %v672 = vadd.f32 %v660, %v668
        %v673 = vadd.f32 %v661, %v669
        %v678 = vrot.slane %v671, 7
        %v679 = vsel %vm502, %v678, %v670
        %v680 = vrot.slane %v672, 6
        %v681 = vsel %vm505, %v680, %v679
        %v682 = vrot.slane %v673, 5
        %v683 = vsel %vm508, %v682, %v681
        %684 = vrot.lane.b32.xlu0 %v683, 73
        %v685 = vpop.permute.xlu0 %684
        %vm687 = vcmask 724552
        %688 = vst.msk [vmem:[#allocation2] sm:$0xf] %vm687, %v685
        %v689 = vld [vmem:[%s368 + $0x3] sm:$0x1]
        %v690 = vld [vmem:[%s368 + $0x13] sm:$0x1]
        %v691 = vld [vmem:[%s368 + $0x23] sm:$0x1]
        %v692 = vld [vmem:[%s368 + $0x33] sm:$0x1]
        %v697 = vrot.slane %v689, 4
        %v698 = vrot.slane %v690, 3
        %v699 = vsel %vm525, %v698, %v697
        %v700 = vrot.slane %v691, 2
        %v701 = vsel %vm528, %v700, %v699
        %v702 = vrot.slane %v692, 1
        %v703 = vsel %vm531, %v702, %v701
        %704 = vrot.lane.b32.xlu0 %v703, 73
        %v705 = vpop.permute.xlu0 %704
        %vm707 = vcmask 728652
        %708 = vst.msk [vmem:[#allocation2] sm:$0xf0] %vm707, %v705
        %vm709 = vcmask 745160
        %710 = vst.msk [vmem:[#allocation2] sm:$0xff] %vm709, 0.0
        %v711 = vld [vmem:[#allocation4 + $0x1] sm:$0x1]
        %v712 = vld [vmem:[#allocation4 + $0x9] sm:$0x1]
        %v713 = vld [vmem:[#allocation4 + $0x11] sm:$0x1]
        %v714 = vld [vmem:[#allocation4 + $0x19] sm:$0x1]
        %v715 = vmul.f32 %v711, 0.25
        %v716 = vmul.f32 %v712, 0.25
        %v717 = vmul.f32 %v713, 0.25
        %v718 = vmul.f32 %v714, 0.25
        %v719 = vld [vmem:[#allocation4 + $0x2] sm:$0x1]
        %v720 = vld [vmem:[#allocation4 + $0xa] sm:$0x1]
        %v721 = vld [vmem:[#allocation4 + $0x12] sm:$0x1]
        %v722 = vld [vmem:[#allocation4 + $0x1a] sm:$0x1]
        %v723 = vmul.f32 %v719, 0.75
        %v724 = vmul.f32 %v720, 0.75
        %v725 = vmul.f32 %v721, 0.75
        %v726 = vmul.f32 %v722, 0.75
        %v727 = vadd.f32 %v715, %v723
        %v728 = vadd.f32 %v716, %v724
        %v729 = vadd.f32 %v717, %v725
        %v730 = vadd.f32 %v718, %v726
        %v735 = vrot.slane %v728, 7
        %v736 = vsel %vm502, %v735, %v727
        %v737 = vrot.slane %v729, 6
        %v738 = vsel %vm505, %v737, %v736
        %v739 = vrot.slane %v730, 5
        %v740 = vsel %vm508, %v739, %v738
        %741 = vrot.lane.b32.xlu0 %v740, 91
        %v742 = vpop.permute.xlu0 %741
        %vm744 = vcmask 872152
        %745 = vst.msk [vmem:[#allocation2] sm:$0xf] %vm744, %v742
        %v746 = vld [vmem:[%s368 + $0x4] sm:$0x1]
        %v747 = vld [vmem:[%s368 + $0x14] sm:$0x1]
        %v748 = vld [vmem:[%s368 + $0x24] sm:$0x1]
        %v749 = vld [vmem:[%s368 + $0x34] sm:$0x1]
        %v754 = vrot.slane %v746, 4
        %v755 = vrot.slane %v747, 3
        %v756 = vsel %vm525, %v755, %v754
        %v757 = vrot.slane %v748, 2
        %v758 = vsel %vm528, %v757, %v756
        %v759 = vrot.slane %v749, 1
        %v760 = vsel %vm531, %v759, %v758
        %761 = vrot.lane.b32.xlu0 %v760, 91
        %v762 = vpop.permute.xlu0 %761
        %vm764 = vcmask 876252
        %765 = vst.msk [vmem:[#allocation2] sm:$0xf0] %vm764, %v762
        %vm766 = vcmask 892760
        %767 = vst.msk [vmem:[#allocation2] sm:$0xff] %vm766, 0.0
        %v768 = vld [vmem:[#allocation4 + $0x2] sm:$0x1]
        %v769 = vld [vmem:[#allocation4 + $0xa] sm:$0x1]
        %v770 = vld [vmem:[#allocation4 + $0x12] sm:$0x1]
        %v771 = vld [vmem:[#allocation4 + $0x1a] sm:$0x1]
        %v772 = vmul.f32 %v768, 0.75
        %v773 = vmul.f32 %v769, 0.75
        %v774 = vmul.f32 %v770, 0.75
        %v775 = vmul.f32 %v771, 0.75
        %v776 = vld [vmem:[#allocation4 + $0x3] sm:$0x1]
        %v777 = vld [vmem:[#allocation4 + $0xb] sm:$0x1]
        %v778 = vld [vmem:[#allocation4 + $0x13] sm:$0x1]
        %v779 = vld [vmem:[#allocation4 + $0x1b] sm:$0x1]
        %v780 = vmul.f32 %v776, 0.25
        %v781 = vmul.f32 %v777, 0.25
        %v782 = vmul.f32 %v778, 0.25
        %v783 = vmul.f32 %v779, 0.25
        %v784 = vadd.f32 %v772, %v780
        %v785 = vadd.f32 %v773, %v781
        %v786 = vadd.f32 %v774, %v782
        %v787 = vadd.f32 %v775, %v783
        %v792 = vrot.slane %v785, 7
        %v793 = vsel %vm502, %v792, %v784
        %v794 = vrot.slane %v786, 6
        %v795 = vsel %vm505, %v794, %v793
        %v796 = vrot.slane %v787, 5
        %v797 = vsel %vm508, %v796, %v795
        %798 = vrot.lane.b32.xlu0 %v797, 109
        %v799 = vpop.permute.xlu0 %798
        %vm801 = vcmask 1019752
        %802 = vst.msk [vmem:[#allocation2] sm:$0xf] %vm801, %v799
        %v803 = vld [vmem:[%s368 + $0x5] sm:$0x1]
        %v804 = vld [vmem:[%s368 + $0x15] sm:$0x1]
        %v805 = vld [vmem:[%s368 + $0x25] sm:$0x1]
        %v806 = vld [vmem:[%s368 + $0x35] sm:$0x1]
        %v811 = vrot.slane %v803, 4
        %v812 = vrot.slane %v804, 3
        %v813 = vsel %vm525, %v812, %v811
        %v814 = vrot.slane %v805, 2
        %v815 = vsel %vm528, %v814, %v813
        %v816 = vrot.slane %v806, 1
        %v817 = vsel %vm531, %v816, %v815
        %818 = vrot.lane.b32.xlu0 %v817, 109
        %v819 = vpop.permute.xlu0 %818
        %vm821 = vcmask 1023852
        %822 = vst.msk [vmem:[#allocation2] sm:$0xf0] %vm821, %v819
        %vm823 = vcmask 1040360
        %824 = vst.msk [vmem:[#allocation2] sm:$0xff] %vm823, 0.0
        %v825 = vld [vmem:[#allocation4 + $0x2] sm:$0x1]
        %v826 = vld [vmem:[#allocation4 + $0xa] sm:$0x1]
        %v827 = vld [vmem:[#allocation4 + $0x12] sm:$0x1]
        %v828 = vld [vmem:[#allocation4 + $0x1a] sm:$0x1]
        %v829 = vmul.f32 %v825, 0.25
        %v830 = vmul.f32 %v826, 0.25
        %v831 = vmul.f32 %v827, 0.25
        %v832 = vmul.f32 %v828, 0.25
        %v833 = vld [vmem:[#allocation4 + $0x3] sm:$0x1]
        %v834 = vld [vmem:[#allocation4 + $0xb] sm:$0x1]
        %v835 = vld [vmem:[#allocation4 + $0x13] sm:$0x1]
        %v836 = vld [vmem:[#allocation4 + $0x1b] sm:$0x1]
        %v837 = vmul.f32 %v833, 0.75
        %v838 = vmul.f32 %v834, 0.75
        %v839 = vmul.f32 %v835, 0.75
        %v840 = vmul.f32 %v836, 0.75
        %v841 = vadd.f32 %v829, %v837
        %v842 = vadd.f32 %v830, %v838
        %v843 = vadd.f32 %v831, %v839
        %v844 = vadd.f32 %v832, %v840
        %v849 = vrot.slane %v842, 7
        %v850 = vsel %vm502, %v849, %v841
        %v851 = vrot.slane %v843, 6
        %v852 = vsel %vm505, %v851, %v850
        %v853 = vrot.slane %v844, 5
        %v854 = vsel %vm508, %v853, %v852
        %855 = vrot.lane.b32.xlu0 %v854, 127
        %v856 = vpop.permute.xlu0 %855
        %vm858 = vcmask 1044472
        %859 = vst.msk [vmem:[#allocation2] sm:$0xf] %vm858, %v856
        %vm860 = vcmask 117760
        %861 = vst.msk [vmem:[#allocation2 + $0x8] sm:$0xf] %vm860, %v856
        %v862 = vld [vmem:[%s368 + $0x6] sm:$0x1]
        %v863 = vld [vmem:[%s368 + $0x16] sm:$0x1]
        %v864 = vld [vmem:[%s368 + $0x26] sm:$0x1]
        %v865 = vld [vmem:[%s368 + $0x36] sm:$0x1]
        %v870 = vrot.slane %v862, 4
        %v871 = vrot.slane %v863, 3
        %v872 = vsel %vm525, %v871, %v870
        %v873 = vrot.slane %v864, 2
        %v874 = vsel %vm528, %v873, %v872
        %v875 = vrot.slane %v865, 1
        %v876 = vsel %vm531, %v875, %v874
        %877 = vrot.lane.b32.xlu0 %v876, 127
        %v878 = vpop.permute.xlu0 %877
        %vm880 = vcmask 1048572
        %881 = vst.msk [vmem:[#allocation2] sm:$0xf0] %vm880, %v878
        %vm882 = vcmask 121860
        %883 = vst.msk [vmem:[#allocation2 + $0x8] sm:$0xf0] %vm882, %v878
        %vm884 = vcmask 138360
        %885 = vst.msk [vmem:[#allocation2 + $0x8] sm:$0xff] %vm884, 0.0
        %v886 = vld [vmem:[#allocation4 + $0x3] sm:$0x1]
        %v887 = vld [vmem:[#allocation4 + $0xb] sm:$0x1]
        %v888 = vld [vmem:[#allocation4 + $0x13] sm:$0x1]
        %v889 = vld [vmem:[#allocation4 + $0x1b] sm:$0x1]
        %v890 = vmul.f32 %v886, 0.75
        %v891 = vmul.f32 %v887, 0.75
        %v892 = vmul.f32 %v888, 0.75
        %v893 = vmul.f32 %v889, 0.75
        %v894 = vld [vmem:[#allocation4 + $0x4] sm:$0x1]
        %v895 = vld [vmem:[#allocation4 + $0xc] sm:$0x1]
        %v896 = vld [vmem:[#allocation4 + $0x14] sm:$0x1]
        %v897 = vld [vmem:[#allocation4 + $0x1c] sm:$0x1]
        %v898 = vmul.f32 %v894, 0.25
        %v899 = vmul.f32 %v895, 0.25
        %v900 = vmul.f32 %v896, 0.25
        %v901 = vmul.f32 %v897, 0.25
        %v902 = vadd.f32 %v890, %v898
        %v903 = vadd.f32 %v891, %v899
        %v904 = vadd.f32 %v892, %v900
        %v905 = vadd.f32 %v893, %v901
        %v910 = vrot.slane %v903, 7
        %v911 = vsel %vm502, %v910, %v902
        %v912 = vrot.slane %v904, 6
        %v913 = vsel %vm505, %v912, %v911
        %v914 = vrot.slane %v905, 5
        %v915 = vsel %vm508, %v914, %v913
        %916 = vrot.lane.b32.xlu0 %v915, 17
        %v917 = vpop.permute.xlu0 %916
        %vm919 = vcmask 265352
        %920 = vst.msk [vmem:[#allocation2 + $0x8] sm:$0xf] %vm919, %v917
        %v921 = vld [vmem:[%s368 + $0x7] sm:$0x1]
        %v922 = vld [vmem:[%s368 + $0x17] sm:$0x1]
        %v923 = vld [vmem:[%s368 + $0x27] sm:$0x1]
        %v924 = vld [vmem:[%s368 + $0x37] sm:$0x1]
        %v929 = vrot.slane %v921, 4
        %v930 = vrot.slane %v922, 3
        %v931 = vsel %vm525, %v930, %v929
        %v932 = vrot.slane %v923, 2
        %v933 = vsel %vm528, %v932, %v931
        %v934 = vrot.slane %v924, 1
        %v935 = vsel %vm531, %v934, %v933
        %936 = vrot.lane.b32.xlu0 %v935, 17
        %v937 = vpop.permute.xlu0 %936
        %vm939 = vcmask 269452
        %940 = vst.msk [vmem:[#allocation2 + $0x8] sm:$0xf0] %vm939, %v937
        %vm941 = vcmask 285960
        %942 = vst.msk [vmem:[#allocation2 + $0x8] sm:$0xff] %vm941, 0.0
        %v943 = vld [vmem:[#allocation4 + $0x3] sm:$0x1]
        %v944 = vld [vmem:[#allocation4 + $0xb] sm:$0x1]
        %v945 = vld [vmem:[#allocation4 + $0x13] sm:$0x1]
        %v946 = vld [vmem:[#allocation4 + $0x1b] sm:$0x1]
        %v947 = vmul.f32 %v943, 0.25
        %v948 = vmul.f32 %v944, 0.25
        %v949 = vmul.f32 %v945, 0.25
        %v950 = vmul.f32 %v946, 0.25
        %v951 = vld [vmem:[#allocation4 + $0x4] sm:$0x1]
        %v952 = vld [vmem:[#allocation4 + $0xc] sm:$0x1]
        %v953 = vld [vmem:[#allocation4 + $0x14] sm:$0x1]
        %v954 = vld [vmem:[#allocation4 + $0x1c] sm:$0x1]
        %v955 = vmul.f32 %v951, 0.75
        %v956 = vmul.f32 %v952, 0.75
        %v957 = vmul.f32 %v953, 0.75
        %v958 = vmul.f32 %v954, 0.75
        %v959 = vadd.f32 %v947, %v955
        %v960 = vadd.f32 %v948, %v956
        %v961 = vadd.f32 %v949, %v957
        %v962 = vadd.f32 %v950, %v958
        %v967 = vrot.slane %v960, 7
        %v968 = vsel %vm502, %v967, %v959
        %v969 = vrot.slane %v961, 6
        %v970 = vsel %vm505, %v969, %v968
        %v971 = vrot.slane %v962, 5
        %v972 = vsel %vm508, %v971, %v970
        %973 = vrot.lane.b32.xlu0 %v972, 35
        %v974 = vpop.permute.xlu0 %973
        %vm976 = vcmask 412952
        %977 = vst.msk [vmem:[#allocation2 + $0x8] sm:$0xf] %vm976, %v974
        %v978 = vld [vmem:[%s368 + $0x8] sm:$0x1]
        %v979 = vld [vmem:[%s368 + $0x18] sm:$0x1]
        %v980 = vld [vmem:[%s368 + $0x28] sm:$0x1]
        %v981 = vld [vmem:[%s368 + $0x38] sm:$0x1]
        %v986 = vrot.slane %v978, 4
        %v987 = vrot.slane %v979, 3
        %v988 = vsel %vm525, %v987, %v986
        %v989 = vrot.slane %v980, 2
        %v990 = vsel %vm528, %v989, %v988
        %v991 = vrot.slane %v981, 1
        %v992 = vsel %vm531, %v991, %v990
        %993 = vrot.lane.b32.xlu0 %v992, 35
        %v994 = vpop.permute.xlu0 %993
        %vm996 = vcmask 417052
        %997 = vst.msk [vmem:[#allocation2 + $0x8] sm:$0xf0] %vm996, %v994
        %vm998 = vcmask 433560
        %999 = vst.msk [vmem:[#allocation2 + $0x8] sm:$0xff] %vm998, 0.0
        %v1000 = vld [vmem:[#allocation4 + $0x4] sm:$0x1]
        %v1001 = vld [vmem:[#allocation4 + $0xc] sm:$0x1]
        %v1002 = vld [vmem:[#allocation4 + $0x14] sm:$0x1]
        %v1003 = vld [vmem:[#allocation4 + $0x1c] sm:$0x1]
        %v1004 = vmul.f32 %v1000, 0.75
        %v1005 = vmul.f32 %v1001, 0.75
        %v1006 = vmul.f32 %v1002, 0.75
        %v1007 = vmul.f32 %v1003, 0.75
        %v1008 = vld [vmem:[#allocation4 + $0x5] sm:$0x1]
        %v1009 = vld [vmem:[#allocation4 + $0xd] sm:$0x1]
        %v1010 = vld [vmem:[#allocation4 + $0x15] sm:$0x1]
        %v1011 = vld [vmem:[#allocation4 + $0x1d] sm:$0x1]
        %v1012 = vmul.f32 %v1008, 0.25
        %v1013 = vmul.f32 %v1009, 0.25
        %v1014 = vmul.f32 %v1010, 0.25
        %v1015 = vmul.f32 %v1011, 0.25
        %v1016 = vadd.f32 %v1004, %v1012
        %v1017 = vadd.f32 %v1005, %v1013
        %v1018 = vadd.f32 %v1006, %v1014
        %v1019 = vadd.f32 %v1007, %v1015
        %v1024 = vrot.slane %v1017, 7
        %v1025 = vsel %vm502, %v1024, %v1016
        %v1026 = vrot.slane %v1018, 6
        %v1027 = vsel %vm505, %v1026, %v1025
        %v1028 = vrot.slane %v1019, 5
        %v1029 = vsel %vm508, %v1028, %v1027
        %1030 = vrot.lane.b32.xlu0 %v1029, 53
        %v1031 = vpop.permute.xlu0 %1030
        %vm1033 = vcmask 560552
        %1034 = vst.msk [vmem:[#allocation2 + $0x8] sm:$0xf] %vm1033, %v1031
        %v1035 = vld [vmem:[%s368 + $0x9] sm:$0x1]
        %v1036 = vld [vmem:[%s368 + $0x19] sm:$0x1]
        %v1037 = vld [vmem:[%s368 + $0x29] sm:$0x1]
        %v1038 = vld [vmem:[%s368 + $0x39] sm:$0x1]
        %v1043 = vrot.slane %v1035, 4
        %v1044 = vrot.slane %v1036, 3
        %v1045 = vsel %vm525, %v1044, %v1043
        %v1046 = vrot.slane %v1037, 2
        %v1047 = vsel %vm528, %v1046, %v1045
        %v1048 = vrot.slane %v1038, 1
        %v1049 = vsel %vm531, %v1048, %v1047
        %1050 = vrot.lane.b32.xlu0 %v1049, 53
        %v1051 = vpop.permute.xlu0 %1050
        %vm1053 = vcmask 564652
        %1054 = vst.msk [vmem:[#allocation2 + $0x8] sm:$0xf0] %vm1053, %v1051
        %vm1055 = vcmask 581160
        %1056 = vst.msk [vmem:[#allocation2 + $0x8] sm:$0xff] %vm1055, 0.0
        %v1057 = vld [vmem:[#allocation4 + $0x4] sm:$0x1]
        %v1058 = vld [vmem:[#allocation4 + $0xc] sm:$0x1]
        %v1059 = vld [vmem:[#allocation4 + $0x14] sm:$0x1]
        %v1060 = vld [vmem:[#allocation4 + $0x1c] sm:$0x1]
        %v1061 = vmul.f32 %v1057, 0.25
        %v1062 = vmul.f32 %v1058, 0.25
        %v1063 = vmul.f32 %v1059, 0.25
        %v1064 = vmul.f32 %v1060, 0.25
        %v1065 = vld [vmem:[#allocation4 + $0x5] sm:$0x1]
        %v1066 = vld [vmem:[#allocation4 + $0xd] sm:$0x1]
        %v1067 = vld [vmem:[#allocation4 + $0x15] sm:$0x1]
        %v1068 = vld [vmem:[#allocation4 + $0x1d] sm:$0x1]
        %v1069 = vmul.f32 %v1065, 0.75
        %v1070 = vmul.f32 %v1066, 0.75
        %v1071 = vmul.f32 %v1067, 0.75
        %v1072 = vmul.f32 %v1068, 0.75
        %v1073 = vadd.f32 %v1061, %v1069
        %v1074 = vadd.f32 %v1062, %v1070
        %v1075 = vadd.f32 %v1063, %v1071
        %v1076 = vadd.f32 %v1064, %v1072
        %v1081 = vrot.slane %v1074, 7
        %v1082 = vsel %vm502, %v1081, %v1073
        %v1083 = vrot.slane %v1075, 6
        %v1084 = vsel %vm505, %v1083, %v1082
        %v1085 = vrot.slane %v1076, 5
        %v1086 = vsel %vm508, %v1085, %v1084
        %1087 = vrot.lane.b32.xlu0 %v1086, 71
        %v1088 = vpop.permute.xlu0 %1087
        %vm1090 = vcmask 708152
        %1091 = vst.msk [vmem:[#allocation2 + $0x8] sm:$0xf] %vm1090, %v1088
        %v1092 = vld [vmem:[%s368 + $0xa] sm:$0x1]
        %v1093 = vld [vmem:[%s368 + $0x1a] sm:$0x1]
        %v1094 = vld [vmem:[%s368 + $0x2a] sm:$0x1]
        %v1095 = vld [vmem:[%s368 + $0x3a] sm:$0x1]
        %v1100 = vrot.slane %v1092, 4
        %v1101 = vrot.slane %v1093, 3
        %v1102 = vsel %vm525, %v1101, %v1100
        %v1103 = vrot.slane %v1094, 2
        %v1104 = vsel %vm528, %v1103, %v1102
        %v1105 = vrot.slane %v1095, 1
        %v1106 = vsel %vm531, %v1105, %v1104
        %1107 = vrot.lane.b32.xlu0 %v1106, 71
        %v1108 = vpop.permute.xlu0 %1107
        %vm1110 = vcmask 712252
        %1111 = vst.msk [vmem:[#allocation2 + $0x8] sm:$0xf0] %vm1110, %v1108
        %vm1112 = vcmask 728760
        %1113 = vst.msk [vmem:[#allocation2 + $0x8] sm:$0xff] %vm1112, 0.0
        %v1114 = vld [vmem:[#allocation4 + $0x5] sm:$0x1]
        %v1115 = vld [vmem:[#allocation4 + $0xd] sm:$0x1]
        %v1116 = vld [vmem:[#allocation4 + $0x15] sm:$0x1]
        %v1117 = vld [vmem:[#allocation4 + $0x1d] sm:$0x1]
        %v1118 = vmul.f32 %v1114, 0.75
        %v1119 = vmul.f32 %v1115, 0.75
        %v1120 = vmul.f32 %v1116, 0.75
        %v1121 = vmul.f32 %v1117, 0.75
        %v1122 = vld [vmem:[#allocation4 + $0x6] sm:$0x1]
        %v1123 = vld [vmem:[#allocation4 + $0xe] sm:$0x1]
        %v1124 = vld [vmem:[#allocation4 + $0x16] sm:$0x1]
        %v1125 = vld [vmem:[#allocation4 + $0x1e] sm:$0x1]
        %v1126 = vmul.f32 %v1122, 0.25
        %v1127 = vmul.f32 %v1123, 0.25
        %v1128 = vmul.f32 %v1124, 0.25
        %v1129 = vmul.f32 %v1125, 0.25
        %v1130 = vadd.f32 %v1118, %v1126
        %v1131 = vadd.f32 %v1119, %v1127
        %v1132 = vadd.f32 %v1120, %v1128
        %v1133 = vadd.f32 %v1121, %v1129
        %v1138 = vrot.slane %v1131, 7
        %v1139 = vsel %vm502, %v1138, %v1130
        %v1140 = vrot.slane %v1132, 6
        %v1141 = vsel %vm505, %v1140, %v1139
        %v1142 = vrot.slane %v1133, 5
        %v1143 = vsel %vm508, %v1142, %v1141
        %1144 = vrot.lane.b32.xlu0 %v1143, 89
        %v1145 = vpop.permute.xlu0 %1144
        %vm1147 = vcmask 855752
        %1148 = vst.msk [vmem:[#allocation2 + $0x8] sm:$0xf] %vm1147, %v1145
        %v1149 = vld [vmem:[%s368 + $0xb] sm:$0x1]
        %v1150 = vld [vmem:[%s368 + $0x1b] sm:$0x1]
        %v1151 = vld [vmem:[%s368 + $0x2b] sm:$0x1]
        %v1152 = vld [vmem:[%s368 + $0x3b] sm:$0x1]
        %v1157 = vrot.slane %v1149, 4
        %v1158 = vrot.slane %v1150, 3
        %v1159 = vsel %vm525, %v1158, %v1157
        %v1160 = vrot.slane %v1151, 2
        %v1161 = vsel %vm528, %v1160, %v1159
        %v1162 = vrot.slane %v1152, 1
        %v1163 = vsel %vm531, %v1162, %v1161
        %1164 = vrot.lane.b32.xlu0 %v1163, 89
        %v1165 = vpop.permute.xlu0 %1164
        %vm1167 = vcmask 859852
        %1168 = vst.msk [vmem:[#allocation2 + $0x8] sm:$0xf0] %vm1167, %v1165
        %vm1169 = vcmask 876360
        %1170 = vst.msk [vmem:[#allocation2 + $0x8] sm:$0xff] %vm1169, 0.0
        %v1171 = vld [vmem:[#allocation4 + $0x5] sm:$0x1]
        %v1172 = vld [vmem:[#allocation4 + $0xd] sm:$0x1]
        %v1173 = vld [vmem:[#allocation4 + $0x15] sm:$0x1]
        %v1174 = vld [vmem:[#allocation4 + $0x1d] sm:$0x1]
        %v1175 = vmul.f32 %v1171, 0.25
        %v1176 = vmul.f32 %v1172, 0.25
        %v1177 = vmul.f32 %v1173, 0.25
        %v1178 = vmul.f32 %v1174, 0.25
        %v1179 = vld [vmem:[#allocation4 + $0x6] sm:$0x1]
        %v1180 = vld [vmem:[#allocation4 + $0xe] sm:$0x1]
        %v1181 = vld [vmem:[#allocation4 + $0x16] sm:$0x1]
        %v1182 = vld [vmem:[#allocation4 + $0x1e] sm:$0x1]
        %v1183 = vmul.f32 %v1179, 0.75
        %v1184 = vmul.f32 %v1180, 0.75
        %v1185 = vmul.f32 %v1181, 0.75
        %v1186 = vmul.f32 %v1182, 0.75
        %v1187 = vadd.f32 %v1175, %v1183
        %v1188 = vadd.f32 %v1176, %v1184
        %v1189 = vadd.f32 %v1177, %v1185
        %v1190 = vadd.f32 %v1178, %v1186
        %v1195 = vrot.slane %v1188, 7
        %v1196 = vsel %vm502, %v1195, %v1187
        %v1197 = vrot.slane %v1189, 6
        %v1198 = vsel %vm505, %v1197, %v1196
        %v1199 = vrot.slane %v1190, 5
        %v1200 = vsel %vm508, %v1199, %v1198
        %1201 = vrot.lane.b32.xlu0 %v1200, 107
        %v1202 = vpop.permute.xlu0 %1201
        %vm1204 = vcmask 1003352
        %1205 = vst.msk [vmem:[#allocation2 + $0x8] sm:$0xf] %vm1204, %v1202
        %v1206 = vld [vmem:[%s368 + $0xc] sm:$0x1]
        %v1207 = vld [vmem:[%s368 + $0x1c] sm:$0x1]
        %v1208 = vld [vmem:[%s368 + $0x2c] sm:$0x1]
        %v1209 = vld [vmem:[%s368 + $0x3c] sm:$0x1]
        %v1214 = vrot.slane %v1206, 4
        %v1215 = vrot.slane %v1207, 3
        %v1216 = vsel %vm525, %v1215, %v1214
        %v1217 = vrot.slane %v1208, 2
        %v1218 = vsel %vm528, %v1217, %v1216
        %v1219 = vrot.slane %v1209, 1
        %v1220 = vsel %vm531, %v1219, %v1218
        %1221 = vrot.lane.b32.xlu0 %v1220, 107
        %v1222 = vpop.permute.xlu0 %1221
        %vm1224 = vcmask 1007452
        %1225 = vst.msk [vmem:[#allocation2 + $0x8] sm:$0xf0] %vm1224, %v1222
        %vm1226 = vcmask 1023960
        %1227 = vst.msk [vmem:[#allocation2 + $0x8] sm:$0xff] %vm1226, 0.0
        %v1228 = vld [vmem:[#allocation4 + $0x6] sm:$0x1]
        %v1229 = vld [vmem:[#allocation4 + $0xe] sm:$0x1]
        %v1230 = vld [vmem:[#allocation4 + $0x16] sm:$0x1]
        %v1231 = vld [vmem:[#allocation4 + $0x1e] sm:$0x1]
        %v1232 = vmul.f32 %v1228, 0.75
        %v1233 = vmul.f32 %v1229, 0.75
        %v1234 = vmul.f32 %v1230, 0.75
        %v1235 = vmul.f32 %v1231, 0.75
        %v1236 = vld [vmem:[#allocation4 + $0x7] sm:$0x1]
        %v1237 = vld [vmem:[#allocation4 + $0xf] sm:$0x1]
        %v1238 = vld [vmem:[#allocation4 + $0x17] sm:$0x1]
        %v1239 = vld [vmem:[#allocation4 + $0x1f] sm:$0x1]
        %v1240 = vmul.f32 %v1236, 0.25
        %v1241 = vmul.f32 %v1237, 0.25
        %v1242 = vmul.f32 %v1238, 0.25
        %v1243 = vmul.f32 %v1239, 0.25
        %v1244 = vadd.f32 %v1232, %v1240
        %v1245 = vadd.f32 %v1233, %v1241
        %v1246 = vadd.f32 %v1234, %v1242
        %v1247 = vadd.f32 %v1235, %v1243
        %v1252 = vrot.slane %v1245, 7
        %v1253 = vsel %vm502, %v1252, %v1244
        %v1254 = vrot.slane %v1246, 6
        %v1255 = vsel %vm505, %v1254, %v1253
        %v1256 = vrot.slane %v1247, 5
        %v1257 = vsel %vm508, %v1256, %v1255
        %1258 = vrot.lane.b32.xlu0 %v1257, 125
        %v1259 = vpop.permute.xlu0 %1258
        %vm1261 = vcmask 1044456
        %1262 = vst.msk [vmem:[#allocation2 + $0x8] sm:$0xf] %vm1261, %v1259
        %vm1263 = vcmask 101376
        %1264 = vst.msk [vmem:[#allocation2 + $0x10] sm:$0xf] %vm1263, %v1259
        %v1265 = vld [vmem:[%s368 + $0xd] sm:$0x1]
        %v1266 = vld [vmem:[%s368 + $0x1d] sm:$0x1]
        %v1267 = vld [vmem:[%s368 + $0x2d] sm:$0x1]
        %v1268 = vld [vmem:[%s368 + $0x3d] sm:$0x1]
        %v1273 = vrot.slane %v1265, 4
        %v1274 = vrot.slane %v1266, 3
        %v1275 = vsel %vm525, %v1274, %v1273
        %v1276 = vrot.slane %v1267, 2
        %v1277 = vsel %vm528, %v1276, %v1275
        %v1278 = vrot.slane %v1268, 1
        %v1279 = vsel %vm531, %v1278, %v1277
        %1280 = vrot.lane.b32.xlu0 %v1279, 125
        %v1281 = vpop.permute.xlu0 %1280
        %vm1283 = vcmask 1048556
        %1284 = vst.msk [vmem:[#allocation2 + $0x8] sm:$0xf0] %vm1283, %v1281
        %vm1285 = vcmask 105476
        %1286 = vst.msk [vmem:[#allocation2 + $0x10] sm:$0xf0] %vm1285, %v1281
        %vm1287 = vcmask 121960
        %1288 = vst.msk [vmem:[#allocation2 + $0x10] sm:$0xff] %vm1287, 0.0
        %v1289 = vld [vmem:[#allocation4 + $0x6] sm:$0x1]
        %v1290 = vld [vmem:[#allocation4 + $0xe] sm:$0x1]
        %v1291 = vld [vmem:[#allocation4 + $0x16] sm:$0x1]
        %v1292 = vld [vmem:[#allocation4 + $0x1e] sm:$0x1]
        %v1293 = vmul.f32 %v1289, 0.25
        %v1294 = vmul.f32 %v1290, 0.25
        %v1295 = vmul.f32 %v1291, 0.25
        %v1296 = vmul.f32 %v1292, 0.25
        %v1297 = vld [vmem:[#allocation4 + $0x7] sm:$0x1]
        %v1298 = vld [vmem:[#allocation4 + $0xf] sm:$0x1]
        %v1299 = vld [vmem:[#allocation4 + $0x17] sm:$0x1]
        %v1300 = vld [vmem:[#allocation4 + $0x1f] sm:$0x1]
        %v1301 = vmul.f32 %v1297, 0.75
        %v1302 = vmul.f32 %v1298, 0.75
        %v1303 = vmul.f32 %v1299, 0.75
        %v1304 = vmul.f32 %v1300, 0.75
        %v1305 = vadd.f32 %v1293, %v1301
        %v1306 = vadd.f32 %v1294, %v1302
        %v1307 = vadd.f32 %v1295, %v1303
        %v1308 = vadd.f32 %v1296, %v1304
        %v1313 = vrot.slane %v1306, 7
        %v1314 = vsel %vm502, %v1313, %v1305
        %v1315 = vrot.slane %v1307, 6
        %v1316 = vsel %vm505, %v1315, %v1314
        %v1317 = vrot.slane %v1308, 5
        %v1318 = vsel %vm508, %v1317, %v1316
        %1319 = vrot.lane.b32.xlu0 %v1318, 15
        %v1320 = vpop.permute.xlu0 %1319
        %vm1322 = vcmask 248952
        %1323 = vst.msk [vmem:[#allocation2 + $0x10] sm:$0xf] %vm1322, %v1320
        %v1324 = vld [vmem:[%s368 + $0xe] sm:$0x1]
        %v1325 = vld [vmem:[%s368 + $0x1e] sm:$0x1]
        %v1326 = vld [vmem:[%s368 + $0x2e] sm:$0x1]
        %v1327 = vld [vmem:[%s368 + $0x3e] sm:$0x1]
        %v1332 = vrot.slane %v1324, 4
        %v1333 = vrot.slane %v1325, 3
        %v1334 = vsel %vm525, %v1333, %v1332
        %v1335 = vrot.slane %v1326, 2
        %v1336 = vsel %vm528, %v1335, %v1334
        %v1337 = vrot.slane %v1327, 1
        %v1338 = vsel %vm531, %v1337, %v1336
        %1339 = vrot.lane.b32.xlu0 %v1338, 15
        %v1340 = vpop.permute.xlu0 %1339
        %vm1342 = vcmask 253052
        %1343 = vst.msk [vmem:[#allocation2 + $0x10] sm:$0xf0] %vm1342, %v1340
        %vm1344 = vcmask 269560
        %1345 = vst.msk [vmem:[#allocation2 + $0x10] sm:$0xff] %vm1344, 0.0
        %v1346 = vld [vmem:[#allocation4 + $0x7] sm:$0x1]
        %v1347 = vld [vmem:[#allocation4 + $0xf] sm:$0x1]
        %v1348 = vld [vmem:[#allocation4 + $0x17] sm:$0x1]
        %v1349 = vld [vmem:[#allocation4 + $0x1f] sm:$0x1]
        %v1350 = vmul.f32 %v1346, 0.75
        %v1351 = vmul.f32 %v1347, 0.75
        %v1352 = vmul.f32 %v1348, 0.75
        %v1353 = vmul.f32 %v1349, 0.75
        %v1354 = vmul.f32 %v1346, 0.25
        %v1355 = vmul.f32 %v1347, 0.25
        %v1356 = vmul.f32 %v1348, 0.25
        %v1357 = vmul.f32 %v1349, 0.25
        %v1358 = vadd.f32 %v1350, %v1354
        %v1359 = vadd.f32 %v1351, %v1355
        %v1360 = vadd.f32 %v1352, %v1356
        %v1361 = vadd.f32 %v1353, %v1357
        %v1366 = vrot.slane %v1359, 7
        %v1367 = vsel %vm502, %v1366, %v1358
        %v1368 = vrot.slane %v1360, 6
        %v1369 = vsel %vm505, %v1368, %v1367
        %v1370 = vrot.slane %v1361, 5
        %v1371 = vsel %vm508, %v1370, %v1369
        %1372 = vrot.lane.b32.xlu0 %v1371, 33
        %v1373 = vpop.permute.xlu0 %1372
        %vm1375 = vcmask 396552
        %1376 = vst.msk [vmem:[#allocation2 + $0x10] sm:$0xf] %vm1375, %v1373
        %v1377 = vld [vmem:[%s368 + $0xf] sm:$0x1]
        %v1378 = vld [vmem:[%s368 + $0x1f] sm:$0x1]
        %v1379 = vld [vmem:[%s368 + $0x2f] sm:$0x1]
        %v1380 = vld [vmem:[%s368 + $0x3f] sm:$0x1]
        %v1385 = vrot.slane %v1377, 4
        %v1386 = vrot.slane %v1378, 3
        %v1387 = vsel %vm525, %v1386, %v1385
        %v1388 = vrot.slane %v1379, 2
        %v1389 = vsel %vm528, %v1388, %v1387
        %v1390 = vrot.slane %v1380, 1
        %v1391 = vsel %vm531, %v1390, %v1389
        %1392 = vrot.lane.b32.xlu0 %v1391, 33
        %v1393 = vpop.permute.xlu0 %1392
        %vm1395 = vcmask 400652
        %1396 = vst.msk [vmem:[#allocation2 + $0x10] sm:$0xf0] %vm1395, %v1393
        %vm1397 = vcmask 417160
        %1398 = vst.msk [vmem:[#allocation2 + $0x10] sm:$0xff] %vm1397, 0.0
        %v1399 = vld [vmem:[%s4] sm:$0xf]
        %v1400 = vld [vmem:[#allocation2] sm:$0xff]
        %v1401 = vld [vmem:[#allocation2 + $0x8] sm:$0xff]
        %v1402 = vld [vmem:[#allocation2 + $0x10] sm:$0xff]
        %s1403 = scalar_lea.vmem %s4, 4
        %v1404 = vld [vmem:[%s1403] sm:$0xf]
        %1408 = vrot.lane.b32.xlu0 %v1400, 127
        %v1409 = vpop.permute.xlu0 %1408
        %1410 = vrot.lane.b32.xlu0 %v1401, 127
        %v1411 = vpop.permute.xlu0 %1410
        %1412 = vrot.lane.b32.xlu0 %v1402, 127
        %v1413 = vpop.permute.xlu0 %1412
        %vm1414 = vcmask 1039360
        %v1415 = vsel %vm1414, %v1409, %v1411
        %v1416 = vsel %vm1414, %v1411, %v1413
        %v1421 = vsel %vm374, %v1404, 0
        %1423 = vmatprep.subr.mxu0 %v1416
        %1424 = vmatpush1.msra.mxu0 %v1415
        %1425 = vmatprep.subr.mxu0 0.0
        %1426 = vmatpush1.msra.mxu0 0.0
        %1427 = vmatprep.subr.mxu0 0.0
        %1428 = vmatpush1.msra.mxu0 0.0
        %1429 = vmatprep.subr.mxu0 0.0
        %1430 = vmatpush1.msra.mxu0 0.0
        %1431 = vmatprep.subr.mxu0 0.0
        %1432 = vmatpush1.msra.mxu0 0.0
        %1433 = vmatprep.subr.mxu0 0.0
        %1434 = vmatpush1.msra.mxu0 0.0
        %1435 = vmatprep.subr.mxu0 0.0
        %1436 = vmatpush1.msra.mxu0 0.0
        %1437 = vmatprep.subr.mxu0 0.0
        %1438 = vmatpush1.msra.mxu0 0.0
        %1439 = vmatprep.subr.mxu0 0.0
        %1440 = vmatpush1.msra.mxu0 0.0
        %1441 = vmatprep.subr.mxu0 0.0
        %1442 = vmatpush1.msra.mxu0 0.0
        %1443 = vmatprep.subr.mxu0 0.0
        %1444 = vmatpush1.msra.mxu0 0.0
        %1445 = vmatprep.subr.mxu0 0.0
        %1446 = vmatpush1.msra.mxu0 0.0
        %1447 = vmatprep.subr.mxu0 0.0
        %1448 = vmatpush1.msra.mxu0 0.0
        %1449 = vmatprep.subr.mxu0 0.0
        %1450 = vmatpush1.msra.mxu0 0.0
        %1451 = vmatprep.subr.mxu0 0.0
        %1452 = vmatpush1.msra.mxu0 0.0
        %1453 = vmatprep.subr.mxu0 0.0
        %1454 = vmatpush1.msra.mxu0 0.0
        %1455 = vmatprep.subr.mxu0 0.0
        %1456 = vmatpush1.msra.mxu0 0.0
        %1457 = vmatprep.subr.mxu0 0.0
        %1458 = vmatpush1.msra.mxu0 0.0
        %1459 = vmatprep.subr.mxu0 0.0
        %1460 = vmatpush1.msra.mxu0 0.0
        %1461 = vmatprep.subr.mxu0 0.0
        %1462 = vmatpush1.msra.mxu0 0.0
        %1463 = vmatprep.subr.mxu0 0.0
        %1464 = vmatpush1.msra.mxu0 0.0
        %1465 = vmatprep.subr.mxu0 0.0
        %1466 = vmatpush1.msra.mxu0 0.0
        %1467 = vmatprep.subr.mxu0 0.0
        %1468 = vmatpush1.msra.mxu0 0.0
        %1469 = vmatprep.subr.mxu0 0.0
        %1470 = vmatpush1.msra.mxu0 0.0
        %1471 = vmatprep.subr.mxu0 0.0
        %1472 = vmatpush1.msra.mxu0 0.0
        %1473 = vmatprep.subr.mxu0 0.0
        %1474 = vmatpush1.msra.mxu0 0.0
        %1475 = vmatprep.subr.mxu0 0.0
        %1476 = vmatpush1.msra.mxu0 0.0
        %1477 = vmatprep.subr.mxu0 0.0
        %1478 = vmatpush1.msra.mxu0 0.0
        %1479 = vmatprep.subr.mxu0 0.0
        %1480 = vmatpush1.msra.mxu0 0.0
        %1481 = vmatprep.subr.mxu0 0.0
        %1482 = vmatpush1.msra.mxu0 0.0
        %1483 = vmatprep.subr.mxu0 0.0
        %1484 = vmatpush1.msra.mxu0 0.0
        %1485 = vmatprep.subr.mxu0 0.0
        %1486 = vmatpush1.msra.mxu0 0.0
        %1487 = vmatprep.mubr.f32.mxu0 0.0
        %1488 = vmatmul.mubr.f32.gmra.mrb[0].mxu0 %v1421
        %v1489 = vpop.f32.mrb[0].mxu0
        %v1490 = vadd.f32 0.0, %v1489
        %v1491 = vpop.f32.mrb[0].mxu0
        %v1492 = vadd.f32 0.0, %v1491
        %1493 = vdwg.mxu0
        %1494 = vmatprep.subr.mxu0 0.0
        %1495 = vmatpush1.msra.mxu0 %v1413
        %1496 = vmatprep.subr.mxu0 0.0
        %1497 = vmatpush1.msra.mxu0 0.0
        %1498 = vmatprep.subr.mxu0 0.0
        %1499 = vmatpush1.msra.mxu0 0.0
        %1500 = vmatprep.subr.mxu0 0.0
        %1501 = vmatpush1.msra.mxu0 0.0
        %1502 = vmatprep.subr.mxu0 0.0
        %1503 = vmatpush1.msra.mxu0 0.0
        %1504 = vmatprep.subr.mxu0 0.0
        %1505 = vmatpush1.msra.mxu0 0.0
        %1506 = vmatprep.subr.mxu0 0.0
        %1507 = vmatpush1.msra.mxu0 0.0
        %1508 = vmatprep.subr.mxu0 0.0
        %1509 = vmatpush1.msra.mxu0 0.0
        %1510 = vmatprep.subr.mxu0 0.0
        %1511 = vmatpush1.msra.mxu0 0.0
        %1512 = vmatprep.subr.mxu0 0.0
        %1513 = vmatpush1.msra.mxu0 0.0
        %1514 = vmatprep.subr.mxu0 0.0
        %1515 = vmatpush1.msra.mxu0 0.0
        %1516 = vmatprep.subr.mxu0 0.0
        %1517 = vmatpush1.msra.mxu0 0.0
        %1518 = vmatprep.subr.mxu0 0.0
        %1519 = vmatpush1.msra.mxu0 0.0
        %1520 = vmatprep.subr.mxu0 0.0
        %1521 = vmatpush1.msra.mxu0 0.0
        %1522 = vmatprep.subr.mxu0 0.0
        %1523 = vmatpush1.msra.mxu0 0.0
        %1524 = vmatprep.subr.mxu0 0.0
        %1525 = vmatpush1.msra.mxu0 0.0
        %1526 = vmatprep.subr.mxu0 0.0
        %1527 = vmatpush1.msra.mxu0 0.0
        %1528 = vmatprep.subr.mxu0 0.0
        %1529 = vmatpush1.msra.mxu0 0.0
        %1530 = vmatprep.subr.mxu0 0.0
        %1531 = vmatpush1.msra.mxu0 0.0
        %1532 = vmatprep.subr.mxu0 0.0
        %1533 = vmatpush1.msra.mxu0 0.0
        %1534 = vmatprep.subr.mxu0 0.0
        %1535 = vmatpush1.msra.mxu0 0.0
        %1536 = vmatprep.subr.mxu0 0.0
        %1537 = vmatpush1.msra.mxu0 0.0
        %1538 = vmatprep.subr.mxu0 0.0
        %1539 = vmatpush1.msra.mxu0 0.0
        %1540 = vmatprep.subr.mxu0 0.0
        %1541 = vmatpush1.msra.mxu0 0.0
        %1542 = vmatprep.subr.mxu0 0.0
        %1543 = vmatpush1.msra.mxu0 0.0
        %1544 = vmatprep.subr.mxu0 0.0
        %1545 = vmatpush1.msra.mxu0 0.0
        %1546 = vmatprep.subr.mxu0 0.0
        %1547 = vmatpush1.msra.mxu0 0.0
        %1548 = vmatprep.subr.mxu0 0.0
        %1549 = vmatpush1.msra.mxu0 0.0
        %1550 = vmatprep.subr.mxu0 0.0
        %1551 = vmatpush1.msra.mxu0 0.0
        %1552 = vmatprep.subr.mxu0 0.0
        %1553 = vmatpush1.msra.mxu0 0.0
        %1554 = vmatprep.subr.mxu0 0.0
        %1555 = vmatpush1.msra.mxu0 0.0
        %1556 = vmatprep.subr.mxu0 0.0
        %1557 = vmatpush1.msra.mxu0 0.0
        %1558 = vmatprep.mubr.f32.mxu0 0.0
        %1559 = vmatmul.mubr.f32.gmra.mrb[0].mxu0 %v1421
        %v1560 = vpop.f32.mrb[0].mxu0
        %v1561 = vadd.f32 0.0, %v1560
        %v1562 = vpop.f32.mrb[0].mxu0
        %1563 = vdwg.mxu0
        %v1565 = vsel %vm374, %v1399, 0
        %1567 = vmatprep.subr.mxu0 %v1401
        %1568 = vmatpush1.msra.mxu0 %v1400
        %1569 = vmatprep.subr.mxu0 0.0
        %1570 = vmatpush1.msra.mxu0 0.0
        %1571 = vmatprep.subr.mxu0 0.0
        %1572 = vmatpush1.msra.mxu0 0.0
        %1573 = vmatprep.subr.mxu0 0.0
        %1574 = vmatpush1.msra.mxu0 0.0
        %1575 = vmatprep.subr.mxu0 0.0
        %1576 = vmatpush1.msra.mxu0 0.0
        %1577 = vmatprep.subr.mxu0 0.0
        %1578 = vmatpush1.msra.mxu0 0.0
        %1579 = vmatprep.subr.mxu0 0.0
        %1580 = vmatpush1.msra.mxu0 0.0
        %1581 = vmatprep.subr.mxu0 0.0
        %1582 = vmatpush1.msra.mxu0 0.0
        %1583 = vmatprep.subr.mxu0 0.0
        %1584 = vmatpush1.msra.mxu0 0.0
        %1585 = vmatprep.subr.mxu0 0.0
        %1586 = vmatpush1.msra.mxu0 0.0
        %1587 = vmatprep.subr.mxu0 0.0
        %1588 = vmatpush1.msra.mxu0 0.0
        %1589 = vmatprep.subr.mxu0 0.0
        %1590 = vmatpush1.msra.mxu0 0.0
        %1591 = vmatprep.subr.mxu0 0.0
        %1592 = vmatpush1.msra.mxu0 0.0
        %1593 = vmatprep.subr.mxu0 0.0
        %1594 = vmatpush1.msra.mxu0 0.0
        %1595 = vmatprep.subr.mxu0 0.0
        %1596 = vmatpush1.msra.mxu0 0.0
        %1597 = vmatprep.subr.mxu0 0.0
        %1598 = vmatpush1.msra.mxu0 0.0
        %1599 = vmatprep.subr.mxu0 0.0
        %1600 = vmatpush1.msra.mxu0 0.0
        %1601 = vmatprep.subr.mxu0 0.0
        %1602 = vmatpush1.msra.mxu0 0.0
        %1603 = vmatprep.subr.mxu0 0.0
        %1604 = vmatpush1.msra.mxu0 0.0
        %1605 = vmatprep.subr.mxu0 0.0
        %1606 = vmatpush1.msra.mxu0 0.0
        %1607 = vmatprep.subr.mxu0 0.0
        %1608 = vmatpush1.msra.mxu0 0.0
        %1609 = vmatprep.subr.mxu0 0.0
        %1610 = vmatpush1.msra.mxu0 0.0
        %1611 = vmatprep.subr.mxu0 0.0
        %1612 = vmatpush1.msra.mxu0 0.0
        %1613 = vmatprep.subr.mxu0 0.0
        %1614 = vmatpush1.msra.mxu0 0.0
        %1615 = vmatprep.subr.mxu0 0.0
        %1616 = vmatpush1.msra.mxu0 0.0
        %1617 = vmatprep.subr.mxu0 0.0
        %1618 = vmatpush1.msra.mxu0 0.0
        %1619 = vmatprep.subr.mxu0 0.0
        %1620 = vmatpush1.msra.mxu0 0.0
        %1621 = vmatprep.subr.mxu0 0.0
        %1622 = vmatpush1.msra.mxu0 0.0
        %1623 = vmatprep.subr.mxu0 0.0
        %1624 = vmatpush1.msra.mxu0 0.0
        %1625 = vmatprep.subr.mxu0 0.0
        %1626 = vmatpush1.msra.mxu0 0.0
        %1627 = vmatprep.subr.mxu0 0.0
        %1628 = vmatpush1.msra.mxu0 0.0
        %1629 = vmatprep.subr.mxu0 0.0
        %1630 = vmatpush1.msra.mxu0 0.0
        %1631 = vmatprep.mubr.f32.mxu0 0.0
        %1632 = vmatmul.mubr.f32.gmra.mrb[0].mxu0 %v1565
        %v1633 = vpop.f32.mrb[0].mxu0
        %v1634 = vadd.f32 %v1490, %v1633
        %v1635 = vpop.f32.mrb[0].mxu0
        %v1636 = vadd.f32 %v1492, %v1635
        %1637 = vdwg.mxu0
        %1638 = vmatprep.subr.mxu0 0.0
        %1639 = vmatpush1.msra.mxu0 %v1402
        %1640 = vmatprep.subr.mxu0 0.0
        %1641 = vmatpush1.msra.mxu0 0.0
        %1642 = vmatprep.subr.mxu0 0.0
        %1643 = vmatpush1.msra.mxu0 0.0
        %1644 = vmatprep.subr.mxu0 0.0
        %1645 = vmatpush1.msra.mxu0 0.0
        %1646 = vmatprep.subr.mxu0 0.0
        %1647 = vmatpush1.msra.mxu0 0.0
        %1648 = vmatprep.subr.mxu0 0.0
        %1649 = vmatpush1.msra.mxu0 0.0
        %1650 = vmatprep.subr.mxu0 0.0
        %1651 = vmatpush1.msra.mxu0 0.0
        %1652 = vmatprep.subr.mxu0 0.0
        %1653 = vmatpush1.msra.mxu0 0.0
        %1654 = vmatprep.subr.mxu0 0.0
        %1655 = vmatpush1.msra.mxu0 0.0
        %1656 = vmatprep.subr.mxu0 0.0
        %1657 = vmatpush1.msra.mxu0 0.0
        %1658 = vmatprep.subr.mxu0 0.0
        %1659 = vmatpush1.msra.mxu0 0.0
        %1660 = vmatprep.subr.mxu0 0.0
        %1661 = vmatpush1.msra.mxu0 0.0
        %1662 = vmatprep.subr.mxu0 0.0
        %1663 = vmatpush1.msra.mxu0 0.0
        %1664 = vmatprep.subr.mxu0 0.0
        %1665 = vmatpush1.msra.mxu0 0.0
        %1666 = vmatprep.subr.mxu0 0.0
        %1667 = vmatpush1.msra.mxu0 0.0
        %1668 = vmatprep.subr.mxu0 0.0
        %1669 = vmatpush1.msra.mxu0 0.0
        %1670 = vmatprep.subr.mxu0 0.0
        %1671 = vmatpush1.msra.mxu0 0.0
        %1672 = vmatprep.subr.mxu0 0.0
        %1673 = vmatpush1.msra.mxu0 0.0
        %1674 = vmatprep.subr.mxu0 0.0
        %1675 = vmatpush1.msra.mxu0 0.0
        %1676 = vmatprep.subr.mxu0 0.0
        %1677 = vmatpush1.msra.mxu0 0.0
        %1678 = vmatprep.subr.mxu0 0.0
        %1679 = vmatpush1.msra.mxu0 0.0
        %1680 = vmatprep.subr.mxu0 0.0
        %1681 = vmatpush1.msra.mxu0 0.0
        %1682 = vmatprep.subr.mxu0 0.0
        %1683 = vmatpush1.msra.mxu0 0.0
        %1684 = vmatprep.subr.mxu0 0.0
        %1685 = vmatpush1.msra.mxu0 0.0
        %1686 = vmatprep.subr.mxu0 0.0
        %1687 = vmatpush1.msra.mxu0 0.0
        %1688 = vmatprep.subr.mxu0 0.0
        %1689 = vmatpush1.msra.mxu0 0.0
        %1690 = vmatprep.subr.mxu0 0.0
        %1691 = vmatpush1.msra.mxu0 0.0
        %1692 = vmatprep.subr.mxu0 0.0
        %1693 = vmatpush1.msra.mxu0 0.0
        %1694 = vmatprep.subr.mxu0 0.0
        %1695 = vmatpush1.msra.mxu0 0.0
        %1696 = vmatprep.subr.mxu0 0.0
        %1697 = vmatpush1.msra.mxu0 0.0
        %1698 = vmatprep.subr.mxu0 0.0
        %1699 = vmatpush1.msra.mxu0 0.0
        %1700 = vmatprep.subr.mxu0 0.0
        %1701 = vmatpush1.msra.mxu0 0.0
        %1702 = vmatprep.mubr.f32.mxu0 0.0
        %1703 = vmatmul.mubr.f32.gmra.mrb[0].mxu0 %v1565
        %v1704 = vpop.f32.mrb[0].mxu0
        %v1705 = vadd.f32 %v1561, %v1704
        %v1706 = vpop.f32.mrb[0].mxu0
        %1707 = vdwg.mxu0
        %s1708 = scalar_lea.vmem %s4, 8
        %v1709 = vld [vmem:[%s1708] sm:$0xf]
        %1710 = vrot.lane.b32.xlu0 %v1400, 126
        %v1711 = vpop.permute.xlu0 %1710
        %1712 = vrot.lane.b32.xlu0 %v1401, 126
        %v1713 = vpop.permute.xlu0 %1712
        %1714 = vrot.lane.b32.xlu0 %v1402, 126
        %v1715 = vpop.permute.xlu0 %1714
        %vm1716 = vcmask 1031168
        %v1717 = vsel %vm1716, %v1711, %v1713
        %v1718 = vsel %vm1716, %v1713, %v1715
        %v1723 = vsel %vm374, %v1709, 0
        %1725 = vmatprep.subr.mxu0 %v1718
        %1726 = vmatpush1.msra.mxu0 %v1717
        %1727 = vmatprep.subr.mxu0 0.0
        %1728 = vmatpush1.msra.mxu0 0.0
        %1729 = vmatprep.subr.mxu0 0.0
        %1730 = vmatpush1.msra.mxu0 0.0
        %1731 = vmatprep.subr.mxu0 0.0
        %1732 = vmatpush1.msra.mxu0 0.0
        %1733 = vmatprep.subr.mxu0 0.0
        %1734 = vmatpush1.msra.mxu0 0.0
        %1735 = vmatprep.subr.mxu0 0.0
        %1736 = vmatpush1.msra.mxu0 0.0
        %1737 = vmatprep.subr.mxu0 0.0
        %1738 = vmatpush1.msra.mxu0 0.0
        %1739 = vmatprep.subr.mxu0 0.0
        %1740 = vmatpush1.msra.mxu0 0.0
        %1741 = vmatprep.subr.mxu0 0.0
        %1742 = vmatpush1.msra.mxu0 0.0
        %1743 = vmatprep.subr.mxu0 0.0
        %1744 = vmatpush1.msra.mxu0 0.0
        %1745 = vmatprep.subr.mxu0 0.0
        %1746 = vmatpush1.msra.mxu0 0.0
        %1747 = vmatprep.subr.mxu0 0.0
        %1748 = vmatpush1.msra.mxu0 0.0
        %1749 = vmatprep.subr.mxu0 0.0
        %1750 = vmatpush1.msra.mxu0 0.0
        %1751 = vmatprep.subr.mxu0 0.0
        %1752 = vmatpush1.msra.mxu0 0.0
        %1753 = vmatprep.subr.mxu0 0.0
        %1754 = vmatpush1.msra.mxu0 0.0
        %1755 = vmatprep.subr.mxu0 0.0
        %1756 = vmatpush1.msra.mxu0 0.0
        %1757 = vmatprep.subr.mxu0 0.0
        %1758 = vmatpush1.msra.mxu0 0.0
        %1759 = vmatprep.subr.mxu0 0.0
        %1760 = vmatpush1.msra.mxu0 0.0
        %1761 = vmatprep.subr.mxu0 0.0
        %1762 = vmatpush1.msra.mxu0 0.0
        %1763 = vmatprep.subr.mxu0 0.0
        %1764 = vmatpush1.msra.mxu0 0.0
        %1765 = vmatprep.subr.mxu0 0.0
        %1766 = vmatpush1.msra.mxu0 0.0
        %1767 = vmatprep.subr.mxu0 0.0
        %1768 = vmatpush1.msra.mxu0 0.0
        %1769 = vmatprep.subr.mxu0 0.0
        %1770 = vmatpush1.msra.mxu0 0.0
        %1771 = vmatprep.subr.mxu0 0.0
        %1772 = vmatpush1.msra.mxu0 0.0
        %1773 = vmatprep.subr.mxu0 0.0
        %1774 = vmatpush1.msra.mxu0 0.0
        %1775 = vmatprep.subr.mxu0 0.0
        %1776 = vmatpush1.msra.mxu0 0.0
        %1777 = vmatprep.subr.mxu0 0.0
        %1778 = vmatpush1.msra.mxu0 0.0
        %1779 = vmatprep.subr.mxu0 0.0
        %1780 = vmatpush1.msra.mxu0 0.0
        %1781 = vmatprep.subr.mxu0 0.0
        %1782 = vmatpush1.msra.mxu0 0.0
        %1783 = vmatprep.subr.mxu0 0.0
        %1784 = vmatpush1.msra.mxu0 0.0
        %1785 = vmatprep.subr.mxu0 0.0
        %1786 = vmatpush1.msra.mxu0 0.0
        %1787 = vmatprep.subr.mxu0 0.0
        %1788 = vmatpush1.msra.mxu0 0.0
        %1789 = vmatprep.mubr.f32.mxu0 0.0
        %1790 = vmatmul.mubr.f32.gmra.mrb[0].mxu0 %v1723
        %v1791 = vpop.f32.mrb[0].mxu0
        %v1792 = vadd.f32 0.0, %v1791
        %v1793 = vpop.f32.mrb[0].mxu0
        %v1794 = vadd.f32 0.0, %v1793
        %1795 = vdwg.mxu0
        %1796 = vmatprep.subr.mxu0 0.0
        %1797 = vmatpush1.msra.mxu0 %v1715
        %1798 = vmatprep.subr.mxu0 0.0
        %1799 = vmatpush1.msra.mxu0 0.0
        %1800 = vmatprep.subr.mxu0 0.0
        %1801 = vmatpush1.msra.mxu0 0.0
        %1802 = vmatprep.subr.mxu0 0.0
        %1803 = vmatpush1.msra.mxu0 0.0
        %1804 = vmatprep.subr.mxu0 0.0
        %1805 = vmatpush1.msra.mxu0 0.0
        %1806 = vmatprep.subr.mxu0 0.0
        %1807 = vmatpush1.msra.mxu0 0.0
        %1808 = vmatprep.subr.mxu0 0.0
        %1809 = vmatpush1.msra.mxu0 0.0
        %1810 = vmatprep.subr.mxu0 0.0
        %1811 = vmatpush1.msra.mxu0 0.0
        %1812 = vmatprep.subr.mxu0 0.0
        %1813 = vmatpush1.msra.mxu0 0.0
        %1814 = vmatprep.subr.mxu0 0.0
        %1815 = vmatpush1.msra.mxu0 0.0
        %1816 = vmatprep.subr.mxu0 0.0
        %1817 = vmatpush1.msra.mxu0 0.0
        %1818 = vmatprep.subr.mxu0 0.0
        %1819 = vmatpush1.msra.mxu0 0.0
        %1820 = vmatprep.subr.mxu0 0.0
        %1821 = vmatpush1.msra.mxu0 0.0
        %1822 = vmatprep.subr.mxu0 0.0
        %1823 = vmatpush1.msra.mxu0 0.0
        %1824 = vmatprep.subr.mxu0 0.0
        %1825 = vmatpush1.msra.mxu0 0.0
        %1826 = vmatprep.subr.mxu0 0.0
        %1827 = vmatpush1.msra.mxu0 0.0
        %1828 = vmatprep.subr.mxu0 0.0
        %1829 = vmatpush1.msra.mxu0 0.0
        %1830 = vmatprep.subr.mxu0 0.0
        %1831 = vmatpush1.msra.mxu0 0.0
        %1832 = vmatprep.subr.mxu0 0.0
        %1833 = vmatpush1.msra.mxu0 0.0
        %1834 = vmatprep.subr.mxu0 0.0
        %1835 = vmatpush1.msra.mxu0 0.0
        %1836 = vmatprep.subr.mxu0 0.0
        %1837 = vmatpush1.msra.mxu0 0.0
        %1838 = vmatprep.subr.mxu0 0.0
        %1839 = vmatpush1.msra.mxu0 0.0
        %1840 = vmatprep.subr.mxu0 0.0
        %1841 = vmatpush1.msra.mxu0 0.0
        %1842 = vmatprep.subr.mxu0 0.0
        %1843 = vmatpush1.msra.mxu0 0.0
        %1844 = vmatprep.subr.mxu0 0.0
        %1845 = vmatpush1.msra.mxu0 0.0
        %1846 = vmatprep.subr.mxu0 0.0
        %1847 = vmatpush1.msra.mxu0 0.0
        %1848 = vmatprep.subr.mxu0 0.0
        %1849 = vmatpush1.msra.mxu0 0.0
        %1850 = vmatprep.subr.mxu0 0.0
        %1851 = vmatpush1.msra.mxu0 0.0
        %1852 = vmatprep.subr.mxu0 0.0
        %1853 = vmatpush1.msra.mxu0 0.0
        %1854 = vmatprep.subr.mxu0 0.0
        %1855 = vmatpush1.msra.mxu0 0.0
        %1856 = vmatprep.subr.mxu0 0.0
        %1857 = vmatpush1.msra.mxu0 0.0
        %1858 = vmatprep.subr.mxu0 0.0
        %1859 = vmatpush1.msra.mxu0 0.0
        %1860 = vmatprep.mubr.f32.mxu0 0.0
        %1861 = vmatmul.mubr.f32.gmra.mrb[0].mxu0 %v1723
        %v1862 = vpop.f32.mrb[0].mxu0
        %v1863 = vadd.f32 0.0, %v1862
        %v1864 = vpop.f32.mrb[0].mxu0
        %1865 = vdwg.mxu0
        %v1866 = vadd.f32 %v1634, %v1792
        %v1867 = vadd.f32 %v1636, %v1794
        %v1868 = vadd.f32 %v1705, %v1863
        %s1869 = scalar_lea.vmem %s4, 12
        %v1870 = vld [vmem:[%s1869] sm:$0xf]
        %1871 = vrot.lane.b32.xlu0 %v1400, 110
        %v1872 = vpop.permute.xlu0 %1871
        %1873 = vrot.lane.b32.xlu0 %v1401, 110
        %v1874 = vpop.permute.xlu0 %1873
        %1875 = vrot.lane.b32.xlu0 %v1402, 110
        %v1876 = vpop.permute.xlu0 %1875
        %vm1877 = vcmask 900096
        %v1878 = vsel %vm1877, %v1872, %v1874
        %v1879 = vsel %vm1877, %v1874, %v1876
        %v1884 = vsel %vm374, %v1870, 0
        %1886 = vmatprep.subr.mxu0 %v1879
        %1887 = vmatpush1.msra.mxu0 %v1878
        %1888 = vmatprep.subr.mxu0 0.0
        %1889 = vmatpush1.msra.mxu0 0.0
        %1890 = vmatprep.subr.mxu0 0.0
        %1891 = vmatpush1.msra.mxu0 0.0
        %1892 = vmatprep.subr.mxu0 0.0
        %1893 = vmatpush1.msra.mxu0 0.0
        %1894 = vmatprep.subr.mxu0 0.0
        %1895 = vmatpush1.msra.mxu0 0.0
        %1896 = vmatprep.subr.mxu0 0.0
        %1897 = vmatpush1.msra.mxu0 0.0
        %1898 = vmatprep.subr.mxu0 0.0
        %1899 = vmatpush1.msra.mxu0 0.0
        %1900 = vmatprep.subr.mxu0 0.0
        %1901 = vmatpush1.msra.mxu0 0.0
        %1902 = vmatprep.subr.mxu0 0.0
        %1903 = vmatpush1.msra.mxu0 0.0
        %1904 = vmatprep.subr.mxu0 0.0
        %1905 = vmatpush1.msra.mxu0 0.0
        %1906 = vmatprep.subr.mxu0 0.0
        %1907 = vmatpush1.msra.mxu0 0.0
        %1908 = vmatprep.subr.mxu0 0.0
        %1909 = vmatpush1.msra.mxu0 0.0
        %1910 = vmatprep.subr.mxu0 0.0
        %1911 = vmatpush1.msra.mxu0 0.0
        %1912 = vmatprep.subr.mxu0 0.0
        %1913 = vmatpush1.msra.mxu0 0.0
        %1914 = vmatprep.subr.mxu0 0.0
        %1915 = vmatpush1.msra.mxu0 0.0
        %1916 = vmatprep.subr.mxu0 0.0
        %1917 = vmatpush1.msra.mxu0 0.0
        %1918 = vmatprep.subr.mxu0 0.0
        %1919 = vmatpush1.msra.mxu0 0.0
        %1920 = vmatprep.subr.mxu0 0.0
        %1921 = vmatpush1.msra.mxu0 0.0
        %1922 = vmatprep.subr.mxu0 0.0
        %1923 = vmatpush1.msra.mxu0 0.0
        %1924 = vmatprep.subr.mxu0 0.0
        %1925 = vmatpush1.msra.mxu0 0.0
        %1926 = vmatprep.subr.mxu0 0.0
        %1927 = vmatpush1.msra.mxu0 0.0
        %1928 = vmatprep.subr.mxu0 0.0
        %1929 = vmatpush1.msra.mxu0 0.0
        %1930 = vmatprep.subr.mxu0 0.0
        %1931 = vmatpush1.msra.mxu0 0.0
        %1932 = vmatprep.subr.mxu0 0.0
        %1933 = vmatpush1.msra.mxu0 0.0
        %1934 = vmatprep.subr.mxu0 0.0
        %1935 = vmatpush1.msra.mxu0 0.0
        %1936 = vmatprep.subr.mxu0 0.0
        %1937 = vmatpush1.msra.mxu0 0.0
        %1938 = vmatprep.subr.mxu0 0.0
        %1939 = vmatpush1.msra.mxu0 0.0
        %1940 = vmatprep.subr.mxu0 0.0
        %1941 = vmatpush1.msra.mxu0 0.0
        %1942 = vmatprep.subr.mxu0 0.0
        %1943 = vmatpush1.msra.mxu0 0.0
        %1944 = vmatprep.subr.mxu0 0.0
        %1945 = vmatpush1.msra.mxu0 0.0
        %1946 = vmatprep.subr.mxu0 0.0
        %1947 = vmatpush1.msra.mxu0 0.0
        %1948 = vmatprep.subr.mxu0 0.0
        %1949 = vmatpush1.msra.mxu0 0.0
        %1950 = vmatprep.mubr.f32.mxu0 0.0
        %1951 = vmatmul.mubr.f32.gmra.mrb[0].mxu0 %v1884
        %v1952 = vpop.f32.mrb[0].mxu0
        %v1953 = vadd.f32 0.0, %v1952
        %v1954 = vpop.f32.mrb[0].mxu0
        %v1955 = vadd.f32 0.0, %v1954
        %1956 = vdwg.mxu0
        %1957 = vmatprep.subr.mxu0 0.0
        %1958 = vmatpush1.msra.mxu0 %v1876
        %1959 = vmatprep.subr.mxu0 0.0
        %1960 = vmatpush1.msra.mxu0 0.0
        %1961 = vmatprep.subr.mxu0 0.0
        %1962 = vmatpush1.msra.mxu0 0.0
        %1963 = vmatprep.subr.mxu0 0.0
        %1964 = vmatpush1.msra.mxu0 0.0
        %1965 = vmatprep.subr.mxu0 0.0
        %1966 = vmatpush1.msra.mxu0 0.0
        %1967 = vmatprep.subr.mxu0 0.0
        %1968 = vmatpush1.msra.mxu0 0.0
        %1969 = vmatprep.subr.mxu0 0.0
        %1970 = vmatpush1.msra.mxu0 0.0
        %1971 = vmatprep.subr.mxu0 0.0
        %1972 = vmatpush1.msra.mxu0 0.0
        %1973 = vmatprep.subr.mxu0 0.0
        %1974 = vmatpush1.msra.mxu0 0.0
        %1975 = vmatprep.subr.mxu0 0.0
        %1976 = vmatpush1.msra.mxu0 0.0
        %1977 = vmatprep.subr.mxu0 0.0
        %1978 = vmatpush1.msra.mxu0 0.0
        %1979 = vmatprep.subr.mxu0 0.0
        %1980 = vmatpush1.msra.mxu0 0.0
        %1981 = vmatprep.subr.mxu0 0.0
        %1982 = vmatpush1.msra.mxu0 0.0
        %1983 = vmatprep.subr.mxu0 0.0
        %1984 = vmatpush1.msra.mxu0 0.0
        %1985 = vmatprep.subr.mxu0 0.0
        %1986 = vmatpush1.msra.mxu0 0.0
        %1987 = vmatprep.subr.mxu0 0.0
        %1988 = vmatpush1.msra.mxu0 0.0
        %1989 = vmatprep.subr.mxu0 0.0
        %1990 = vmatpush1.msra.mxu0 0.0
        %1991 = vmatprep.subr.mxu0 0.0
        %1992 = vmatpush1.msra.mxu0 0.0
        %1993 = vmatprep.subr.mxu0 0.0
        %1994 = vmatpush1.msra.mxu0 0.0
        %1995 = vmatprep.subr.mxu0 0.0
        %1996 = vmatpush1.msra.mxu0 0.0
        %1997 = vmatprep.subr.mxu0 0.0
        %1998 = vmatpush1.msra.mxu0 0.0
        %1999 = vmatprep.subr.mxu0 0.0
        %2000 = vmatpush1.msra.mxu0 0.0
        %2001 = vmatprep.subr.mxu0 0.0
        %2002 = vmatpush1.msra.mxu0 0.0
        %2003 = vmatprep.subr.mxu0 0.0
        %2004 = vmatpush1.msra.mxu0 0.0
        %2005 = vmatprep.subr.mxu0 0.0
        %2006 = vmatpush1.msra.mxu0 0.0
        %2007 = vmatprep.subr.mxu0 0.0
        %2008 = vmatpush1.msra.mxu0 0.0
        %2009 = vmatprep.subr.mxu0 0.0
        %2010 = vmatpush1.msra.mxu0 0.0
        %2011 = vmatprep.subr.mxu0 0.0
        %2012 = vmatpush1.msra.mxu0 0.0
        %2013 = vmatprep.subr.mxu0 0.0
        %2014 = vmatpush1.msra.mxu0 0.0
        %2015 = vmatprep.subr.mxu0 0.0
        %2016 = vmatpush1.msra.mxu0 0.0
        %2017 = vmatprep.subr.mxu0 0.0
        %2018 = vmatpush1.msra.mxu0 0.0
        %2019 = vmatprep.subr.mxu0 0.0
        %2020 = vmatpush1.msra.mxu0 0.0
        %2021 = vmatprep.mubr.f32.mxu0 0.0
        %2022 = vmatmul.mubr.f32.gmra.mrb[0].mxu0 %v1884
        %v2023 = vpop.f32.mrb[0].mxu0
        %v2024 = vadd.f32 0.0, %v2023
        %v2025 = vpop.f32.mrb[0].mxu0
        %2026 = vdwg.mxu0
        %v2027 = vadd.f32 %v1866, %v1953
        %v2028 = vadd.f32 %v1867, %v1955
        %v2029 = vadd.f32 %v1868, %v2024
        %s2030 = scalar_lea.vmem %s4, 16
        %v2031 = vld [vmem:[%s2030] sm:$0xf]
        %2032 = vrot.lane.b32.xlu0 %v1400, 109
        %v2033 = vpop.permute.xlu0 %2032
        %2034 = vrot.lane.b32.xlu0 %v1401, 109
        %v2035 = vpop.permute.xlu0 %2034
        %2036 = vrot.lane.b32.xlu0 %v1402, 109
        %v2037 = vpop.permute.xlu0 %2036
        %vm2038 = vcmask 891904
        %v2039 = vsel %vm2038, %v2033, %v2035
        %v2040 = vsel %vm2038, %v2035, %v2037
        %v2045 = vsel %vm374, %v2031, 0
        %2047 = vmatprep.subr.mxu0 %v2040
        %2048 = vmatpush1.msra.mxu0 %v2039
        %2049 = vmatprep.subr.mxu0 0.0
        %2050 = vmatpush1.msra.mxu0 0.0
        %2051 = vmatprep.subr.mxu0 0.0
        %2052 = vmatpush1.msra.mxu0 0.0
        %2053 = vmatprep.subr.mxu0 0.0
        %2054 = vmatpush1.msra.mxu0 0.0
        %2055 = vmatprep.subr.mxu0 0.0
        %2056 = vmatpush1.msra.mxu0 0.0
        %2057 = vmatprep.subr.mxu0 0.0
        %2058 = vmatpush1.msra.mxu0 0.0
        %2059 = vmatprep.subr.mxu0 0.0
        %2060 = vmatpush1.msra.mxu0 0.0
        %2061 = vmatprep.subr.mxu0 0.0
        %2062 = vmatpush1.msra.mxu0 0.0
        %2063 = vmatprep.subr.mxu0 0.0
        %2064 = vmatpush1.msra.mxu0 0.0
        %2065 = vmatprep.subr.mxu0 0.0
        %2066 = vmatpush1.msra.mxu0 0.0
        %2067 = vmatprep.subr.mxu0 0.0
        %2068 = vmatpush1.msra.mxu0 0.0
        %2069 = vmatprep.subr.mxu0 0.0
        %2070 = vmatpush1.msra.mxu0 0.0
        %2071 = vmatprep.subr.mxu0 0.0
        %2072 = vmatpush1.msra.mxu0 0.0
        %2073 = vmatprep.subr.mxu0 0.0
        %2074 = vmatpush1.msra.mxu0 0.0
        %2075 = vmatprep.subr.mxu0 0.0
        %2076 = vmatpush1.msra.mxu0 0.0
        %2077 = vmatprep.subr.mxu0 0.0
        %2078 = vmatpush1.msra.mxu0 0.0
        %2079 = vmatprep.subr.mxu0 0.0
        %2080 = vmatpush1.msra.mxu0 0.0
        %2081 = vmatprep.subr.mxu0 0.0
        %2082 = vmatpush1.msra.mxu0 0.0
        %2083 = vmatprep.subr.mxu0 0.0
        %2084 = vmatpush1.msra.mxu0 0.0
        %2085 = vmatprep.subr.mxu0 0.0
        %2086 = vmatpush1.msra.mxu0 0.0
        %2087 = vmatprep.subr.mxu0 0.0
        %2088 = vmatpush1.msra.mxu0 0.0
        %2089 = vmatprep.subr.mxu0 0.0
        %2090 = vmatpush1.msra.mxu0 0.0
        %2091 = vmatprep.subr.mxu0 0.0
        %2092 = vmatpush1.msra.mxu0 0.0
        %2093 = vmatprep.subr.mxu0 0.0
        %2094 = vmatpush1.msra.mxu0 0.0
        %2095 = vmatprep.subr.mxu0 0.0
        %2096 = vmatpush1.msra.mxu0 0.0
        %2097 = vmatprep.subr.mxu0 0.0
        %2098 = vmatpush1.msra.mxu0 0.0
        %2099 = vmatprep.subr.mxu0 0.0
        %2100 = vmatpush1.msra.mxu0 0.0
        %2101 = vmatprep.subr.mxu0 0.0
        %2102 = vmatpush1.msra.mxu0 0.0
        %2103 = vmatprep.subr.mxu0 0.0
        %2104 = vmatpush1.msra.mxu0 0.0
        %2105 = vmatprep.subr.mxu0 0.0
        %2106 = vmatpush1.msra.mxu0 0.0
        %2107 = vmatprep.subr.mxu0 0.0
        %2108 = vmatpush1.msra.mxu0 0.0
        %2109 = vmatprep.subr.mxu0 0.0
        %2110 = vmatpush1.msra.mxu0 0.0
        %2111 = vmatprep.mubr.f32.mxu0 0.0
        %2112 = vmatmul.mubr.f32.gmra.mrb[0].mxu0 %v2045
        %v2113 = vpop.f32.mrb[0].mxu0
        %v2114 = vadd.f32 0.0, %v2113
        %v2115 = vpop.f32.mrb[0].mxu0
        %v2116 = vadd.f32 0.0, %v2115
        %2117 = vdwg.mxu0
        %2118 = vmatprep.subr.mxu0 0.0
        %2119 = vmatpush1.msra.mxu0 %v2037
        %2120 = vmatprep.subr.mxu0 0.0
        %2121 = vmatpush1.msra.mxu0 0.0
        %2122 = vmatprep.subr.mxu0 0.0
        %2123 = vmatpush1.msra.mxu0 0.0
        %2124 = vmatprep.subr.mxu0 0.0
        %2125 = vmatpush1.msra.mxu0 0.0
        %2126 = vmatprep.subr.mxu0 0.0
        %2127 = vmatpush1.msra.mxu0 0.0
        %2128 = vmatprep.subr.mxu0 0.0
        %2129 = vmatpush1.msra.mxu0 0.0
        %2130 = vmatprep.subr.mxu0 0.0
        %2131 = vmatpush1.msra.mxu0 0.0
        %2132 = vmatprep.subr.mxu0 0.0
        %2133 = vmatpush1.msra.mxu0 0.0
        %2134 = vmatprep.subr.mxu0 0.0
        %2135 = vmatpush1.msra.mxu0 0.0
        %2136 = vmatprep.subr.mxu0 0.0
        %2137 = vmatpush1.msra.mxu0 0.0
        %2138 = vmatprep.subr.mxu0 0.0
        %2139 = vmatpush1.msra.mxu0 0.0
        %2140 = vmatprep.subr.mxu0 0.0
        %2141 = vmatpush1.msra.mxu0 0.0
        %2142 = vmatprep.subr.mxu0 0.0
        %2143 = vmatpush1.msra.mxu0 0.0
        %2144 = vmatprep.subr.mxu0 0.0
        %2145 = vmatpush1.msra.mxu0 0.0
        %2146 = vmatprep.subr.mxu0 0.0
        %2147 = vmatpush1.msra.mxu0 0.0
        %2148 = vmatprep.subr.mxu0 0.0
        %2149 = vmatpush1.msra.mxu0 0.0
        %2150 = vmatprep.subr.mxu0 0.0
        %2151 = vmatpush1.msra.mxu0 0.0
        %2152 = vmatprep.subr.mxu0 0.0
        %2153 = vmatpush1.msra.mxu0 0.0
        %2154 = vmatprep.subr.mxu0 0.0
        %2155 = vmatpush1.msra.mxu0 0.0
        %2156 = vmatprep.subr.mxu0 0.0
        %2157 = vmatpush1.msra.mxu0 0.0
        %2158 = vmatprep.subr.mxu0 0.0
        %2159 = vmatpush1.msra.mxu0 0.0
        %2160 = vmatprep.subr.mxu0 0.0
        %2161 = vmatpush1.msra.mxu0 0.0
        %2162 = vmatprep.subr.mxu0 0.0
        %2163 = vmatpush1.msra.mxu0 0.0
        %2164 = vmatprep.subr.mxu0 0.0
        %2165 = vmatpush1.msra.mxu0 0.0
        %2166 = vmatprep.subr.mxu0 0.0
        %2167 = vmatpush1.msra.mxu0 0.0
        %2168 = vmatprep.subr.mxu0 0.0
        %2169 = vmatpush1.msra.mxu0 0.0
        %2170 = vmatprep.subr.mxu0 0.0
        %2171 = vmatpush1.msra.mxu0 0.0
        %2172 = vmatprep.subr.mxu0 0.0
        %2173 = vmatpush1.msra.mxu0 0.0
        %2174 = vmatprep.subr.mxu0 0.0
        %2175 = vmatpush1.msra.mxu0 0.0
        %2176 = vmatprep.subr.mxu0 0.0
        %2177 = vmatpush1.msra.mxu0 0.0
        %2178 = vmatprep.subr.mxu0 0.0
        %2179 = vmatpush1.msra.mxu0 0.0
        %2180 = vmatprep.subr.mxu0 0.0
        %2181 = vmatpush1.msra.mxu0 0.0
        %2182 = vmatprep.mubr.f32.mxu0 0.0
        %2183 = vmatmul.mubr.f32.gmra.mrb[0].mxu0 %v2045
        %v2184 = vpop.f32.mrb[0].mxu0
        %v2185 = vadd.f32 0.0, %v2184
        %v2186 = vpop.f32.mrb[0].mxu0
        %2187 = vdwg.mxu0
        %v2188 = vadd.f32 %v2027, %v2114
        %v2189 = vadd.f32 %v2028, %v2116
        %v2190 = vadd.f32 %v2029, %v2185
        %s2191 = scalar_lea.vmem %s4, 20
        %v2192 = vld [vmem:[%s2191] sm:$0xf]
        %2193 = vrot.lane.b32.xlu0 %v1400, 108
        %v2194 = vpop.permute.xlu0 %2193
        %2195 = vrot.lane.b32.xlu0 %v1401, 108
        %v2196 = vpop.permute.xlu0 %2195
        %2197 = vrot.lane.b32.xlu0 %v1402, 108
        %v2198 = vpop.permute.xlu0 %2197
        %vm2199 = vcmask 883712
        %v2200 = vsel %vm2199, %v2194, %v2196
        %v2201 = vsel %vm2199, %v2196, %v2198
        %v2206 = vsel %vm374, %v2192, 0
        %2208 = vmatprep.subr.mxu0 %v2201
        %2209 = vmatpush1.msra.mxu0 %v2200
        %2210 = vmatprep.subr.mxu0 0.0
        %2211 = vmatpush1.msra.mxu0 0.0
        %2212 = vmatprep.subr.mxu0 0.0
        %2213 = vmatpush1.msra.mxu0 0.0
        %2214 = vmatprep.subr.mxu0 0.0
        %2215 = vmatpush1.msra.mxu0 0.0
        %2216 = vmatprep.subr.mxu0 0.0
        %2217 = vmatpush1.msra.mxu0 0.0
        %2218 = vmatprep.subr.mxu0 0.0
        %2219 = vmatpush1.msra.mxu0 0.0
        %2220 = vmatprep.subr.mxu0 0.0
        %2221 = vmatpush1.msra.mxu0 0.0
        %2222 = vmatprep.subr.mxu0 0.0
        %2223 = vmatpush1.msra.mxu0 0.0
        %2224 = vmatprep.subr.mxu0 0.0
        %2225 = vmatpush1.msra.mxu0 0.0
        %2226 = vmatprep.subr.mxu0 0.0
        %2227 = vmatpush1.msra.mxu0 0.0
        %2228 = vmatprep.subr.mxu0 0.0
        %2229 = vmatpush1.msra.mxu0 0.0
        %2230 = vmatprep.subr.mxu0 0.0
        %2231 = vmatpush1.msra.mxu0 0.0
        %2232 = vmatprep.subr.mxu0 0.0
        %2233 = vmatpush1.msra.mxu0 0.0
        %2234 = vmatprep.subr.mxu0 0.0
        %2235 = vmatpush1.msra.mxu0 0.0
        %2236 = vmatprep.subr.mxu0 0.0
        %2237 = vmatpush1.msra.mxu0 0.0
        %2238 = vmatprep.subr.mxu0 0.0
        %2239 = vmatpush1.msra.mxu0 0.0
        %2240 = vmatprep.subr.mxu0 0.0
        %2241 = vmatpush1.msra.mxu0 0.0
        %2242 = vmatprep.subr.mxu0 0.0
        %2243 = vmatpush1.msra.mxu0 0.0
        %2244 = vmatprep.subr.mxu0 0.0
        %2245 = vmatpush1.msra.mxu0 0.0
        %2246 = vmatprep.subr.mxu0 0.0
        %2247 = vmatpush1.msra.mxu0 0.0
        %2248 = vmatprep.subr.mxu0 0.0
        %2249 = vmatpush1.msra.mxu0 0.0
        %2250 = vmatprep.subr.mxu0 0.0
        %2251 = vmatpush1.msra.mxu0 0.0
        %2252 = vmatprep.subr.mxu0 0.0
        %2253 = vmatpush1.msra.mxu0 0.0
        %2254 = vmatprep.subr.mxu0 0.0
        %2255 = vmatpush1.msra.mxu0 0.0
        %2256 = vmatprep.subr.mxu0 0.0
        %2257 = vmatpush1.msra.mxu0 0.0
        %2258 = vmatprep.subr.mxu0 0.0
        %2259 = vmatpush1.msra.mxu0 0.0
        %2260 = vmatprep.subr.mxu0 0.0
        %2261 = vmatpush1.msra.mxu0 0.0
        %2262 = vmatprep.subr.mxu0 0.0
        %2263 = vmatpush1.msra.mxu0 0.0
        %2264 = vmatprep.subr.mxu0 0.0
        %2265 = vmatpush1.msra.mxu0 0.0
        %2266 = vmatprep.subr.mxu0 0.0
        %2267 = vmatpush1.msra.mxu0 0.0
        %2268 = vmatprep.subr.mxu0 0.0
        %2269 = vmatpush1.msra.mxu0 0.0
        %2270 = vmatprep.subr.mxu0 0.0
        %2271 = vmatpush1.msra.mxu0 0.0
        %2272 = vmatprep.mubr.f32.mxu0 0.0
        %2273 = vmatmul.mubr.f32.gmra.mrb[0].mxu0 %v2206
        %v2274 = vpop.f32.mrb[0].mxu0
        %v2275 = vadd.f32 0.0, %v2274
        %v2276 = vpop.f32.mrb[0].mxu0
        %v2277 = vadd.f32 0.0, %v2276
        %2278 = vdwg.mxu0
        %2279 = vmatprep.subr.mxu0 0.0
        %2280 = vmatpush1.msra.mxu0 %v2198
        %2281 = vmatprep.subr.mxu0 0.0
        %2282 = vmatpush1.msra.mxu0 0.0
        %2283 = vmatprep.subr.mxu0 0.0
        %2284 = vmatpush1.msra.mxu0 0.0
        %2285 = vmatprep.subr.mxu0 0.0
        %2286 = vmatpush1.msra.mxu0 0.0
        %2287 = vmatprep.subr.mxu0 0.0
        %2288 = vmatpush1.msra.mxu0 0.0
        %2289 = vmatprep.subr.mxu0 0.0
        %2290 = vmatpush1.msra.mxu0 0.0
        %2291 = vmatprep.subr.mxu0 0.0
        %2292 = vmatpush1.msra.mxu0 0.0
        %2293 = vmatprep.subr.mxu0 0.0
        %2294 = vmatpush1.msra.mxu0 0.0
        %2295 = vmatprep.subr.mxu0 0.0
        %2296 = vmatpush1.msra.mxu0 0.0
        %2297 = vmatprep.subr.mxu0 0.0
        %2298 = vmatpush1.msra.mxu0 0.0
        %2299 = vmatprep.subr.mxu0 0.0
        %2300 = vmatpush1.msra.mxu0 0.0
        %2301 = vmatprep.subr.mxu0 0.0
        %2302 = vmatpush1.msra.mxu0 0.0
        %2303 = vmatprep.subr.mxu0 0.0
        %2304 = vmatpush1.msra.mxu0 0.0
        %2305 = vmatprep.subr.mxu0 0.0
        %2306 = vmatpush1.msra.mxu0 0.0
        %2307 = vmatprep.subr.mxu0 0.0
        %2308 = vmatpush1.msra.mxu0 0.0
        %2309 = vmatprep.subr.mxu0 0.0
        %2310 = vmatpush1.msra.mxu0 0.0
        %2311 = vmatprep.subr.mxu0 0.0
        %2312 = vmatpush1.msra.mxu0 0.0
        %2313 = vmatprep.subr.mxu0 0.0
        %2314 = vmatpush1.msra.mxu0 0.0
        %2315 = vmatprep.subr.mxu0 0.0
        %2316 = vmatpush1.msra.mxu0 0.0
        %2317 = vmatprep.subr.mxu0 0.0
        %2318 = vmatpush1.msra.mxu0 0.0
        %2319 = vmatprep.subr.mxu0 0.0
        %2320 = vmatpush1.msra.mxu0 0.0
        %2321 = vmatprep.subr.mxu0 0.0
        %2322 = vmatpush1.msra.mxu0 0.0
        %2323 = vmatprep.subr.mxu0 0.0
        %2324 = vmatpush1.msra.mxu0 0.0
        %2325 = vmatprep.subr.mxu0 0.0
        %2326 = vmatpush1.msra.mxu0 0.0
        %2327 = vmatprep.subr.mxu0 0.0
        %2328 = vmatpush1.msra.mxu0 0.0
        %2329 = vmatprep.subr.mxu0 0.0
        %2330 = vmatpush1.msra.mxu0 0.0
        %2331 = vmatprep.subr.mxu0 0.0
        %2332 = vmatpush1.msra.mxu0 0.0
        %2333 = vmatprep.subr.mxu0 0.0
        %2334 = vmatpush1.msra.mxu0 0.0
        %2335 = vmatprep.subr.mxu0 0.0
        %2336 = vmatpush1.msra.mxu0 0.0
        %2337 = vmatprep.subr.mxu0 0.0
        %2338 = vmatpush1.msra.mxu0 0.0
        %2339 = vmatprep.subr.mxu0 0.0
        %2340 = vmatpush1.msra.mxu0 0.0
        %2341 = vmatprep.subr.mxu0 0.0
        %2342 = vmatpush1.msra.mxu0 0.0
        %2343 = vmatprep.mubr.f32.mxu0 0.0
        %2344 = vmatmul.mubr.f32.gmra.mrb[0].mxu0 %v2206
        %v2345 = vpop.f32.mrb[0].mxu0
        %v2346 = vadd.f32 0.0, %v2345
        %v2347 = vpop.f32.mrb[0].mxu0
        %2348 = vdwg.mxu0
        %v2349 = vadd.f32 %v2188, %v2275
        %v2350 = vadd.f32 %v2189, %v2277
        %v2351 = vadd.f32 %v2190, %v2346
        %s2352 = scalar_lea.vmem %s4, 24
        %v2353 = vld [vmem:[%s2352] sm:$0xf]
        %2354 = vrot.lane.b32.xlu0 %v1400, 92
        %v2355 = vpop.permute.xlu0 %2354
        %2356 = vrot.lane.b32.xlu0 %v1401, 92
        %v2357 = vpop.permute.xlu0 %2356
        %2358 = vrot.lane.b32.xlu0 %v1402, 92
        %v2359 = vpop.permute.xlu0 %2358
        %vm2360 = vcmask 752640
        %v2361 = vsel %vm2360, %v2355, %v2357
        %v2362 = vsel %vm2360, %v2357, %v2359
        %v2367 = vsel %vm374, %v2353, 0
        %2369 = vmatprep.subr.mxu0 %v2362
        %2370 = vmatpush1.msra.mxu0 %v2361
        %2371 = vmatprep.subr.mxu0 0.0
        %2372 = vmatpush1.msra.mxu0 0.0
        %2373 = vmatprep.subr.mxu0 0.0
        %2374 = vmatpush1.msra.mxu0 0.0
        %2375 = vmatprep.subr.mxu0 0.0
        %2376 = vmatpush1.msra.mxu0 0.0
        %2377 = vmatprep.subr.mxu0 0.0
        %2378 = vmatpush1.msra.mxu0 0.0
        %2379 = vmatprep.subr.mxu0 0.0
        %2380 = vmatpush1.msra.mxu0 0.0
        %2381 = vmatprep.subr.mxu0 0.0
        %2382 = vmatpush1.msra.mxu0 0.0
        %2383 = vmatprep.subr.mxu0 0.0
        %2384 = vmatpush1.msra.mxu0 0.0
        %2385 = vmatprep.subr.mxu0 0.0
        %2386 = vmatpush1.msra.mxu0 0.0
        %2387 = vmatprep.subr.mxu0 0.0
        %2388 = vmatpush1.msra.mxu0 0.0
        %2389 = vmatprep.subr.mxu0 0.0
        %2390 = vmatpush1.msra.mxu0 0.0
        %2391 = vmatprep.subr.mxu0 0.0
        %2392 = vmatpush1.msra.mxu0 0.0
        %2393 = vmatprep.subr.mxu0 0.0
        %2394 = vmatpush1.msra.mxu0 0.0
        %2395 = vmatprep.subr.mxu0 0.0
        %2396 = vmatpush1.msra.mxu0 0.0
        %2397 = vmatprep.subr.mxu0 0.0
        %2398 = vmatpush1.msra.mxu0 0.0
        %2399 = vmatprep.subr.mxu0 0.0
        %2400 = vmatpush1.msra.mxu0 0.0
        %2401 = vmatprep.subr.mxu0 0.0
        %2402 = vmatpush1.msra.mxu0 0.0
        %2403 = vmatprep.subr.mxu0 0.0
        %2404 = vmatpush1.msra.mxu0 0.0
        %2405 = vmatprep.subr.mxu0 0.0
        %2406 = vmatpush1.msra.mxu0 0.0
        %2407 = vmatprep.subr.mxu0 0.0
        %2408 = vmatpush1.msra.mxu0 0.0
        %2409 = vmatprep.subr.mxu0 0.0
        %2410 = vmatpush1.msra.mxu0 0.0
        %2411 = vmatprep.subr.mxu0 0.0
        %2412 = vmatpush1.msra.mxu0 0.0
        %2413 = vmatprep.subr.mxu0 0.0
        %2414 = vmatpush1.msra.mxu0 0.0
        %2415 = vmatprep.subr.mxu0 0.0
        %2416 = vmatpush1.msra.mxu0 0.0
        %2417 = vmatprep.subr.mxu0 0.0
        %2418 = vmatpush1.msra.mxu0 0.0
        %2419 = vmatprep.subr.mxu0 0.0
        %2420 = vmatpush1.msra.mxu0 0.0
        %2421 = vmatprep.subr.mxu0 0.0
        %2422 = vmatpush1.msra.mxu0 0.0
        %2423 = vmatprep.subr.mxu0 0.0
        %2424 = vmatpush1.msra.mxu0 0.0
        %2425 = vmatprep.subr.mxu0 0.0
        %2426 = vmatpush1.msra.mxu0 0.0
        %2427 = vmatprep.subr.mxu0 0.0
        %2428 = vmatpush1.msra.mxu0 0.0
        %2429 = vmatprep.subr.mxu0 0.0
        %2430 = vmatpush1.msra.mxu0 0.0
        %2431 = vmatprep.subr.mxu0 0.0
        %2432 = vmatpush1.msra.mxu0 0.0
        %2433 = vmatprep.mubr.f32.mxu0 0.0
        %2434 = vmatmul.mubr.f32.gmra.mrb[0].mxu0 %v2367
        %v2435 = vpop.f32.mrb[0].mxu0
        %v2436 = vadd.f32 0.0, %v2435
        %v2437 = vpop.f32.mrb[0].mxu0
        %v2438 = vadd.f32 0.0, %v2437
        %2439 = vdwg.mxu0
        %2440 = vmatprep.subr.mxu0 0.0
        %2441 = vmatpush1.msra.mxu0 %v2359
        %2442 = vmatprep.subr.mxu0 0.0
        %2443 = vmatpush1.msra.mxu0 0.0
        %2444 = vmatprep.subr.mxu0 0.0
        %2445 = vmatpush1.msra.mxu0 0.0
        %2446 = vmatprep.subr.mxu0 0.0
        %2447 = vmatpush1.msra.mxu0 0.0
        %2448 = vmatprep.subr.mxu0 0.0
        %2449 = vmatpush1.msra.mxu0 0.0
        %2450 = vmatprep.subr.mxu0 0.0
        %2451 = vmatpush1.msra.mxu0 0.0
        %2452 = vmatprep.subr.mxu0 0.0
        %2453 = vmatpush1.msra.mxu0 0.0
        %2454 = vmatprep.subr.mxu0 0.0
        %2455 = vmatpush1.msra.mxu0 0.0
        %2456 = vmatprep.subr.mxu0 0.0
        %2457 = vmatpush1.msra.mxu0 0.0
        %2458 = vmatprep.subr.mxu0 0.0
        %2459 = vmatpush1.msra.mxu0 0.0
        %2460 = vmatprep.subr.mxu0 0.0
        %2461 = vmatpush1.msra.mxu0 0.0
        %2462 = vmatprep.subr.mxu0 0.0
        %2463 = vmatpush1.msra.mxu0 0.0
        %2464 = vmatprep.subr.mxu0 0.0
        %2465 = vmatpush1.msra.mxu0 0.0
        %2466 = vmatprep.subr.mxu0 0.0
        %2467 = vmatpush1.msra.mxu0 0.0
        %2468 = vmatprep.subr.mxu0 0.0
        %2469 = vmatpush1.msra.mxu0 0.0
        %2470 = vmatprep.subr.mxu0 0.0
        %2471 = vmatpush1.msra.mxu0 0.0
        %2472 = vmatprep.subr.mxu0 0.0
        %2473 = vmatpush1.msra.mxu0 0.0
        %2474 = vmatprep.subr.mxu0 0.0
        %2475 = vmatpush1.msra.mxu0 0.0
        %2476 = vmatprep.subr.mxu0 0.0
        %2477 = vmatpush1.msra.mxu0 0.0
        %2478 = vmatprep.subr.mxu0 0.0
        %2479 = vmatpush1.msra.mxu0 0.0
        %2480 = vmatprep.subr.mxu0 0.0
        %2481 = vmatpush1.msra.mxu0 0.0
        %2482 = vmatprep.subr.mxu0 0.0
        %2483 = vmatpush1.msra.mxu0 0.0
        %2484 = vmatprep.subr.mxu0 0.0
        %2485 = vmatpush1.msra.mxu0 0.0
        %2486 = vmatprep.subr.mxu0 0.0
        %2487 = vmatpush1.msra.mxu0 0.0
        %2488 = vmatprep.subr.mxu0 0.0
        %2489 = vmatpush1.msra.mxu0 0.0
        %2490 = vmatprep.subr.mxu0 0.0
        %2491 = vmatpush1.msra.mxu0 0.0
        %2492 = vmatprep.subr.mxu0 0.0
        %2493 = vmatpush1.msra.mxu0 0.0
        %2494 = vmatprep.subr.mxu0 0.0
        %2495 = vmatpush1.msra.mxu0 0.0
        %2496 = vmatprep.subr.mxu0 0.0
        %2497 = vmatpush1.msra.mxu0 0.0
        %2498 = vmatprep.subr.mxu0 0.0
        %2499 = vmatpush1.msra.mxu0 0.0
        %2500 = vmatprep.subr.mxu0 0.0
        %2501 = vmatpush1.msra.mxu0 0.0
        %2502 = vmatprep.subr.mxu0 0.0
        %2503 = vmatpush1.msra.mxu0 0.0
        %2504 = vmatprep.mubr.f32.mxu0 0.0
        %2505 = vmatmul.mubr.f32.gmra.mrb[0].mxu0 %v2367
        %v2506 = vpop.f32.mrb[0].mxu0
        %v2507 = vadd.f32 0.0, %v2506
        %v2508 = vpop.f32.mrb[0].mxu0
        %2509 = vdwg.mxu0
        %v2510 = vadd.f32 %v2349, %v2436
        %v2511 = vadd.f32 %v2350, %v2438
        %v2512 = vadd.f32 %v2351, %v2507
        %s2513 = scalar_lea.vmem %s4, 28
        %v2514 = vld [vmem:[%s2513] sm:$0xf]
        %2515 = vrot.lane.b32.xlu0 %v1400, 91
        %v2516 = vpop.permute.xlu0 %2515
        %2517 = vrot.lane.b32.xlu0 %v1401, 91
        %v2518 = vpop.permute.xlu0 %2517
        %2519 = vrot.lane.b32.xlu0 %v1402, 91
        %v2520 = vpop.permute.xlu0 %2519
        %vm2521 = vcmask 744448
        %v2522 = vsel %vm2521, %v2516, %v2518
        %v2523 = vsel %vm2521, %v2518, %v2520
        %v2528 = vsel %vm374, %v2514, 0
        %2530 = vmatprep.subr.mxu0 %v2523
        %2531 = vmatpush1.msra.mxu0 %v2522
        %2532 = vmatprep.subr.mxu0 0.0
        %2533 = vmatpush1.msra.mxu0 0.0
        %2534 = vmatprep.subr.mxu0 0.0
        %2535 = vmatpush1.msra.mxu0 0.0
        %2536 = vmatprep.subr.mxu0 0.0
        %2537 = vmatpush1.msra.mxu0 0.0
        %2538 = vmatprep.subr.mxu0 0.0
        %2539 = vmatpush1.msra.mxu0 0.0
        %2540 = vmatprep.subr.mxu0 0.0
        %2541 = vmatpush1.msra.mxu0 0.0
        %2542 = vmatprep.subr.mxu0 0.0
        %2543 = vmatpush1.msra.mxu0 0.0
        %2544 = vmatprep.subr.mxu0 0.0
        %2545 = vmatpush1.msra.mxu0 0.0
        %2546 = vmatprep.subr.mxu0 0.0
        %2547 = vmatpush1.msra.mxu0 0.0
        %2548 = vmatprep.subr.mxu0 0.0
        %2549 = vmatpush1.msra.mxu0 0.0
        %2550 = vmatprep.subr.mxu0 0.0
        %2551 = vmatpush1.msra.mxu0 0.0
        %2552 = vmatprep.subr.mxu0 0.0
        %2553 = vmatpush1.msra.mxu0 0.0
        %2554 = vmatprep.subr.mxu0 0.0
        %2555 = vmatpush1.msra.mxu0 0.0
        %2556 = vmatprep.subr.mxu0 0.0
        %2557 = vmatpush1.msra.mxu0 0.0
        %2558 = vmatprep.subr.mxu0 0.0
        %2559 = vmatpush1.msra.mxu0 0.0
        %2560 = vmatprep.subr.mxu0 0.0
        %2561 = vmatpush1.msra.mxu0 0.0
        %2562 = vmatprep.subr.mxu0 0.0
        %2563 = vmatpush1.msra.mxu0 0.0
        %2564 = vmatprep.subr.mxu0 0.0
        %2565 = vmatpush1.msra.mxu0 0.0
        %2566 = vmatprep.subr.mxu0 0.0
        %2567 = vmatpush1.msra.mxu0 0.0
        %2568 = vmatprep.subr.mxu0 0.0
        %2569 = vmatpush1.msra.mxu0 0.0
        %2570 = vmatprep.subr.mxu0 0.0
        %2571 = vmatpush1.msra.mxu0 0.0
        %2572 = vmatprep.subr.mxu0 0.0
        %2573 = vmatpush1.msra.mxu0 0.0
        %2574 = vmatprep.subr.mxu0 0.0
        %2575 = vmatpush1.msra.mxu0 0.0
        %2576 = vmatprep.subr.mxu0 0.0
        %2577 = vmatpush1.msra.mxu0 0.0
        %2578 = vmatprep.subr.mxu0 0.0
        %2579 = vmatpush1.msra.mxu0 0.0
        %2580 = vmatprep.subr.mxu0 0.0
        %2581 = vmatpush1.msra.mxu0 0.0
        %2582 = vmatprep.subr.mxu0 0.0
        %2583 = vmatpush1.msra.mxu0 0.0
        %2584 = vmatprep.subr.mxu0 0.0
        %2585 = vmatpush1.msra.mxu0 0.0
        %2586 = vmatprep.subr.mxu0 0.0
        %2587 = vmatpush1.msra.mxu0 0.0
        %2588 = vmatprep.subr.mxu0 0.0
        %2589 = vmatpush1.msra.mxu0 0.0
        %2590 = vmatprep.subr.mxu0 0.0
        %2591 = vmatpush1.msra.mxu0 0.0
        %2592 = vmatprep.subr.mxu0 0.0
        %2593 = vmatpush1.msra.mxu0 0.0
        %2594 = vmatprep.mubr.f32.mxu0 0.0
        %2595 = vmatmul.mubr.f32.gmra.mrb[0].mxu0 %v2528
        %v2596 = vpop.f32.mrb[0].mxu0
        %v2597 = vadd.f32 0.0, %v2596
        %v2598 = vpop.f32.mrb[0].mxu0
        %v2599 = vadd.f32 0.0, %v2598
        %2600 = vdwg.mxu0
        %2601 = vmatprep.subr.mxu0 0.0
        %2602 = vmatpush1.msra.mxu0 %v2520
        %2603 = vmatprep.subr.mxu0 0.0
        %2604 = vmatpush1.msra.mxu0 0.0
        %2605 = vmatprep.subr.mxu0 0.0
        %2606 = vmatpush1.msra.mxu0 0.0
        %2607 = vmatprep.subr.mxu0 0.0
        %2608 = vmatpush1.msra.mxu0 0.0
        %2609 = vmatprep.subr.mxu0 0.0
        %2610 = vmatpush1.msra.mxu0 0.0
        %2611 = vmatprep.subr.mxu0 0.0
        %2612 = vmatpush1.msra.mxu0 0.0
        %2613 = vmatprep.subr.mxu0 0.0
        %2614 = vmatpush1.msra.mxu0 0.0
        %2615 = vmatprep.subr.mxu0 0.0
        %2616 = vmatpush1.msra.mxu0 0.0
        %2617 = vmatprep.subr.mxu0 0.0
        %2618 = vmatpush1.msra.mxu0 0.0
        %2619 = vmatprep.subr.mxu0 0.0
        %2620 = vmatpush1.msra.mxu0 0.0
        %2621 = vmatprep.subr.mxu0 0.0
        %2622 = vmatpush1.msra.mxu0 0.0
        %2623 = vmatprep.subr.mxu0 0.0
        %2624 = vmatpush1.msra.mxu0 0.0
        %2625 = vmatprep.subr.mxu0 0.0
        %2626 = vmatpush1.msra.mxu0 0.0
        %2627 = vmatprep.subr.mxu0 0.0
        %2628 = vmatpush1.msra.mxu0 0.0
        %2629 = vmatprep.subr.mxu0 0.0
        %2630 = vmatpush1.msra.mxu0 0.0
        %2631 = vmatprep.subr.mxu0 0.0
        %2632 = vmatpush1.msra.mxu0 0.0
        %2633 = vmatprep.subr.mxu0 0.0
        %2634 = vmatpush1.msra.mxu0 0.0
        %2635 = vmatprep.subr.mxu0 0.0
        %2636 = vmatpush1.msra.mxu0 0.0
        %2637 = vmatprep.subr.mxu0 0.0
        %2638 = vmatpush1.msra.mxu0 0.0
        %2639 = vmatprep.subr.mxu0 0.0
        %2640 = vmatpush1.msra.mxu0 0.0
        %2641 = vmatprep.subr.mxu0 0.0
        %2642 = vmatpush1.msra.mxu0 0.0
        %2643 = vmatprep.subr.mxu0 0.0
        %2644 = vmatpush1.msra.mxu0 0.0
        %2645 = vmatprep.subr.mxu0 0.0
        %2646 = vmatpush1.msra.mxu0 0.0
        %2647 = vmatprep.subr.mxu0 0.0
        %2648 = vmatpush1.msra.mxu0 0.0
        %2649 = vmatprep.subr.mxu0 0.0
        %2650 = vmatpush1.msra.mxu0 0.0
        %2651 = vmatprep.subr.mxu0 0.0
        %2652 = vmatpush1.msra.mxu0 0.0
        %2653 = vmatprep.subr.mxu0 0.0
        %2654 = vmatpush1.msra.mxu0 0.0
        %2655 = vmatprep.subr.mxu0 0.0
        %2656 = vmatpush1.msra.mxu0 0.0
        %2657 = vmatprep.subr.mxu0 0.0
        %2658 = vmatpush1.msra.mxu0 0.0
        %2659 = vmatprep.subr.mxu0 0.0
        %2660 = vmatpush1.msra.mxu0 0.0
        %2661 = vmatprep.subr.mxu0 0.0
        %2662 = vmatpush1.msra.mxu0 0.0
        %2663 = vmatprep.subr.mxu0 0.0
        %2664 = vmatpush1.msra.mxu0 0.0
        %2665 = vmatprep.mubr.f32.mxu0 0.0
        %2666 = vmatmul.mubr.f32.gmra.mrb[0].mxu0 %v2528
        %v2667 = vpop.f32.mrb[0].mxu0
        %v2668 = vadd.f32 0.0, %v2667
        %v2669 = vpop.f32.mrb[0].mxu0
        %2670 = vdwg.mxu0
        %v2671 = vadd.f32 %v2510, %v2597
        %v2672 = vadd.f32 %v2511, %v2599
        %v2673 = vadd.f32 %v2512, %v2668
        %s2674 = scalar_lea.vmem %s4, 32
        %v2675 = vld [vmem:[%s2674] sm:$0xf]
        %2676 = vrot.lane.b32.xlu0 %v1400, 90
        %v2677 = vpop.permute.xlu0 %2676
        %2678 = vrot.lane.b32.xlu0 %v1401, 90
        %v2679 = vpop.permute.xlu0 %2678
        %2680 = vrot.lane.b32.xlu0 %v1402, 90
        %v2681 = vpop.permute.xlu0 %2680
        %vm2682 = vcmask 736256
        %v2683 = vsel %vm2682, %v2677, %v2679
        %v2684 = vsel %vm2682, %v2679, %v2681
        %v2689 = vsel %vm374, %v2675, 0
        %2691 = vmatprep.subr.mxu0 %v2684
        %2692 = vmatpush1.msra.mxu0 %v2683
        %2693 = vmatprep.subr.mxu0 0.0
        %2694 = vmatpush1.msra.mxu0 0.0
        %2695 = vmatprep.subr.mxu0 0.0
        %2696 = vmatpush1.msra.mxu0 0.0
        %2697 = vmatprep.subr.mxu0 0.0
        %2698 = vmatpush1.msra.mxu0 0.0
        %2699 = vmatprep.subr.mxu0 0.0
        %2700 = vmatpush1.msra.mxu0 0.0
        %2701 = vmatprep.subr.mxu0 0.0
        %2702 = vmatpush1.msra.mxu0 0.0
        %2703 = vmatprep.subr.mxu0 0.0
        %2704 = vmatpush1.msra.mxu0 0.0
        %2705 = vmatprep.subr.mxu0 0.0
        %2706 = vmatpush1.msra.mxu0 0.0
        %2707 = vmatprep.subr.mxu0 0.0
        %2708 = vmatpush1.msra.mxu0 0.0
        %2709 = vmatprep.subr.mxu0 0.0
        %2710 = vmatpush1.msra.mxu0 0.0
        %2711 = vmatprep.subr.mxu0 0.0
        %2712 = vmatpush1.msra.mxu0 0.0
        %2713 = vmatprep.subr.mxu0 0.0
        %2714 = vmatpush1.msra.mxu0 0.0
        %2715 = vmatprep.subr.mxu0 0.0
        %2716 = vmatpush1.msra.mxu0 0.0
        %2717 = vmatprep.subr.mxu0 0.0
        %2718 = vmatpush1.msra.mxu0 0.0
        %2719 = vmatprep.subr.mxu0 0.0
        %2720 = vmatpush1.msra.mxu0 0.0
        %2721 = vmatprep.subr.mxu0 0.0
        %2722 = vmatpush1.msra.mxu0 0.0
        %2723 = vmatprep.subr.mxu0 0.0
        %2724 = vmatpush1.msra.mxu0 0.0
        %2725 = vmatprep.subr.mxu0 0.0
        %2726 = vmatpush1.msra.mxu0 0.0
        %2727 = vmatprep.subr.mxu0 0.0
        %2728 = vmatpush1.msra.mxu0 0.0
        %2729 = vmatprep.subr.mxu0 0.0
        %2730 = vmatpush1.msra.mxu0 0.0
        %2731 = vmatprep.subr.mxu0 0.0
        %2732 = vmatpush1.msra.mxu0 0.0
        %2733 = vmatprep.subr.mxu0 0.0
        %2734 = vmatpush1.msra.mxu0 0.0
        %2735 = vmatprep.subr.mxu0 0.0
        %2736 = vmatpush1.msra.mxu0 0.0
        %2737 = vmatprep.subr.mxu0 0.0
        %2738 = vmatpush1.msra.mxu0 0.0
        %2739 = vmatprep.subr.mxu0 0.0
        %2740 = vmatpush1.msra.mxu0 0.0
        %2741 = vmatprep.subr.mxu0 0.0
        %2742 = vmatpush1.msra.mxu0 0.0
        %2743 = vmatprep.subr.mxu0 0.0
        %2744 = vmatpush1.msra.mxu0 0.0
        %2745 = vmatprep.subr.mxu0 0.0
        %2746 = vmatpush1.msra.mxu0 0.0
        %2747 = vmatprep.subr.mxu0 0.0
        %2748 = vmatpush1.msra.mxu0 0.0
        %2749 = vmatprep.subr.mxu0 0.0
        %2750 = vmatpush1.msra.mxu0 0.0
        %2751 = vmatprep.subr.mxu0 0.0
        %2752 = vmatpush1.msra.mxu0 0.0
        %2753 = vmatprep.subr.mxu0 0.0
        %2754 = vmatpush1.msra.mxu0 0.0
        %2755 = vmatprep.mubr.f32.mxu0 0.0
        %2756 = vmatmul.mubr.f32.gmra.mrb[0].mxu0 %v2689
        %v2757 = vpop.f32.mrb[0].mxu0
        %v2758 = vadd.f32 0.0, %v2757
        %v2759 = vpop.f32.mrb[0].mxu0
        %v2760 = vadd.f32 0.0, %v2759
        %2761 = vdwg.mxu0
        %2762 = vmatprep.subr.mxu0 0.0
        %2763 = vmatpush1.msra.mxu0 %v2681
        %2764 = vmatprep.subr.mxu0 0.0
        %2765 = vmatpush1.msra.mxu0 0.0
        %2766 = vmatprep.subr.mxu0 0.0
        %2767 = vmatpush1.msra.mxu0 0.0
        %2768 = vmatprep.subr.mxu0 0.0
        %2769 = vmatpush1.msra.mxu0 0.0
        %2770 = vmatprep.subr.mxu0 0.0
        %2771 = vmatpush1.msra.mxu0 0.0
        %2772 = vmatprep.subr.mxu0 0.0
        %2773 = vmatpush1.msra.mxu0 0.0
        %2774 = vmatprep.subr.mxu0 0.0
        %2775 = vmatpush1.msra.mxu0 0.0
        %2776 = vmatprep.subr.mxu0 0.0
        %2777 = vmatpush1.msra.mxu0 0.0
        %2778 = vmatprep.subr.mxu0 0.0
        %2779 = vmatpush1.msra.mxu0 0.0
        %2780 = vmatprep.subr.mxu0 0.0
        %2781 = vmatpush1.msra.mxu0 0.0
        %2782 = vmatprep.subr.mxu0 0.0
        %2783 = vmatpush1.msra.mxu0 0.0
        %2784 = vmatprep.subr.mxu0 0.0
        %2785 = vmatpush1.msra.mxu0 0.0
        %2786 = vmatprep.subr.mxu0 0.0
        %2787 = vmatpush1.msra.mxu0 0.0
        %2788 = vmatprep.subr.mxu0 0.0
        %2789 = vmatpush1.msra.mxu0 0.0
        %2790 = vmatprep.subr.mxu0 0.0
        %2791 = vmatpush1.msra.mxu0 0.0
        %2792 = vmatprep.subr.mxu0 0.0
        %2793 = vmatpush1.msra.mxu0 0.0
        %2794 = vmatprep.subr.mxu0 0.0
        %2795 = vmatpush1.msra.mxu0 0.0
        %2796 = vmatprep.subr.mxu0 0.0
        %2797 = vmatpush1.msra.mxu0 0.0
        %2798 = vmatprep.subr.mxu0 0.0
        %2799 = vmatpush1.msra.mxu0 0.0
        %2800 = vmatprep.subr.mxu0 0.0
        %2801 = vmatpush1.msra.mxu0 0.0
        %2802 = vmatprep.subr.mxu0 0.0
        %2803 = vmatpush1.msra.mxu0 0.0
        %2804 = vmatprep.subr.mxu0 0.0
        %2805 = vmatpush1.msra.mxu0 0.0
        %2806 = vmatprep.subr.mxu0 0.0
        %2807 = vmatpush1.msra.mxu0 0.0
        %2808 = vmatprep.subr.mxu0 0.0
        %2809 = vmatpush1.msra.mxu0 0.0
        %2810 = vmatprep.subr.mxu0 0.0
        %2811 = vmatpush1.msra.mxu0 0.0
        %2812 = vmatprep.subr.mxu0 0.0
        %2813 = vmatpush1.msra.mxu0 0.0
        %2814 = vmatprep.subr.mxu0 0.0
        %2815 = vmatpush1.msra.mxu0 0.0
        %2816 = vmatprep.subr.mxu0 0.0
        %2817 = vmatpush1.msra.mxu0 0.0
        %2818 = vmatprep.subr.mxu0 0.0
        %2819 = vmatpush1.msra.mxu0 0.0
        %2820 = vmatprep.subr.mxu0 0.0
        %2821 = vmatpush1.msra.mxu0 0.0
        %2822 = vmatprep.subr.mxu0 0.0
        %2823 = vmatpush1.msra.mxu0 0.0
        %2824 = vmatprep.subr.mxu0 0.0
        %2825 = vmatpush1.msra.mxu0 0.0
        %2826 = vmatprep.mubr.f32.mxu0 0.0
        %2827 = vmatmul.mubr.f32.gmra.mrb[0].mxu0 %v2689
        %v2828 = vpop.f32.mrb[0].mxu0
        %v2829 = vadd.f32 0.0, %v2828
        %v2830 = vpop.f32.mrb[0].mxu0
        %2831 = vdwg.mxu0
        %v2832 = vadd.f32 %v2671, %v2758
        %v2833 = vadd.f32 %v2672, %v2760
        %v2834 = vadd.f32 %v2673, %v2829
        %v2835 = vld [vmem:[%s5] sm:$0xf]
        %2837 = vset.pattern.permute.xlu0 0
        %2838 = vperm.xlu0 %2837, %v2835
        %v2839 = vpop.permute.xlu0 %2838
        %v2841 = vadd.f32 %v2832, %v2839
        %v2842 = vadd.f32 %v2833, %v2839
        %v2843 = vadd.f32 %v2834, %v2839
        %v2844 = vmax.f32 %v2841, 0.0
        %v2845 = vmax.f32 %v2842, 0.0
        %v2846 = vmax.f32 %v2843, 0.0
        %v2847 = vld [vmem:[#allocation10] sm:$0x7]
        %v2849 = vlaneseq
        %v2850 = vshrl.u32 %v2849, 7
        %v2851 = vsub.s32 0, %v2850
        %v2852 = vrot.slane %v2847, %v2851
        %v2853 = vlaneseq
        %v2854 = vshrl.u32 %v2853, 7
        %v2855 = vsub.s32 1, %v2854
        %v2856 = vrot.slane %v2847, %v2855
        %v2857 = vlaneseq
        %v2858 = vshrl.u32 %v2857, 7
        %v2859 = vsub.s32 2, %v2858
        %v2860 = vrot.slane %v2847, %v2859
        %v2864 = vmul.f32 %v2844, %v2852
        %v2865 = vmul.f32 %v2845, %v2856
        %v2866 = vmul.f32 %v2846, %v2860
        %vm2867 = vcmask 150528
        %2868 = vst.msk [vmem:[#allocation3] sm:$0xf] %vm2867, 0.0
        %vm2869 = vcmask 552328
        %2870 = vst.msk [vmem:[#allocation3 + $0x8] sm:$0xf] %vm2869, 0.0
        %v2874 = vcombine.low %v2864, %v2865
        %2875 = vrot.lane.b32.xlu0 %v2874, 19
        %v2876 = vpop.permute.xlu0 %2875
        %2877 = vrot.lane.b32.xlu0 %v2866, 19
        %v2878 = vpop.permute.xlu0 %2877
        %v2879 = vrot.slane %v2876, 4
        %v2880 = vsel %vm477, %v2879, %v2876
        %v2881 = vsel %vm477, %v2879, %v2878
        %vm2884 = vcmask 1043608
        %vm2885 = vcmask 1047556
        %vm2886 = vmor %vm2885, %vm2884
        %2887 = vst.msk [vmem:[#allocation3] sm:$0xff] %vm2886, %v2880
        %vm2888 = vcmask 396288
        %2889 = vst.msk [vmem:[#allocation3 + $0x8] sm:$0xf] %vm2888, %v2881
        %v2890 = vld [vmem:[%s6] sm:$0xf]
        %v2891 = vld [vmem:[#allocation3] sm:$0xff]
        %v2892 = vld [vmem:[#allocation3 + $0x8] sm:$0xf]
        %s2893 = scalar_lea.vmem %s6, 4
        %v2894 = vld [vmem:[%s2893] sm:$0xf]
        %v2897 = vcombine.high %v2891, %v2891
        %2898 = vrot.lane.b32.xlu0 %v2891, 127
        %v2899 = vpop.permute.xlu0 %2898
        %2900 = vrot.lane.b32.xlu0 %v2897, 127
        %v2901 = vpop.permute.xlu0 %2900
        %2902 = vrot.lane.b32.xlu0 %v2892, 127
        %v2903 = vpop.permute.xlu0 %2902
        %v2904 = vsel %vm1414, %v2899, %v2901
        %v2905 = vsel %vm1414, %v2901, %v2903
        %vm2906 = vcmask 31744
        %v2908 = vsel %vm2906, %v2894, 0
        %vm2910 = vcmask 1043456
        %v2911 = vsel %vm2910, %v2904, 0
        %v2913 = vsel %vm2910, %v2905, 0
        %v2915 = vsel %vm2910, %v2903, 0
        %2917 = vmatprep.subr.mxu0 %v2913
        %2918 = vmatpush1.msra.mxu0 %v2911
        %2919 = vmatprep.subr.mxu0 0.0
        %2920 = vmatpush1.msra.mxu0 0.0
        %2921 = vmatprep.subr.mxu0 0.0
        %2922 = vmatpush1.msra.mxu0 0.0
        %2923 = vmatprep.subr.mxu0 0.0
        %2924 = vmatpush1.msra.mxu0 0.0
        %2925 = vmatprep.subr.mxu0 0.0
        %2926 = vmatpush1.msra.mxu0 0.0
        %2927 = vmatprep.subr.mxu0 0.0
        %2928 = vmatpush1.msra.mxu0 0.0
        %2929 = vmatprep.subr.mxu0 0.0
        %2930 = vmatpush1.msra.mxu0 0.0
        %2931 = vmatprep.subr.mxu0 0.0
        %2932 = vmatpush1.msra.mxu0 0.0
        %2933 = vmatprep.subr.mxu0 0.0
        %2934 = vmatpush1.msra.mxu0 0.0
        %2935 = vmatprep.subr.mxu0 0.0
        %2936 = vmatpush1.msra.mxu0 0.0
        %2937 = vmatprep.subr.mxu0 0.0
        %2938 = vmatpush1.msra.mxu0 0.0
        %2939 = vmatprep.subr.mxu0 0.0
        %2940 = vmatpush1.msra.mxu0 0.0
        %2941 = vmatprep.subr.mxu0 0.0
        %2942 = vmatpush1.msra.mxu0 0.0
        %2943 = vmatprep.subr.mxu0 0.0
        %2944 = vmatpush1.msra.mxu0 0.0
        %2945 = vmatprep.subr.mxu0 0.0
        %2946 = vmatpush1.msra.mxu0 0.0
        %2947 = vmatprep.subr.mxu0 0.0
        %2948 = vmatpush1.msra.mxu0 0.0
        %2949 = vmatprep.subr.mxu0 0.0
        %2950 = vmatpush1.msra.mxu0 0.0
        %2951 = vmatprep.subr.mxu0 0.0
        %2952 = vmatpush1.msra.mxu0 0.0
        %2953 = vmatprep.subr.mxu0 0.0
        %2954 = vmatpush1.msra.mxu0 0.0
        %2955 = vmatprep.subr.mxu0 0.0
        %2956 = vmatpush1.msra.mxu0 0.0
        %2957 = vmatprep.subr.mxu0 0.0
        %2958 = vmatpush1.msra.mxu0 0.0
        %2959 = vmatprep.subr.mxu0 0.0
        %2960 = vmatpush1.msra.mxu0 0.0
        %2961 = vmatprep.subr.mxu0 0.0
        %2962 = vmatpush1.msra.mxu0 0.0
        %2963 = vmatprep.subr.mxu0 0.0
        %2964 = vmatpush1.msra.mxu0 0.0
        %2965 = vmatprep.subr.mxu0 0.0
        %2966 = vmatpush1.msra.mxu0 0.0
        %2967 = vmatprep.subr.mxu0 0.0
        %2968 = vmatpush1.msra.mxu0 0.0
        %2969 = vmatprep.subr.mxu0 0.0
        %2970 = vmatpush1.msra.mxu0 0.0
        %2971 = vmatprep.subr.mxu0 0.0
        %2972 = vmatpush1.msra.mxu0 0.0
        %2973 = vmatprep.subr.mxu0 0.0
        %2974 = vmatpush1.msra.mxu0 0.0
        %2975 = vmatprep.subr.mxu0 0.0
        %2976 = vmatpush1.msra.mxu0 0.0
        %2977 = vmatprep.subr.mxu0 0.0
        %2978 = vmatpush1.msra.mxu0 0.0
        %2979 = vmatprep.subr.mxu0 0.0
        %2980 = vmatpush1.msra.mxu0 0.0
        %2981 = vmatprep.mubr.f32.mxu0 0.0
        %2982 = vmatmul.mubr.f32.gmra.mrb[0].mxu0 %v2908
        %v2983 = vpop.f32.mrb[0].mxu0
        %v2984 = vadd.f32 0.0, %v2983
        %v2985 = vpop.f32.mrb[0].mxu0
        %v2986 = vadd.f32 0.0, %v2985
        %2987 = vdwg.mxu0
        %2988 = vmatprep.subr.mxu0 0.0
        %2989 = vmatpush1.msra.mxu0 %v2915
        %2990 = vmatprep.subr.mxu0 0.0
        %2991 = vmatpush1.msra.mxu0 0.0
        %2992 = vmatprep.subr.mxu0 0.0
        %2993 = vmatpush1.msra.mxu0 0.0
        %2994 = vmatprep.subr.mxu0 0.0
        %2995 = vmatpush1.msra.mxu0 0.0
        %2996 = vmatprep.subr.mxu0 0.0
        %2997 = vmatpush1.msra.mxu0 0.0
        %2998 = vmatprep.subr.mxu0 0.0
        %2999 = vmatpush1.msra.mxu0 0.0
        %3000 = vmatprep.subr.mxu0 0.0
        %3001 = vmatpush1.msra.mxu0 0.0
        %3002 = vmatprep.subr.mxu0 0.0
        %3003 = vmatpush1.msra.mxu0 0.0
        %3004 = vmatprep.subr.mxu0 0.0
        %3005 = vmatpush1.msra.mxu0 0.0
        %3006 = vmatprep.subr.mxu0 0.0
        %3007 = vmatpush1.msra.mxu0 0.0
        %3008 = vmatprep.subr.mxu0 0.0
        %3009 = vmatpush1.msra.mxu0 0.0
        %3010 = vmatprep.subr.mxu0 0.0
        %3011 = vmatpush1.msra.mxu0 0.0
        %3012 = vmatprep.subr.mxu0 0.0
        %3013 = vmatpush1.msra.mxu0 0.0
        %3014 = vmatprep.subr.mxu0 0.0
        %3015 = vmatpush1.msra.mxu0 0.0
        %3016 = vmatprep.subr.mxu0 0.0
        %3017 = vmatpush1.msra.mxu0 0.0
        %3018 = vmatprep.subr.mxu0 0.0
        %3019 = vmatpush1.msra.mxu0 0.0
        %3020 = vmatprep.subr.mxu0 0.0
        %3021 = vmatpush1.msra.mxu0 0.0
        %3022 = vmatprep.subr.mxu0 0.0
        %3023 = vmatpush1.msra.mxu0 0.0
        %3024 = vmatprep.subr.mxu0 0.0
        %3025 = vmatpush1.msra.mxu0 0.0
        %3026 = vmatprep.subr.mxu0 0.0
        %3027 = vmatpush1.msra.mxu0 0.0
        %3028 = vmatprep.subr.mxu0 0.0
        %3029 = vmatpush1.msra.mxu0 0.0
        %3030 = vmatprep.subr.mxu0 0.0
        %3031 = vmatpush1.msra.mxu0 0.0
        %3032 = vmatprep.subr.mxu0 0.0
        %3033 = vmatpush1.msra.mxu0 0.0
        %3034 = vmatprep.subr.mxu0 0.0
        %3035 = vmatpush1.msra.mxu0 0.0
        %3036 = vmatprep.subr.mxu0 0.0
        %3037 = vmatpush1.msra.mxu0 0.0
        %3038 = vmatprep.subr.mxu0 0.0
        %3039 = vmatpush1.msra.mxu0 0.0
        %3040 = vmatprep.subr.mxu0 0.0
        %3041 = vmatpush1.msra.mxu0 0.0
        %3042 = vmatprep.subr.mxu0 0.0
        %3043 = vmatpush1.msra.mxu0 0.0
        %3044 = vmatprep.subr.mxu0 0.0
        %3045 = vmatpush1.msra.mxu0 0.0
        %3046 = vmatprep.subr.mxu0 0.0
        %3047 = vmatpush1.msra.mxu0 0.0
        %3048 = vmatprep.subr.mxu0 0.0
        %3049 = vmatpush1.msra.mxu0 0.0
        %3050 = vmatprep.subr.mxu0 0.0
        %3051 = vmatpush1.msra.mxu0 0.0
        %3052 = vmatprep.mubr.f32.mxu0 0.0
        %3053 = vmatmul.mubr.f32.gmra.mrb[0].mxu0 %v2908
        %v3054 = vpop.f32.mrb[0].mxu0
        %v3055 = vadd.f32 0.0, %v3054
        %v3056 = vpop.f32.mrb[0].mxu0
        %3057 = vdwg.mxu0
        %v3059 = vsel %vm2906, %v2890, 0
        %v3061 = vsel %vm2910, %v2891, 0
        %v3063 = vsel %vm2910, %v2897, 0
        %v3065 = vsel %vm2910, %v2892, 0
        %3067 = vmatprep.subr.mxu0 %v3063
        %3068 = vmatpush1.msra.mxu0 %v3061
        %3069 = vmatprep.subr.mxu0 0.0
        %3070 = vmatpush1.msra.mxu0 0.0
        %3071 = vmatprep.subr.mxu0 0.0
        %3072 = vmatpush1.msra.mxu0 0.0
        %3073 = vmatprep.subr.mxu0 0.0
        %3074 = vmatpush1.msra.mxu0 0.0
        %3075 = vmatprep.subr.mxu0 0.0
        %3076 = vmatpush1.msra.mxu0 0.0
        %3077 = vmatprep.subr.mxu0 0.0
        %3078 = vmatpush1.msra.mxu0 0.0
        %3079 = vmatprep.subr.mxu0 0.0
        %3080 = vmatpush1.msra.mxu0 0.0
        %3081 = vmatprep.subr.mxu0 0.0
        %3082 = vmatpush1.msra.mxu0 0.0
        %3083 = vmatprep.subr.mxu0 0.0
        %3084 = vmatpush1.msra.mxu0 0.0
        %3085 = vmatprep.subr.mxu0 0.0
        %3086 = vmatpush1.msra.mxu0 0.0
        %3087 = vmatprep.subr.mxu0 0.0
        %3088 = vmatpush1.msra.mxu0 0.0
        %3089 = vmatprep.subr.mxu0 0.0
        %3090 = vmatpush1.msra.mxu0 0.0
        %3091 = vmatprep.subr.mxu0 0.0
        %3092 = vmatpush1.msra.mxu0 0.0
        %3093 = vmatprep.subr.mxu0 0.0
        %3094 = vmatpush1.msra.mxu0 0.0
        %3095 = vmatprep.subr.mxu0 0.0
        %3096 = vmatpush1.msra.mxu0 0.0
        %3097 = vmatprep.subr.mxu0 0.0
        %3098 = vmatpush1.msra.mxu0 0.0
        %3099 = vmatprep.subr.mxu0 0.0
        %3100 = vmatpush1.msra.mxu0 0.0
        %3101 = vmatprep.subr.mxu0 0.0
        %3102 = vmatpush1.msra.mxu0 0.0
        %3103 = vmatprep.subr.mxu0 0.0
        %3104 = vmatpush1.msra.mxu0 0.0
        %3105 = vmatprep.subr.mxu0 0.0
        %3106 = vmatpush1.msra.mxu0 0.0
        %3107 = vmatprep.subr.mxu0 0.0
        %3108 = vmatpush1.msra.mxu0 0.0
        %3109 = vmatprep.subr.mxu0 0.0
        %3110 = vmatpush1.msra.mxu0 0.0
        %3111 = vmatprep.subr.mxu0 0.0
        %3112 = vmatpush1.msra.mxu0 0.0
        %3113 = vmatprep.subr.mxu0 0.0
        %3114 = vmatpush1.msra.mxu0 0.0
        %3115 = vmatprep.subr.mxu0 0.0
        %3116 = vmatpush1.msra.mxu0 0.0
        %3117 = vmatprep.subr.mxu0 0.0
        %3118 = vmatpush1.msra.mxu0 0.0
        %3119 = vmatprep.subr.mxu0 0.0
        %3120 = vmatpush1.msra.mxu0 0.0
        %3121 = vmatprep.subr.mxu0 0.0
        %3122 = vmatpush1.msra.mxu0 0.0
        %3123 = vmatprep.subr.mxu0 0.0
        %3124 = vmatpush1.msra.mxu0 0.0
        %3125 = vmatprep.subr.mxu0 0.0
        %3126 = vmatpush1.msra.mxu0 0.0
        %3127 = vmatprep.subr.mxu0 0.0
        %3128 = vmatpush1.msra.mxu0 0.0
        %3129 = vmatprep.subr.mxu0 0.0
        %3130 = vmatpush1.msra.mxu0 0.0
        %3131 = vmatprep.mubr.f32.mxu0 0.0
        %3132 = vmatmul.mubr.f32.gmra.mrb[0].mxu0 %v3059
        %v3133 = vpop.f32.mrb[0].mxu0
        %v3134 = vadd.f32 %v2984, %v3133
        %v3135 = vpop.f32.mrb[0].mxu0
        %v3136 = vadd.f32 %v2986, %v3135
        %3137 = vdwg.mxu0
        %3138 = vmatprep.subr.mxu0 0.0
        %3139 = vmatpush1.msra.mxu0 %v3065
        %3140 = vmatprep.subr.mxu0 0.0
        %3141 = vmatpush1.msra.mxu0 0.0
        %3142 = vmatprep.subr.mxu0 0.0
        %3143 = vmatpush1.msra.mxu0 0.0
        %3144 = vmatprep.subr.mxu0 0.0
        %3145 = vmatpush1.msra.mxu0 0.0
        %3146 = vmatprep.subr.mxu0 0.0
        %3147 = vmatpush1.msra.mxu0 0.0
        %3148 = vmatprep.subr.mxu0 0.0
        %3149 = vmatpush1.msra.mxu0 0.0
        %3150 = vmatprep.subr.mxu0 0.0
        %3151 = vmatpush1.msra.mxu0 0.0
        %3152 = vmatprep.subr.mxu0 0.0
        %3153 = vmatpush1.msra.mxu0 0.0
        %3154 = vmatprep.subr.mxu0 0.0
        %3155 = vmatpush1.msra.mxu0 0.0
        %3156 = vmatprep.subr.mxu0 0.0
        %3157 = vmatpush1.msra.mxu0 0.0
        %3158 = vmatprep.subr.mxu0 0.0
        %3159 = vmatpush1.msra.mxu0 0.0
        %3160 = vmatprep.subr.mxu0 0.0
        %3161 = vmatpush1.msra.mxu0 0.0
        %3162 = vmatprep.subr.mxu0 0.0
        %3163 = vmatpush1.msra.mxu0 0.0
        %3164 = vmatprep.subr.mxu0 0.0
        %3165 = vmatpush1.msra.mxu0 0.0
        %3166 = vmatprep.subr.mxu0 0.0
        %3167 = vmatpush1.msra.mxu0 0.0
        %3168 = vmatprep.subr.mxu0 0.0
        %3169 = vmatpush1.msra.mxu0 0.0
        %3170 = vmatprep.subr.mxu0 0.0
        %3171 = vmatpush1.msra.mxu0 0.0
        %3172 = vmatprep.subr.mxu0 0.0
        %3173 = vmatpush1.msra.mxu0 0.0
        %3174 = vmatprep.subr.mxu0 0.0
        %3175 = vmatpush1.msra.mxu0 0.0
        %3176 = vmatprep.subr.mxu0 0.0
        %3177 = vmatpush1.msra.mxu0 0.0
        %3178 = vmatprep.subr.mxu0 0.0
        %3179 = vmatpush1.msra.mxu0 0.0
        %3180 = vmatprep.subr.mxu0 0.0
        %3181 = vmatpush1.msra.mxu0 0.0
        %3182 = vmatprep.subr.mxu0 0.0
        %3183 = vmatpush1.msra.mxu0 0.0
        %3184 = vmatprep.subr.mxu0 0.0
        %3185 = vmatpush1.msra.mxu0 0.0
        %3186 = vmatprep.subr.mxu0 0.0
        %3187 = vmatpush1.msra.mxu0 0.0
        %3188 = vmatprep.subr.mxu0 0.0
        %3189 = vmatpush1.msra.mxu0 0.0
        %3190 = vmatprep.subr.mxu0 0.0
        %3191 = vmatpush1.msra.mxu0 0.0
        %3192 = vmatprep.subr.mxu0 0.0
        %3193 = vmatpush1.msra.mxu0 0.0
        %3194 = vmatprep.subr.mxu0 0.0
        %3195 = vmatpush1.msra.mxu0 0.0
        %3196 = vmatprep.subr.mxu0 0.0
        %3197 = vmatpush1.msra.mxu0 0.0
        %3198 = vmatprep.subr.mxu0 0.0
        %3199 = vmatpush1.msra.mxu0 0.0
        %3200 = vmatprep.subr.mxu0 0.0
        %3201 = vmatpush1.msra.mxu0 0.0
        %3202 = vmatprep.mubr.f32.mxu0 0.0
        %3203 = vmatmul.mubr.f32.gmra.mrb[0].mxu0 %v3059
        %v3204 = vpop.f32.mrb[0].mxu0
        %v3205 = vadd.f32 %v3055, %v3204
        %v3206 = vpop.f32.mrb[0].mxu0
        %3207 = vdwg.mxu0
        %s3208 = scalar_lea.vmem %s6, 8
        %v3209 = vld [vmem:[%s3208] sm:$0xf]
        %v3210 = vld [vmem:[#allocation3] sm:$0xff]
        %v3211 = vld [vmem:[#allocation3 + $0x8] sm:$0xf]
        %v3214 = vcombine.high %v3210, %v3210
        %3215 = vrot.lane.b32.xlu0 %v3210, 126
        %v3216 = vpop.permute.xlu0 %3215
        %3217 = vrot.lane.b32.xlu0 %v3214, 126
        %v3218 = vpop.permute.xlu0 %3217
        %3219 = vrot.lane.b32.xlu0 %v3211, 126
        %v3220 = vpop.permute.xlu0 %3219
        %v3221 = vsel %vm1716, %v3216, %v3218
        %v3222 = vsel %vm1716, %v3218, %v3220
        %v3224 = vsel %vm2906, %v3209, 0
        %v3226 = vsel %vm2910, %v3221, 0
        %v3228 = vsel %vm2910, %v3222, 0
        %v3230 = vsel %vm2910, %v3220, 0
        %3232 = vmatprep.subr.mxu0 %v3228
        %3233 = vmatpush1.msra.mxu0 %v3226
        %3234 = vmatprep.subr.mxu0 0.0
        %3235 = vmatpush1.msra.mxu0 0.0
        %3236 = vmatprep.subr.mxu0 0.0
        %3237 = vmatpush1.msra.mxu0 0.0
        %3238 = vmatprep.subr.mxu0 0.0
        %3239 = vmatpush1.msra.mxu0 0.0
        %3240 = vmatprep.subr.mxu0 0.0
        %3241 = vmatpush1.msra.mxu0 0.0
        %3242 = vmatprep.subr.mxu0 0.0
        %3243 = vmatpush1.msra.mxu0 0.0
        %3244 = vmatprep.subr.mxu0 0.0
        %3245 = vmatpush1.msra.mxu0 0.0
        %3246 = vmatprep.subr.mxu0 0.0
        %3247 = vmatpush1.msra.mxu0 0.0
        %3248 = vmatprep.subr.mxu0 0.0
        %3249 = vmatpush1.msra.mxu0 0.0
        %3250 = vmatprep.subr.mxu0 0.0
        %3251 = vmatpush1.msra.mxu0 0.0
        %3252 = vmatprep.subr.mxu0 0.0
        %3253 = vmatpush1.msra.mxu0 0.0
        %3254 = vmatprep.subr.mxu0 0.0
        %3255 = vmatpush1.msra.mxu0 0.0
        %3256 = vmatprep.subr.mxu0 0.0
        %3257 = vmatpush1.msra.mxu0 0.0
        %3258 = vmatprep.subr.mxu0 0.0
        %3259 = vmatpush1.msra.mxu0 0.0
        %3260 = vmatprep.subr.mxu0 0.0
        %3261 = vmatpush1.msra.mxu0 0.0
        %3262 = vmatprep.subr.mxu0 0.0
        %3263 = vmatpush1.msra.mxu0 0.0
        %3264 = vmatprep.subr.mxu0 0.0
        %3265 = vmatpush1.msra.mxu0 0.0
        %3266 = vmatprep.subr.mxu0 0.0
        %3267 = vmatpush1.msra.mxu0 0.0
        %3268 = vmatprep.subr.mxu0 0.0
        %3269 = vmatpush1.msra.mxu0 0.0
        %3270 = vmatprep.subr.mxu0 0.0
        %3271 = vmatpush1.msra.mxu0 0.0
        %3272 = vmatprep.subr.mxu0 0.0
        %3273 = vmatpush1.msra.mxu0 0.0
        %3274 = vmatprep.subr.mxu0 0.0
        %3275 = vmatpush1.msra.mxu0 0.0
        %3276 = vmatprep.subr.mxu0 0.0
        %3277 = vmatpush1.msra.mxu0 0.0
        %3278 = vmatprep.subr.mxu0 0.0
        %3279 = vmatpush1.msra.mxu0 0.0
        %3280 = vmatprep.subr.mxu0 0.0
        %3281 = vmatpush1.msra.mxu0 0.0
        %3282 = vmatprep.subr.mxu0 0.0
        %3283 = vmatpush1.msra.mxu0 0.0
        %3284 = vmatprep.subr.mxu0 0.0
        %3285 = vmatpush1.msra.mxu0 0.0
        %3286 = vmatprep.subr.mxu0 0.0
        %3287 = vmatpush1.msra.mxu0 0.0
        %3288 = vmatprep.subr.mxu0 0.0
        %3289 = vmatpush1.msra.mxu0 0.0
        %3290 = vmatprep.subr.mxu0 0.0
        %3291 = vmatpush1.msra.mxu0 0.0
        %3292 = vmatprep.subr.mxu0 0.0
        %3293 = vmatpush1.msra.mxu0 0.0
        %3294 = vmatprep.subr.mxu0 0.0
        %3295 = vmatpush1.msra.mxu0 0.0
        %3296 = vmatprep.mubr.f32.mxu0 0.0
        %3297 = vmatmul.mubr.f32.gmra.mrb[0].mxu0 %v3224
        %v3298 = vpop.f32.mrb[0].mxu0
        %v3299 = vadd.f32 0.0, %v3298
        %v3300 = vpop.f32.mrb[0].mxu0
        %v3301 = vadd.f32 0.0, %v3300
        %3302 = vdwg.mxu0
        %3303 = vmatprep.subr.mxu0 0.0
        %3304 = vmatpush1.msra.mxu0 %v3230
        %3305 = vmatprep.subr.mxu0 0.0
        %3306 = vmatpush1.msra.mxu0 0.0
        %3307 = vmatprep.subr.mxu0 0.0
        %3308 = vmatpush1.msra.mxu0 0.0
        %3309 = vmatprep.subr.mxu0 0.0
        %3310 = vmatpush1.msra.mxu0 0.0
        %3311 = vmatprep.subr.mxu0 0.0
        %3312 = vmatpush1.msra.mxu0 0.0
        %3313 = vmatprep.subr.mxu0 0.0
        %3314 = vmatpush1.msra.mxu0 0.0
        %3315 = vmatprep.subr.mxu0 0.0
        %3316 = vmatpush1.msra.mxu0 0.0
        %3317 = vmatprep.subr.mxu0 0.0
        %3318 = vmatpush1.msra.mxu0 0.0
        %3319 = vmatprep.subr.mxu0 0.0
        %3320 = vmatpush1.msra.mxu0 0.0
        %3321 = vmatprep.subr.mxu0 0.0
        %3322 = vmatpush1.msra.mxu0 0.0
        %3323 = vmatprep.subr.mxu0 0.0
        %3324 = vmatpush1.msra.mxu0 0.0
        %3325 = vmatprep.subr.mxu0 0.0
        %3326 = vmatpush1.msra.mxu0 0.0
        %3327 = vmatprep.subr.mxu0 0.0
        %3328 = vmatpush1.msra.mxu0 0.0
        %3329 = vmatprep.subr.mxu0 0.0
        %3330 = vmatpush1.msra.mxu0 0.0
        %3331 = vmatprep.subr.mxu0 0.0
        %3332 = vmatpush1.msra.mxu0 0.0
        %3333 = vmatprep.subr.mxu0 0.0
        %3334 = vmatpush1.msra.mxu0 0.0
        %3335 = vmatprep.subr.mxu0 0.0
        %3336 = vmatpush1.msra.mxu0 0.0
        %3337 = vmatprep.subr.mxu0 0.0
        %3338 = vmatpush1.msra.mxu0 0.0
        %3339 = vmatprep.subr.mxu0 0.0
        %3340 = vmatpush1.msra.mxu0 0.0
        %3341 = vmatprep.subr.mxu0 0.0
        %3342 = vmatpush1.msra.mxu0 0.0
        %3343 = vmatprep.subr.mxu0 0.0
        %3344 = vmatpush1.msra.mxu0 0.0
        %3345 = vmatprep.subr.mxu0 0.0
        %3346 = vmatpush1.msra.mxu0 0.0
        %3347 = vmatprep.subr.mxu0 0.0
        %3348 = vmatpush1.msra.mxu0 0.0
        %3349 = vmatprep.subr.mxu0 0.0
        %3350 = vmatpush1.msra.mxu0 0.0
        %3351 = vmatprep.subr.mxu0 0.0
        %3352 = vmatpush1.msra.mxu0 0.0
        %3353 = vmatprep.subr.mxu0 0.0
        %3354 = vmatpush1.msra.mxu0 0.0
        %3355 = vmatprep.subr.mxu0 0.0
        %3356 = vmatpush1.msra.mxu0 0.0
        %3357 = vmatprep.subr.mxu0 0.0
        %3358 = vmatpush1.msra.mxu0 0.0
        %3359 = vmatprep.subr.mxu0 0.0
        %3360 = vmatpush1.msra.mxu0 0.0
        %3361 = vmatprep.subr.mxu0 0.0
        %3362 = vmatpush1.msra.mxu0 0.0
        %3363 = vmatprep.subr.mxu0 0.0
        %3364 = vmatpush1.msra.mxu0 0.0
        %3365 = vmatprep.subr.mxu0 0.0
        %3366 = vmatpush1.msra.mxu0 0.0
        %3367 = vmatprep.mubr.f32.mxu0 0.0
        %3368 = vmatmul.mubr.f32.gmra.mrb[0].mxu0 %v3224
        %v3369 = vpop.f32.mrb[0].mxu0
        %v3370 = vadd.f32 0.0, %v3369
        %v3371 = vpop.f32.mrb[0].mxu0
        %3372 = vdwg.mxu0
        %v3373 = vadd.f32 %v3134, %v3299
        %v3374 = vadd.f32 %v3136, %v3301
        %v3375 = vadd.f32 %v3205, %v3370
        %s3376 = scalar_lea.vmem %s6, 12
        %v3377 = vld [vmem:[%s3376] sm:$0xf]
        %v3378 = vld [vmem:[#allocation3] sm:$0xff]
        %v3379 = vld [vmem:[#allocation3 + $0x8] sm:$0xf]
        %v3382 = vcombine.high %v3378, %v3378
        %3383 = vrot.lane.b32.xlu0 %v3378, 110
        %v3384 = vpop.permute.xlu0 %3383
        %3385 = vrot.lane.b32.xlu0 %v3382, 110
        %v3386 = vpop.permute.xlu0 %3385
        %3387 = vrot.lane.b32.xlu0 %v3379, 110
        %v3388 = vpop.permute.xlu0 %3387
        %v3389 = vsel %vm1877, %v3384, %v3386
        %v3390 = vsel %vm1877, %v3386, %v3388
        %v3392 = vsel %vm2906, %v3377, 0
        %v3394 = vsel %vm2910, %v3389, 0
        %v3396 = vsel %vm2910, %v3390, 0
        %v3398 = vsel %vm2910, %v3388, 0
        %3400 = vmatprep.subr.mxu0 %v3396
        %3401 = vmatpush1.msra.mxu0 %v3394
        %3402 = vmatprep.subr.mxu0 0.0
        %3403 = vmatpush1.msra.mxu0 0.0
        %3404 = vmatprep.subr.mxu0 0.0
        %3405 = vmatpush1.msra.mxu0 0.0
        %3406 = vmatprep.subr.mxu0 0.0
        %3407 = vmatpush1.msra.mxu0 0.0
        %3408 = vmatprep.subr.mxu0 0.0
        %3409 = vmatpush1.msra.mxu0 0.0
        %3410 = vmatprep.subr.mxu0 0.0
        %3411 = vmatpush1.msra.mxu0 0.0
        %3412 = vmatprep.subr.mxu0 0.0
        %3413 = vmatpush1.msra.mxu0 0.0
        %3414 = vmatprep.subr.mxu0 0.0
        %3415 = vmatpush1.msra.mxu0 0.0
        %3416 = vmatprep.subr.mxu0 0.0
        %3417 = vmatpush1.msra.mxu0 0.0
        %3418 = vmatprep.subr.mxu0 0.0
        %3419 = vmatpush1.msra.mxu0 0.0
        %3420 = vmatprep.subr.mxu0 0.0
        %3421 = vmatpush1.msra.mxu0 0.0
        %3422 = vmatprep.subr.mxu0 0.0
        %3423 = vmatpush1.msra.mxu0 0.0
        %3424 = vmatprep.subr.mxu0 0.0
        %3425 = vmatpush1.msra.mxu0 0.0
        %3426 = vmatprep.subr.mxu0 0.0
        %3427 = vmatpush1.msra.mxu0 0.0
        %3428 = vmatprep.subr.mxu0 0.0
        %3429 = vmatpush1.msra.mxu0 0.0
        %3430 = vmatprep.subr.mxu0 0.0
        %3431 = vmatpush1.msra.mxu0 0.0
        %3432 = vmatprep.subr.mxu0 0.0
        %3433 = vmatpush1.msra.mxu0 0.0
        %3434 = vmatprep.subr.mxu0 0.0
        %3435 = vmatpush1.msra.mxu0 0.0
        %3436 = vmatprep.subr.mxu0 0.0
        %3437 = vmatpush1.msra.mxu0 0.0
        %3438 = vmatprep.subr.mxu0 0.0
        %3439 = vmatpush1.msra.mxu0 0.0
        %3440 = vmatprep.subr.mxu0 0.0
        %3441 = vmatpush1.msra.mxu0 0.0
        %3442 = vmatprep.subr.mxu0 0.0
        %3443 = vmatpush1.msra.mxu0 0.0
        %3444 = vmatprep.subr.mxu0 0.0
        %3445 = vmatpush1.msra.mxu0 0.0
        %3446 = vmatprep.subr.mxu0 0.0
        %3447 = vmatpush1.msra.mxu0 0.0
        %3448 = vmatprep.subr.mxu0 0.0
        %3449 = vmatpush1.msra.mxu0 0.0
        %3450 = vmatprep.subr.mxu0 0.0
        %3451 = vmatpush1.msra.mxu0 0.0
        %3452 = vmatprep.subr.mxu0 0.0
        %3453 = vmatpush1.msra.mxu0 0.0
        %3454 = vmatprep.subr.mxu0 0.0
        %3455 = vmatpush1.msra.mxu0 0.0
        %3456 = vmatprep.subr.mxu0 0.0
        %3457 = vmatpush1.msra.mxu0 0.0
        %3458 = vmatprep.subr.mxu0 0.0
        %3459 = vmatpush1.msra.mxu0 0.0
        %3460 = vmatprep.subr.mxu0 0.0
        %3461 = vmatpush1.msra.mxu0 0.0
        %3462 = vmatprep.subr.mxu0 0.0
        %3463 = vmatpush1.msra.mxu0 0.0
        %3464 = vmatprep.mubr.f32.mxu0 0.0
        %3465 = vmatmul.mubr.f32.gmra.mrb[0].mxu0 %v3392
        %v3466 = vpop.f32.mrb[0].mxu0
        %v3467 = vadd.f32 0.0, %v3466
        %v3468 = vpop.f32.mrb[0].mxu0
        %v3469 = vadd.f32 0.0, %v3468
        %3470 = vdwg.mxu0
        %3471 = vmatprep.subr.mxu0 0.0
        %3472 = vmatpush1.msra.mxu0 %v3398
        %3473 = vmatprep.subr.mxu0 0.0
        %3474 = vmatpush1.msra.mxu0 0.0
        %3475 = vmatprep.subr.mxu0 0.0
        %3476 = vmatpush1.msra.mxu0 0.0
        %3477 = vmatprep.subr.mxu0 0.0
        %3478 = vmatpush1.msra.mxu0 0.0
        %3479 = vmatprep.subr.mxu0 0.0
        %3480 = vmatpush1.msra.mxu0 0.0
        %3481 = vmatprep.subr.mxu0 0.0
        %3482 = vmatpush1.msra.mxu0 0.0
        %3483 = vmatprep.subr.mxu0 0.0
        %3484 = vmatpush1.msra.mxu0 0.0
        %3485 = vmatprep.subr.mxu0 0.0
        %3486 = vmatpush1.msra.mxu0 0.0
        %3487 = vmatprep.subr.mxu0 0.0
        %3488 = vmatpush1.msra.mxu0 0.0
        %3489 = vmatprep.subr.mxu0 0.0
        %3490 = vmatpush1.msra.mxu0 0.0
        %3491 = vmatprep.subr.mxu0 0.0
        %3492 = vmatpush1.msra.mxu0 0.0
        %3493 = vmatprep.subr.mxu0 0.0
        %3494 = vmatpush1.msra.mxu0 0.0
        %3495 = vmatprep.subr.mxu0 0.0
        %3496 = vmatpush1.msra.mxu0 0.0
        %3497 = vmatprep.subr.mxu0 0.0
        %3498 = vmatpush1.msra.mxu0 0.0
        %3499 = vmatprep.subr.mxu0 0.0
        %3500 = vmatpush1.msra.mxu0 0.0
        %3501 = vmatprep.subr.mxu0 0.0
        %3502 = vmatpush1.msra.mxu0 0.0
        %3503 = vmatprep.subr.mxu0 0.0
        %3504 = vmatpush1.msra.mxu0 0.0
        %3505 = vmatprep.subr.mxu0 0.0
        %3506 = vmatpush1.msra.mxu0 0.0
        %3507 = vmatprep.subr.mxu0 0.0
        %3508 = vmatpush1.msra.mxu0 0.0
        %3509 = vmatprep.subr.mxu0 0.0
        %3510 = vmatpush1.msra.mxu0 0.0
        %3511 = vmatprep.subr.mxu0 0.0
        %3512 = vmatpush1.msra.mxu0 0.0
        %3513 = vmatprep.subr.mxu0 0.0
        %3514 = vmatpush1.msra.mxu0 0.0
        %3515 = vmatprep.subr.mxu0 0.0
        %3516 = vmatpush1.msra.mxu0 0.0
        %3517 = vmatprep.subr.mxu0 0.0
        %3518 = vmatpush1.msra.mxu0 0.0
        %3519 = vmatprep.subr.mxu0 0.0
        %3520 = vmatpush1.msra.mxu0 0.0
        %3521 = vmatprep.subr.mxu0 0.0
        %3522 = vmatpush1.msra.mxu0 0.0
        %3523 = vmatprep.subr.mxu0 0.0
        %3524 = vmatpush1.msra.mxu0 0.0
        %3525 = vmatprep.subr.mxu0 0.0
        %3526 = vmatpush1.msra.mxu0 0.0
        %3527 = vmatprep.subr.mxu0 0.0
        %3528 = vmatpush1.msra.mxu0 0.0
        %3529 = vmatprep.subr.mxu0 0.0
        %3530 = vmatpush1.msra.mxu0 0.0
        %3531 = vmatprep.subr.mxu0 0.0
        %3532 = vmatpush1.msra.mxu0 0.0
        %3533 = vmatprep.subr.mxu0 0.0
        %3534 = vmatpush1.msra.mxu0 0.0
        %3535 = vmatprep.mubr.f32.mxu0 0.0
        %3536 = vmatmul.mubr.f32.gmra.mrb[0].mxu0 %v3392
        %v3537 = vpop.f32.mrb[0].mxu0
        %v3538 = vadd.f32 0.0, %v3537
        %v3539 = vpop.f32.mrb[0].mxu0
        %3540 = vdwg.mxu0
        %v3541 = vadd.f32 %v3373, %v3467
        %v3542 = vadd.f32 %v3374, %v3469
        %v3543 = vadd.f32 %v3375, %v3538
        %s3544 = scalar_lea.vmem %s6, 16
        %v3545 = vld [vmem:[%s3544] sm:$0xf]
        %v3546 = vld [vmem:[#allocation3] sm:$0xff]
        %v3547 = vld [vmem:[#allocation3 + $0x8] sm:$0xf]
        %v3550 = vcombine.high %v3546, %v3546
        %3551 = vrot.lane.b32.xlu0 %v3546, 109
        %v3552 = vpop.permute.xlu0 %3551
        %3553 = vrot.lane.b32.xlu0 %v3550, 109
        %v3554 = vpop.permute.xlu0 %3553
        %3555 = vrot.lane.b32.xlu0 %v3547, 109
        %v3556 = vpop.permute.xlu0 %3555
        %v3557 = vsel %vm2038, %v3552, %v3554
        %v3558 = vsel %vm2038, %v3554, %v3556
        %v3560 = vsel %vm2906, %v3545, 0
        %v3562 = vsel %vm2910, %v3557, 0
        %v3564 = vsel %vm2910, %v3558, 0
        %v3566 = vsel %vm2910, %v3556, 0
        %3568 = vmatprep.subr.mxu0 %v3564
        %3569 = vmatpush1.msra.mxu0 %v3562
        %3570 = vmatprep.subr.mxu0 0.0
        %3571 = vmatpush1.msra.mxu0 0.0
        %3572 = vmatprep.subr.mxu0 0.0
        %3573 = vmatpush1.msra.mxu0 0.0
        %3574 = vmatprep.subr.mxu0 0.0
        %3575 = vmatpush1.msra.mxu0 0.0
        %3576 = vmatprep.subr.mxu0 0.0
        %3577 = vmatpush1.msra.mxu0 0.0
        %3578 = vmatprep.subr.mxu0 0.0
        %3579 = vmatpush1.msra.mxu0 0.0
        %3580 = vmatprep.subr.mxu0 0.0
        %3581 = vmatpush1.msra.mxu0 0.0
        %3582 = vmatprep.subr.mxu0 0.0
        %3583 = vmatpush1.msra.mxu0 0.0
        %3584 = vmatprep.subr.mxu0 0.0
        %3585 = vmatpush1.msra.mxu0 0.0
        %3586 = vmatprep.subr.mxu0 0.0
        %3587 = vmatpush1.msra.mxu0 0.0
        %3588 = vmatprep.subr.mxu0 0.0
        %3589 = vmatpush1.msra.mxu0 0.0
        %3590 = vmatprep.subr.mxu0 0.0
        %3591 = vmatpush1.msra.mxu0 0.0
        %3592 = vmatprep.subr.mxu0 0.0
        %3593 = vmatpush1.msra.mxu0 0.0
        %3594 = vmatprep.subr.mxu0 0.0
        %3595 = vmatpush1.msra.mxu0 0.0
        %3596 = vmatprep.subr.mxu0 0.0
        %3597 = vmatpush1.msra.mxu0 0.0
        %3598 = vmatprep.subr.mxu0 0.0
        %3599 = vmatpush1.msra.mxu0 0.0
        %3600 = vmatprep.subr.mxu0 0.0
        %3601 = vmatpush1.msra.mxu0 0.0
        %3602 = vmatprep.subr.mxu0 0.0
        %3603 = vmatpush1.msra.mxu0 0.0
        %3604 = vmatprep.subr.mxu0 0.0
        %3605 = vmatpush1.msra.mxu0 0.0
        %3606 = vmatprep.subr.mxu0 0.0
        %3607 = vmatpush1.msra.mxu0 0.0
        %3608 = vmatprep.subr.mxu0 0.0
        %3609 = vmatpush1.msra.mxu0 0.0
        %3610 = vmatprep.subr.mxu0 0.0
        %3611 = vmatpush1.msra.mxu0 0.0
        %3612 = vmatprep.subr.mxu0 0.0
        %3613 = vmatpush1.msra.mxu0 0.0
        %3614 = vmatprep.subr.mxu0 0.0
        %3615 = vmatpush1.msra.mxu0 0.0
        %3616 = vmatprep.subr.mxu0 0.0
        %3617 = vmatpush1.msra.mxu0 0.0
        %3618 = vmatprep.subr.mxu0 0.0
        %3619 = vmatpush1.msra.mxu0 0.0
        %3620 = vmatprep.subr.mxu0 0.0
        %3621 = vmatpush1.msra.mxu0 0.0
        %3622 = vmatprep.subr.mxu0 0.0
        %3623 = vmatpush1.msra.mxu0 0.0
        %3624 = vmatprep.subr.mxu0 0.0
        %3625 = vmatpush1.msra.mxu0 0.0
        %3626 = vmatprep.subr.mxu0 0.0
        %3627 = vmatpush1.msra.mxu0 0.0
        %3628 = vmatprep.subr.mxu0 0.0
        %3629 = vmatpush1.msra.mxu0 0.0
        %3630 = vmatprep.subr.mxu0 0.0
        %3631 = vmatpush1.msra.mxu0 0.0
        %3632 = vmatprep.mubr.f32.mxu0 0.0
        %3633 = vmatmul.mubr.f32.gmra.mrb[0].mxu0 %v3560
        %v3634 = vpop.f32.mrb[0].mxu0
        %v3635 = vadd.f32 0.0, %v3634
        %v3636 = vpop.f32.mrb[0].mxu0
        %v3637 = vadd.f32 0.0, %v3636
        %3638 = vdwg.mxu0
        %3639 = vmatprep.subr.mxu0 0.0
        %3640 = vmatpush1.msra.mxu0 %v3566
        %3641 = vmatprep.subr.mxu0 0.0
        %3642 = vmatpush1.msra.mxu0 0.0
        %3643 = vmatprep.subr.mxu0 0.0
        %3644 = vmatpush1.msra.mxu0 0.0
        %3645 = vmatprep.subr.mxu0 0.0
        %3646 = vmatpush1.msra.mxu0 0.0
        %3647 = vmatprep.subr.mxu0 0.0
        %3648 = vmatpush1.msra.mxu0 0.0
        %3649 = vmatprep.subr.mxu0 0.0
        %3650 = vmatpush1.msra.mxu0 0.0
        %3651 = vmatprep.subr.mxu0 0.0
        %3652 = vmatpush1.msra.mxu0 0.0
        %3653 = vmatprep.subr.mxu0 0.0
        %3654 = vmatpush1.msra.mxu0 0.0
        %3655 = vmatprep.subr.mxu0 0.0
        %3656 = vmatpush1.msra.mxu0 0.0
        %3657 = vmatprep.subr.mxu0 0.0
        %3658 = vmatpush1.msra.mxu0 0.0
        %3659 = vmatprep.subr.mxu0 0.0
        %3660 = vmatpush1.msra.mxu0 0.0
        %3661 = vmatprep.subr.mxu0 0.0
        %3662 = vmatpush1.msra.mxu0 0.0
        %3663 = vmatprep.subr.mxu0 0.0
        %3664 = vmatpush1.msra.mxu0 0.0
        %3665 = vmatprep.subr.mxu0 0.0
        %3666 = vmatpush1.msra.mxu0 0.0
        %3667 = vmatprep.subr.mxu0 0.0
        %3668 = vmatpush1.msra.mxu0 0.0
        %3669 = vmatprep.subr.mxu0 0.0
        %3670 = vmatpush1.msra.mxu0 0.0
        %3671 = vmatprep.subr.mxu0 0.0
        %3672 = vmatpush1.msra.mxu0 0.0
        %3673 = vmatprep.subr.mxu0 0.0
        %3674 = vmatpush1.msra.mxu0 0.0
        %3675 = vmatprep.subr.mxu0 0.0
        %3676 = vmatpush1.msra.mxu0 0.0
        %3677 = vmatprep.subr.mxu0 0.0
        %3678 = vmatpush1.msra.mxu0 0.0
        %3679 = vmatprep.subr.mxu0 0.0
        %3680 = vmatpush1.msra.mxu0 0.0
        %3681 = vmatprep.subr.mxu0 0.0
        %3682 = vmatpush1.msra.mxu0 0.0
        %3683 = vmatprep.subr.mxu0 0.0
        %3684 = vmatpush1.msra.mxu0 0.0
        %3685 = vmatprep.subr.mxu0 0.0
        %3686 = vmatpush1.msra.mxu0 0.0
        %3687 = vmatprep.subr.mxu0 0.0
        %3688 = vmatpush1.msra.mxu0 0.0
        %3689 = vmatprep.subr.mxu0 0.0
        %3690 = vmatpush1.msra.mxu0 0.0
        %3691 = vmatprep.subr.mxu0 0.0
        %3692 = vmatpush1.msra.mxu0 0.0
        %3693 = vmatprep.subr.mxu0 0.0
        %3694 = vmatpush1.msra.mxu0 0.0
        %3695 = vmatprep.subr.mxu0 0.0
        %3696 = vmatpush1.msra.mxu0 0.0
        %3697 = vmatprep.subr.mxu0 0.0
        %3698 = vmatpush1.msra.mxu0 0.0
        %3699 = vmatprep.subr.mxu0 0.0
        %3700 = vmatpush1.msra.mxu0 0.0
        %3701 = vmatprep.subr.mxu0 0.0
        %3702 = vmatpush1.msra.mxu0 0.0
        %3703 = vmatprep.mubr.f32.mxu0 0.0
        %3704 = vmatmul.mubr.f32.gmra.mrb[0].mxu0 %v3560
        %v3705 = vpop.f32.mrb[0].mxu0
        %v3706 = vadd.f32 0.0, %v3705
        %v3707 = vpop.f32.mrb[0].mxu0
        %3708 = vdwg.mxu0
        %v3709 = vadd.f32 %v3541, %v3635
        %v3710 = vadd.f32 %v3542, %v3637
        %v3711 = vadd.f32 %v3543, %v3706
        %s3712 = scalar_lea.vmem %s6, 20
        %v3713 = vld [vmem:[%s3712] sm:$0xf]
        %v3714 = vld [vmem:[#allocation3] sm:$0xff]
        %v3715 = vld [vmem:[#allocation3 + $0x8] sm:$0xf]
        %v3718 = vcombine.high %v3714, %v3714
        %3719 = vrot.lane.b32.xlu0 %v3714, 108
        %v3720 = vpop.permute.xlu0 %3719
        %3721 = vrot.lane.b32.xlu0 %v3718, 108
        %v3722 = vpop.permute.xlu0 %3721
        %3723 = vrot.lane.b32.xlu0 %v3715, 108
        %v3724 = vpop.permute.xlu0 %3723
        %v3725 = vsel %vm2199, %v3720, %v3722
        %v3726 = vsel %vm2199, %v3722, %v3724
        %v3728 = vsel %vm2906, %v3713, 0
        %v3730 = vsel %vm2910, %v3725, 0
        %v3732 = vsel %vm2910, %v3726, 0
        %v3734 = vsel %vm2910, %v3724, 0
        %3736 = vmatprep.subr.mxu0 %v3732
        %3737 = vmatpush1.msra.mxu0 %v3730
        %3738 = vmatprep.subr.mxu0 0.0
        %3739 = vmatpush1.msra.mxu0 0.0
        %3740 = vmatprep.subr.mxu0 0.0
        %3741 = vmatpush1.msra.mxu0 0.0
        %3742 = vmatprep.subr.mxu0 0.0
        %3743 = vmatpush1.msra.mxu0 0.0
        %3744 = vmatprep.subr.mxu0 0.0
        %3745 = vmatpush1.msra.mxu0 0.0
        %3746 = vmatprep.subr.mxu0 0.0
        %3747 = vmatpush1.msra.mxu0 0.0
        %3748 = vmatprep.subr.mxu0 0.0
        %3749 = vmatpush1.msra.mxu0 0.0
        %3750 = vmatprep.subr.mxu0 0.0
        %3751 = vmatpush1.msra.mxu0 0.0
        %3752 = vmatprep.subr.mxu0 0.0
        %3753 = vmatpush1.msra.mxu0 0.0
        %3754 = vmatprep.subr.mxu0 0.0
        %3755 = vmatpush1.msra.mxu0 0.0
        %3756 = vmatprep.subr.mxu0 0.0
        %3757 = vmatpush1.msra.mxu0 0.0
        %3758 = vmatprep.subr.mxu0 0.0
        %3759 = vmatpush1.msra.mxu0 0.0
        %3760 = vmatprep.subr.mxu0 0.0
        %3761 = vmatpush1.msra.mxu0 0.0
        %3762 = vmatprep.subr.mxu0 0.0
        %3763 = vmatpush1.msra.mxu0 0.0
        %3764 = vmatprep.subr.mxu0 0.0
        %3765 = vmatpush1.msra.mxu0 0.0
        %3766 = vmatprep.subr.mxu0 0.0
        %3767 = vmatpush1.msra.mxu0 0.0
        %3768 = vmatprep.subr.mxu0 0.0
        %3769 = vmatpush1.msra.mxu0 0.0
        %3770 = vmatprep.subr.mxu0 0.0
        %3771 = vmatpush1.msra.mxu0 0.0
        %3772 = vmatprep.subr.mxu0 0.0
        %3773 = vmatpush1.msra.mxu0 0.0
        %3774 = vmatprep.subr.mxu0 0.0
        %3775 = vmatpush1.msra.mxu0 0.0
        %3776 = vmatprep.subr.mxu0 0.0
        %3777 = vmatpush1.msra.mxu0 0.0
        %3778 = vmatprep.subr.mxu0 0.0
        %3779 = vmatpush1.msra.mxu0 0.0
        %3780 = vmatprep.subr.mxu0 0.0
        %3781 = vmatpush1.msra.mxu0 0.0
        %3782 = vmatprep.subr.mxu0 0.0
        %3783 = vmatpush1.msra.mxu0 0.0
        %3784 = vmatprep.subr.mxu0 0.0
        %3785 = vmatpush1.msra.mxu0 0.0
        %3786 = vmatprep.subr.mxu0 0.0
        %3787 = vmatpush1.msra.mxu0 0.0
        %3788 = vmatprep.subr.mxu0 0.0
        %3789 = vmatpush1.msra.mxu0 0.0
        %3790 = vmatprep.subr.mxu0 0.0
        %3791 = vmatpush1.msra.mxu0 0.0
        %3792 = vmatprep.subr.mxu0 0.0
        %3793 = vmatpush1.msra.mxu0 0.0
        %3794 = vmatprep.subr.mxu0 0.0
        %3795 = vmatpush1.msra.mxu0 0.0
        %3796 = vmatprep.subr.mxu0 0.0
        %3797 = vmatpush1.msra.mxu0 0.0
        %3798 = vmatprep.subr.mxu0 0.0
        %3799 = vmatpush1.msra.mxu0 0.0
        %3800 = vmatprep.mubr.f32.mxu0 0.0
        %3801 = vmatmul.mubr.f32.gmra.mrb[0].mxu0 %v3728
        %v3802 = vpop.f32.mrb[0].mxu0
        %v3803 = vadd.f32 0.0, %v3802
        %v3804 = vpop.f32.mrb[0].mxu0
        %v3805 = vadd.f32 0.0, %v3804
        %3806 = vdwg.mxu0
        %3807 = vmatprep.subr.mxu0 0.0
        %3808 = vmatpush1.msra.mxu0 %v3734
        %3809 = vmatprep.subr.mxu0 0.0
        %3810 = vmatpush1.msra.mxu0 0.0
        %3811 = vmatprep.subr.mxu0 0.0
        %3812 = vmatpush1.msra.mxu0 0.0
        %3813 = vmatprep.subr.mxu0 0.0
        %3814 = vmatpush1.msra.mxu0 0.0
        %3815 = vmatprep.subr.mxu0 0.0
        %3816 = vmatpush1.msra.mxu0 0.0
        %3817 = vmatprep.subr.mxu0 0.0
        %3818 = vmatpush1.msra.mxu0 0.0
        %3819 = vmatprep.subr.mxu0 0.0
        %3820 = vmatpush1.msra.mxu0 0.0
        %3821 = vmatprep.subr.mxu0 0.0
        %3822 = vmatpush1.msra.mxu0 0.0
        %3823 = vmatprep.subr.mxu0 0.0
        %3824 = vmatpush1.msra.mxu0 0.0
        %3825 = vmatprep.subr.mxu0 0.0
        %3826 = vmatpush1.msra.mxu0 0.0
        %3827 = vmatprep.subr.mxu0 0.0
        %3828 = vmatpush1.msra.mxu0 0.0
        %3829 = vmatprep.subr.mxu0 0.0
        %3830 = vmatpush1.msra.mxu0 0.0
        %3831 = vmatprep.subr.mxu0 0.0
        %3832 = vmatpush1.msra.mxu0 0.0
        %3833 = vmatprep.subr.mxu0 0.0
        %3834 = vmatpush1.msra.mxu0 0.0
        %3835 = vmatprep.subr.mxu0 0.0
        %3836 = vmatpush1.msra.mxu0 0.0
        %3837 = vmatprep.subr.mxu0 0.0
        %3838 = vmatpush1.msra.mxu0 0.0
        %3839 = vmatprep.subr.mxu0 0.0
        %3840 = vmatpush1.msra.mxu0 0.0
        %3841 = vmatprep.subr.mxu0 0.0
        %3842 = vmatpush1.msra.mxu0 0.0
        %3843 = vmatprep.subr.mxu0 0.0
        %3844 = vmatpush1.msra.mxu0 0.0
        %3845 = vmatprep.subr.mxu0 0.0
        %3846 = vmatpush1.msra.mxu0 0.0
        %3847 = vmatprep.subr.mxu0 0.0
        %3848 = vmatpush1.msra.mxu0 0.0
        %3849 = vmatprep.subr.mxu0 0.0
        %3850 = vmatpush1.msra.mxu0 0.0
        %3851 = vmatprep.subr.mxu0 0.0
        %3852 = vmatpush1.msra.mxu0 0.0
        %3853 = vmatprep.subr.mxu0 0.0
        %3854 = vmatpush1.msra.mxu0 0.0
        %3855 = vmatprep.subr.mxu0 0.0
        %3856 = vmatpush1.msra.mxu0 0.0
        %3857 = vmatprep.subr.mxu0 0.0
        %3858 = vmatpush1.msra.mxu0 0.0
        %3859 = vmatprep.subr.mxu0 0.0
        %3860 = vmatpush1.msra.mxu0 0.0
        %3861 = vmatprep.subr.mxu0 0.0
        %3862 = vmatpush1.msra.mxu0 0.0
        %3863 = vmatprep.subr.mxu0 0.0
        %3864 = vmatpush1.msra.mxu0 0.0
        %3865 = vmatprep.subr.mxu0 0.0
        %3866 = vmatpush1.msra.mxu0 0.0
        %3867 = vmatprep.subr.mxu0 0.0
        %3868 = vmatpush1.msra.mxu0 0.0
        %3869 = vmatprep.subr.mxu0 0.0
        %3870 = vmatpush1.msra.mxu0 0.0
        %3871 = vmatprep.mubr.f32.mxu0 0.0
        %3872 = vmatmul.mubr.f32.gmra.mrb[0].mxu0 %v3728
        %v3873 = vpop.f32.mrb[0].mxu0
        %v3874 = vadd.f32 0.0, %v3873
        %v3875 = vpop.f32.mrb[0].mxu0
        %3876 = vdwg.mxu0
        %v3877 = vadd.f32 %v3709, %v3803
        %v3878 = vadd.f32 %v3710, %v3805
        %v3879 = vadd.f32 %v3711, %v3874
        %s3880 = scalar_lea.vmem %s6, 24
        %v3881 = vld [vmem:[%s3880] sm:$0xf]
        %v3882 = vld [vmem:[#allocation3] sm:$0xff]
        %v3883 = vld [vmem:[#allocation3 + $0x8] sm:$0xf]
        %v3886 = vcombine.high %v3882, %v3882
        %3887 = vrot.lane.b32.xlu0 %v3882, 92
        %v3888 = vpop.permute.xlu0 %3887
        %3889 = vrot.lane.b32.xlu0 %v3886, 92
        %v3890 = vpop.permute.xlu0 %3889
        %3891 = vrot.lane.b32.xlu0 %v3883, 92
        %v3892 = vpop.permute.xlu0 %3891
        %v3893 = vsel %vm2360, %v3888, %v3890
        %v3894 = vsel %vm2360, %v3890, %v3892
        %v3896 = vsel %vm2906, %v3881, 0
        %v3898 = vsel %vm2910, %v3893, 0
        %v3900 = vsel %vm2910, %v3894, 0
        %v3902 = vsel %vm2910, %v3892, 0
        %3904 = vmatprep.subr.mxu0 %v3900
        %3905 = vmatpush1.msra.mxu0 %v3898
        %3906 = vmatprep.subr.mxu0 0.0
        %3907 = vmatpush1.msra.mxu0 0.0
        %3908 = vmatprep.subr.mxu0 0.0
        %3909 = vmatpush1.msra.mxu0 0.0
        %3910 = vmatprep.subr.mxu0 0.0
        %3911 = vmatpush1.msra.mxu0 0.0
        %3912 = vmatprep.subr.mxu0 0.0
        %3913 = vmatpush1.msra.mxu0 0.0
        %3914 = vmatprep.subr.mxu0 0.0
        %3915 = vmatpush1.msra.mxu0 0.0
        %3916 = vmatprep.subr.mxu0 0.0
        %3917 = vmatpush1.msra.mxu0 0.0
        %3918 = vmatprep.subr.mxu0 0.0
        %3919 = vmatpush1.msra.mxu0 0.0
        %3920 = vmatprep.subr.mxu0 0.0
        %3921 = vmatpush1.msra.mxu0 0.0
        %3922 = vmatprep.subr.mxu0 0.0
        %3923 = vmatpush1.msra.mxu0 0.0
        %3924 = vmatprep.subr.mxu0 0.0
        %3925 = vmatpush1.msra.mxu0 0.0
        %3926 = vmatprep.subr.mxu0 0.0
        %3927 = vmatpush1.msra.mxu0 0.0
        %3928 = vmatprep.subr.mxu0 0.0
        %3929 = vmatpush1.msra.mxu0 0.0
        %3930 = vmatprep.subr.mxu0 0.0
        %3931 = vmatpush1.msra.mxu0 0.0
        %3932 = vmatprep.subr.mxu0 0.0
        %3933 = vmatpush1.msra.mxu0 0.0
        %3934 = vmatprep.subr.mxu0 0.0
        %3935 = vmatpush1.msra.mxu0 0.0
        %3936 = vmatprep.subr.mxu0 0.0
        %3937 = vmatpush1.msra.mxu0 0.0
        %3938 = vmatprep.subr.mxu0 0.0
        %3939 = vmatpush1.msra.mxu0 0.0
        %3940 = vmatprep.subr.mxu0 0.0
        %3941 = vmatpush1.msra.mxu0 0.0
        %3942 = vmatprep.subr.mxu0 0.0
        %3943 = vmatpush1.msra.mxu0 0.0
        %3944 = vmatprep.subr.mxu0 0.0
        %3945 = vmatpush1.msra.mxu0 0.0
        %3946 = vmatprep.subr.mxu0 0.0
        %3947 = vmatpush1.msra.mxu0 0.0
        %3948 = vmatprep.subr.mxu0 0.0
        %3949 = vmatpush1.msra.mxu0 0.0
        %3950 = vmatprep.subr.mxu0 0.0
        %3951 = vmatpush1.msra.mxu0 0.0
        %3952 = vmatprep.subr.mxu0 0.0
        %3953 = vmatpush1.msra.mxu0 0.0
        %3954 = vmatprep.subr.mxu0 0.0
        %3955 = vmatpush1.msra.mxu0 0.0
        %3956 = vmatprep.subr.mxu0 0.0
        %3957 = vmatpush1.msra.mxu0 0.0
        %3958 = vmatprep.subr.mxu0 0.0
        %3959 = vmatpush1.msra.mxu0 0.0
        %3960 = vmatprep.subr.mxu0 0.0
        %3961 = vmatpush1.msra.mxu0 0.0
        %3962 = vmatprep.subr.mxu0 0.0
        %3963 = vmatpush1.msra.mxu0 0.0
        %3964 = vmatprep.subr.mxu0 0.0
        %3965 = vmatpush1.msra.mxu0 0.0
        %3966 = vmatprep.subr.mxu0 0.0
        %3967 = vmatpush1.msra.mxu0 0.0
        %3968 = vmatprep.mubr.f32.mxu0 0.0
        %3969 = vmatmul.mubr.f32.gmra.mrb[0].mxu0 %v3896
        %v3970 = vpop.f32.mrb[0].mxu0
        %v3971 = vadd.f32 0.0, %v3970
        %v3972 = vpop.f32.mrb[0].mxu0
        %v3973 = vadd.f32 0.0, %v3972
        %3974 = vdwg.mxu0
        %3975 = vmatprep.subr.mxu0 0.0
        %3976 = vmatpush1.msra.mxu0 %v3902
        %3977 = vmatprep.subr.mxu0 0.0
        %3978 = vmatpush1.msra.mxu0 0.0
        %3979 = vmatprep.subr.mxu0 0.0
        %3980 = vmatpush1.msra.mxu0 0.0
        %3981 = vmatprep.subr.mxu0 0.0
        %3982 = vmatpush1.msra.mxu0 0.0
        %3983 = vmatprep.subr.mxu0 0.0
        %3984 = vmatpush1.msra.mxu0 0.0
        %3985 = vmatprep.subr.mxu0 0.0
        %3986 = vmatpush1.msra.mxu0 0.0
        %3987 = vmatprep.subr.mxu0 0.0
        %3988 = vmatpush1.msra.mxu0 0.0
        %3989 = vmatprep.subr.mxu0 0.0
        %3990 = vmatpush1.msra.mxu0 0.0
        %3991 = vmatprep.subr.mxu0 0.0
        %3992 = vmatpush1.msra.mxu0 0.0
        %3993 = vmatprep.subr.mxu0 0.0
        %3994 = vmatpush1.msra.mxu0 0.0
        %3995 = vmatprep.subr.mxu0 0.0
        %3996 = vmatpush1.msra.mxu0 0.0
        %3997 = vmatprep.subr.mxu0 0.0
        %3998 = vmatpush1.msra.mxu0 0.0
        %3999 = vmatprep.subr.mxu0 0.0
        %4000 = vmatpush1.msra.mxu0 0.0
        %4001 = vmatprep.subr.mxu0 0.0
        %4002 = vmatpush1.msra.mxu0 0.0
        %4003 = vmatprep.subr.mxu0 0.0
        %4004 = vmatpush1.msra.mxu0 0.0
        %4005 = vmatprep.subr.mxu0 0.0
        %4006 = vmatpush1.msra.mxu0 0.0
        %4007 = vmatprep.subr.mxu0 0.0
        %4008 = vmatpush1.msra.mxu0 0.0
        %4009 = vmatprep.subr.mxu0 0.0
        %4010 = vmatpush1.msra.mxu0 0.0
        %4011 = vmatprep.subr.mxu0 0.0
        %4012 = vmatpush1.msra.mxu0 0.0
        %4013 = vmatprep.subr.mxu0 0.0
        %4014 = vmatpush1.msra.mxu0 0.0
        %4015 = vmatprep.subr.mxu0 0.0
        %4016 = vmatpush1.msra.mxu0 0.0
        %4017 = vmatprep.subr.mxu0 0.0
        %4018 = vmatpush1.msra.mxu0 0.0
        %4019 = vmatprep.subr.mxu0 0.0
        %4020 = vmatpush1.msra.mxu0 0.0
        %4021 = vmatprep.subr.mxu0 0.0
        %4022 = vmatpush1.msra.mxu0 0.0
        %4023 = vmatprep.subr.mxu0 0.0
        %4024 = vmatpush1.msra.mxu0 0.0
        %4025 = vmatprep.subr.mxu0 0.0
        %4026 = vmatpush1.msra.mxu0 0.0
        %4027 = vmatprep.subr.mxu0 0.0
        %4028 = vmatpush1.msra.mxu0 0.0
        %4029 = vmatprep.subr.mxu0 0.0
        %4030 = vmatpush1.msra.mxu0 0.0
        %4031 = vmatprep.subr.mxu0 0.0
        %4032 = vmatpush1.msra.mxu0 0.0
        %4033 = vmatprep.subr.mxu0 0.0
        %4034 = vmatpush1.msra.mxu0 0.0
        %4035 = vmatprep.subr.mxu0 0.0
        %4036 = vmatpush1.msra.mxu0 0.0
        %4037 = vmatprep.subr.mxu0 0.0
        %4038 = vmatpush1.msra.mxu0 0.0
        %4039 = vmatprep.mubr.f32.mxu0 0.0
        %4040 = vmatmul.mubr.f32.gmra.mrb[0].mxu0 %v3896
        %v4041 = vpop.f32.mrb[0].mxu0
        %v4042 = vadd.f32 0.0, %v4041
        %v4043 = vpop.f32.mrb[0].mxu0
        %4044 = vdwg.mxu0
        %v4045 = vadd.f32 %v3877, %v3971
        %v4046 = vadd.f32 %v3878, %v3973
        %v4047 = vadd.f32 %v3879, %v4042
        %s4048 = scalar_lea.vmem %s6, 28
        %v4049 = vld [vmem:[%s4048] sm:$0xf]
        %v4050 = vld [vmem:[#allocation3] sm:$0xff]
        %v4051 = vld [vmem:[#allocation3 + $0x8] sm:$0xf]
        %v4054 = vcombine.high %v4050, %v4050
        %4055 = vrot.lane.b32.xlu0 %v4050, 91
        %v4056 = vpop.permute.xlu0 %4055
        %4057 = vrot.lane.b32.xlu0 %v4054, 91
        %v4058 = vpop.permute.xlu0 %4057
        %4059 = vrot.lane.b32.xlu0 %v4051, 91
        %v4060 = vpop.permute.xlu0 %4059
        %v4061 = vsel %vm2521, %v4056, %v4058
        %v4062 = vsel %vm2521, %v4058, %v4060
        %v4064 = vsel %vm2906, %v4049, 0
        %v4066 = vsel %vm2910, %v4061, 0
        %v4068 = vsel %vm2910, %v4062, 0
        %v4070 = vsel %vm2910, %v4060, 0
        %4072 = vmatprep.subr.mxu0 %v4068
        %4073 = vmatpush1.msra.mxu0 %v4066
        %4074 = vmatprep.subr.mxu0 0.0
        %4075 = vmatpush1.msra.mxu0 0.0
        %4076 = vmatprep.subr.mxu0 0.0
        %4077 = vmatpush1.msra.mxu0 0.0
        %4078 = vmatprep.subr.mxu0 0.0
        %4079 = vmatpush1.msra.mxu0 0.0
        %4080 = vmatprep.subr.mxu0 0.0
        %4081 = vmatpush1.msra.mxu0 0.0
        %4082 = vmatprep.subr.mxu0 0.0
        %4083 = vmatpush1.msra.mxu0 0.0
        %4084 = vmatprep.subr.mxu0 0.0
        %4085 = vmatpush1.msra.mxu0 0.0
        %4086 = vmatprep.subr.mxu0 0.0
        %4087 = vmatpush1.msra.mxu0 0.0
        %4088 = vmatprep.subr.mxu0 0.0
        %4089 = vmatpush1.msra.mxu0 0.0
        %4090 = vmatprep.subr.mxu0 0.0
        %4091 = vmatpush1.msra.mxu0 0.0
        %4092 = vmatprep.subr.mxu0 0.0
        %4093 = vmatpush1.msra.mxu0 0.0
        %4094 = vmatprep.subr.mxu0 0.0
        %4095 = vmatpush1.msra.mxu0 0.0
        %4096 = vmatprep.subr.mxu0 0.0
        %4097 = vmatpush1.msra.mxu0 0.0
        %4098 = vmatprep.subr.mxu0 0.0
        %4099 = vmatpush1.msra.mxu0 0.0
        %4100 = vmatprep.subr.mxu0 0.0
        %4101 = vmatpush1.msra.mxu0 0.0
        %4102 = vmatprep.subr.mxu0 0.0
        %4103 = vmatpush1.msra.mxu0 0.0
        %4104 = vmatprep.subr.mxu0 0.0
        %4105 = vmatpush1.msra.mxu0 0.0
        %4106 = vmatprep.subr.mxu0 0.0
        %4107 = vmatpush1.msra.mxu0 0.0
        %4108 = vmatprep.subr.mxu0 0.0
        %4109 = vmatpush1.msra.mxu0 0.0
        %4110 = vmatprep.subr.mxu0 0.0
        %4111 = vmatpush1.msra.mxu0 0.0
        %4112 = vmatprep.subr.mxu0 0.0
        %4113 = vmatpush1.msra.mxu0 0.0
        %4114 = vmatprep.subr.mxu0 0.0
        %4115 = vmatpush1.msra.mxu0 0.0
        %4116 = vmatprep.subr.mxu0 0.0
        %4117 = vmatpush1.msra.mxu0 0.0
        %4118 = vmatprep.subr.mxu0 0.0
        %4119 = vmatpush1.msra.mxu0 0.0
        %4120 = vmatprep.subr.mxu0 0.0
        %4121 = vmatpush1.msra.mxu0 0.0
        %4122 = vmatprep.subr.mxu0 0.0
        %4123 = vmatpush1.msra.mxu0 0.0
        %4124 = vmatprep.subr.mxu0 0.0
        %4125 = vmatpush1.msra.mxu0 0.0
        %4126 = vmatprep.subr.mxu0 0.0
        %4127 = vmatpush1.msra.mxu0 0.0
        %4128 = vmatprep.subr.mxu0 0.0
        %4129 = vmatpush1.msra.mxu0 0.0
        %4130 = vmatprep.subr.mxu0 0.0
        %4131 = vmatpush1.msra.mxu0 0.0
        %4132 = vmatprep.subr.mxu0 0.0
        %4133 = vmatpush1.msra.mxu0 0.0
        %4134 = vmatprep.subr.mxu0 0.0
        %4135 = vmatpush1.msra.mxu0 0.0
        %4136 = vmatprep.mubr.f32.mxu0 0.0
        %4137 = vmatmul.mubr.f32.gmra.mrb[0].mxu0 %v4064
        %v4138 = vpop.f32.mrb[0].mxu0
        %v4139 = vadd.f32 0.0, %v4138
        %v4140 = vpop.f32.mrb[0].mxu0
        %v4141 = vadd.f32 0.0, %v4140
        %4142 = vdwg.mxu0
        %4143 = vmatprep.subr.mxu0 0.0
        %4144 = vmatpush1.msra.mxu0 %v4070
        %4145 = vmatprep.subr.mxu0 0.0
        %4146 = vmatpush1.msra.mxu0 0.0
        %4147 = vmatprep.subr.mxu0 0.0
        %4148 = vmatpush1.msra.mxu0 0.0
        %4149 = vmatprep.subr.mxu0 0.0
        %4150 = vmatpush1.msra.mxu0 0.0
        %4151 = vmatprep.subr.mxu0 0.0
        %4152 = vmatpush1.msra.mxu0 0.0
        %4153 = vmatprep.subr.mxu0 0.0
        %4154 = vmatpush1.msra.mxu0 0.0
        %4155 = vmatprep.subr.mxu0 0.0
        %4156 = vmatpush1.msra.mxu0 0.0
        %4157 = vmatprep.subr.mxu0 0.0
        %4158 = vmatpush1.msra.mxu0 0.0
        %4159 = vmatprep.subr.mxu0 0.0
        %4160 = vmatpush1.msra.mxu0 0.0
        %4161 = vmatprep.subr.mxu0 0.0
        %4162 = vmatpush1.msra.mxu0 0.0
        %4163 = vmatprep.subr.mxu0 0.0
        %4164 = vmatpush1.msra.mxu0 0.0
        %4165 = vmatprep.subr.mxu0 0.0
        %4166 = vmatpush1.msra.mxu0 0.0
        %4167 = vmatprep.subr.mxu0 0.0
        %4168 = vmatpush1.msra.mxu0 0.0
        %4169 = vmatprep.subr.mxu0 0.0
        %4170 = vmatpush1.msra.mxu0 0.0
        %4171 = vmatprep.subr.mxu0 0.0
        %4172 = vmatpush1.msra.mxu0 0.0
        %4173 = vmatprep.subr.mxu0 0.0
        %4174 = vmatpush1.msra.mxu0 0.0
        %4175 = vmatprep.subr.mxu0 0.0
        %4176 = vmatpush1.msra.mxu0 0.0
        %4177 = vmatprep.subr.mxu0 0.0
        %4178 = vmatpush1.msra.mxu0 0.0
        %4179 = vmatprep.subr.mxu0 0.0
        %4180 = vmatpush1.msra.mxu0 0.0
        %4181 = vmatprep.subr.mxu0 0.0
        %4182 = vmatpush1.msra.mxu0 0.0
        %4183 = vmatprep.subr.mxu0 0.0
        %4184 = vmatpush1.msra.mxu0 0.0
        %4185 = vmatprep.subr.mxu0 0.0
        %4186 = vmatpush1.msra.mxu0 0.0
        %4187 = vmatprep.subr.mxu0 0.0
        %4188 = vmatpush1.msra.mxu0 0.0
        %4189 = vmatprep.subr.mxu0 0.0
        %4190 = vmatpush1.msra.mxu0 0.0
        %4191 = vmatprep.subr.mxu0 0.0
        %4192 = vmatpush1.msra.mxu0 0.0
        %4193 = vmatprep.subr.mxu0 0.0
        %4194 = vmatpush1.msra.mxu0 0.0
        %4195 = vmatprep.subr.mxu0 0.0
        %4196 = vmatpush1.msra.mxu0 0.0
        %4197 = vmatprep.subr.mxu0 0.0
        %4198 = vmatpush1.msra.mxu0 0.0
        %4199 = vmatprep.subr.mxu0 0.0
        %4200 = vmatpush1.msra.mxu0 0.0
        %4201 = vmatprep.subr.mxu0 0.0
        %4202 = vmatpush1.msra.mxu0 0.0
        %4203 = vmatprep.subr.mxu0 0.0
        %4204 = vmatpush1.msra.mxu0 0.0
        %4205 = vmatprep.subr.mxu0 0.0
        %4206 = vmatpush1.msra.mxu0 0.0
        %4207 = vmatprep.mubr.f32.mxu0 0.0
        %4208 = vmatmul.mubr.f32.gmra.mrb[0].mxu0 %v4064
        %v4209 = vpop.f32.mrb[0].mxu0
        %v4210 = vadd.f32 0.0, %v4209
        %v4211 = vpop.f32.mrb[0].mxu0
        %4212 = vdwg.mxu0
        %v4213 = vadd.f32 %v4045, %v4139
        %v4214 = vadd.f32 %v4046, %v4141
        %v4215 = vadd.f32 %v4047, %v4210
        %s4216 = scalar_lea.vmem %s6, 32
        %v4217 = vld [vmem:[%s4216] sm:$0xf]
        %v4218 = vld [vmem:[#allocation3] sm:$0xff]
        %v4219 = vld [vmem:[#allocation3 + $0x8] sm:$0xf]
        %v4222 = vcombine.high %v4218, %v4218
        %4223 = vrot.lane.b32.xlu0 %v4218, 90
        %v4224 = vpop.permute.xlu0 %4223
        %4225 = vrot.lane.b32.xlu0 %v4222, 90
        %v4226 = vpop.permute.xlu0 %4225
        %4227 = vrot.lane.b32.xlu0 %v4219, 90
        %v4228 = vpop.permute.xlu0 %4227
        %v4229 = vsel %vm2682, %v4224, %v4226
        %v4230 = vsel %vm2682, %v4226, %v4228
        %v4232 = vsel %vm2906, %v4217, 0
        %v4234 = vsel %vm2910, %v4229, 0
        %v4236 = vsel %vm2910, %v4230, 0
        %v4238 = vsel %vm2910, %v4228, 0
        %4240 = vmatprep.subr.mxu0 %v4236
        %4241 = vmatpush1.msra.mxu0 %v4234
        %4242 = vmatprep.subr.mxu0 0.0
        %4243 = vmatpush1.msra.mxu0 0.0
        %4244 = vmatprep.subr.mxu0 0.0
        %4245 = vmatpush1.msra.mxu0 0.0
        %4246 = vmatprep.subr.mxu0 0.0
        %4247 = vmatpush1.msra.mxu0 0.0
        %4248 = vmatprep.subr.mxu0 0.0
        %4249 = vmatpush1.msra.mxu0 0.0
        %4250 = vmatprep.subr.mxu0 0.0
        %4251 = vmatpush1.msra.mxu0 0.0
        %4252 = vmatprep.subr.mxu0 0.0
        %4253 = vmatpush1.msra.mxu0 0.0
        %4254 = vmatprep.subr.mxu0 0.0
        %4255 = vmatpush1.msra.mxu0 0.0
        %4256 = vmatprep.subr.mxu0 0.0
        %4257 = vmatpush1.msra.mxu0 0.0
        %4258 = vmatprep.subr.mxu0 0.0
        %4259 = vmatpush1.msra.mxu0 0.0
        %4260 = vmatprep.subr.mxu0 0.0
        %4261 = vmatpush1.msra.mxu0 0.0
        %4262 = vmatprep.subr.mxu0 0.0
        %4263 = vmatpush1.msra.mxu0 0.0
        %4264 = vmatprep.subr.mxu0 0.0
        %4265 = vmatpush1.msra.mxu0 0.0
        %4266 = vmatprep.subr.mxu0 0.0
        %4267 = vmatpush1.msra.mxu0 0.0
        %4268 = vmatprep.subr.mxu0 0.0
        %4269 = vmatpush1.msra.mxu0 0.0
        %4270 = vmatprep.subr.mxu0 0.0
        %4271 = vmatpush1.msra.mxu0 0.0
        %4272 = vmatprep.subr.mxu0 0.0
        %4273 = vmatpush1.msra.mxu0 0.0
        %4274 = vmatprep.subr.mxu0 0.0
        %4275 = vmatpush1.msra.mxu0 0.0
        %4276 = vmatprep.subr.mxu0 0.0
        %4277 = vmatpush1.msra.mxu0 0.0
        %4278 = vmatprep.subr.mxu0 0.0
        %4279 = vmatpush1.msra.mxu0 0.0
        %4280 = vmatprep.subr.mxu0 0.0
        %4281 = vmatpush1.msra.mxu0 0.0
        %4282 = vmatprep.subr.mxu0 0.0
        %4283 = vmatpush1.msra.mxu0 0.0
        %4284 = vmatprep.subr.mxu0 0.0
        %4285 = vmatpush1.msra.mxu0 0.0
        %4286 = vmatprep.subr.mxu0 0.0
        %4287 = vmatpush1.msra.mxu0 0.0
        %4288 = vmatprep.subr.mxu0 0.0
        %4289 = vmatpush1.msra.mxu0 0.0
        %4290 = vmatprep.subr.mxu0 0.0
        %4291 = vmatpush1.msra.mxu0 0.0
        %4292 = vmatprep.subr.mxu0 0.0
        %4293 = vmatpush1.msra.mxu0 0.0
        %4294 = vmatprep.subr.mxu0 0.0
        %4295 = vmatpush1.msra.mxu0 0.0
        %4296 = vmatprep.subr.mxu0 0.0
        %4297 = vmatpush1.msra.mxu0 0.0
        %4298 = vmatprep.subr.mxu0 0.0
        %4299 = vmatpush1.msra.mxu0 0.0
        %4300 = vmatprep.subr.mxu0 0.0
        %4301 = vmatpush1.msra.mxu0 0.0
        %4302 = vmatprep.subr.mxu0 0.0
        %4303 = vmatpush1.msra.mxu0 0.0
        %4304 = vmatprep.mubr.f32.mxu0 0.0
        %4305 = vmatmul.mubr.f32.gmra.mrb[0].mxu0 %v4232
        %v4306 = vpop.f32.mrb[0].mxu0
        %v4307 = vadd.f32 0.0, %v4306
        %v4308 = vpop.f32.mrb[0].mxu0
        %v4309 = vadd.f32 0.0, %v4308
        %4310 = vdwg.mxu0
        %4311 = vmatprep.subr.mxu0 0.0
        %4312 = vmatpush1.msra.mxu0 %v4238
        %4313 = vmatprep.subr.mxu0 0.0
        %4314 = vmatpush1.msra.mxu0 0.0
        %4315 = vmatprep.subr.mxu0 0.0
        %4316 = vmatpush1.msra.mxu0 0.0
        %4317 = vmatprep.subr.mxu0 0.0
        %4318 = vmatpush1.msra.mxu0 0.0
        %4319 = vmatprep.subr.mxu0 0.0
        %4320 = vmatpush1.msra.mxu0 0.0
        %4321 = vmatprep.subr.mxu0 0.0
        %4322 = vmatpush1.msra.mxu0 0.0
        %4323 = vmatprep.subr.mxu0 0.0
        %4324 = vmatpush1.msra.mxu0 0.0
        %4325 = vmatprep.subr.mxu0 0.0
        %4326 = vmatpush1.msra.mxu0 0.0
        %4327 = vmatprep.subr.mxu0 0.0
        %4328 = vmatpush1.msra.mxu0 0.0
        %4329 = vmatprep.subr.mxu0 0.0
        %4330 = vmatpush1.msra.mxu0 0.0
        %4331 = vmatprep.subr.mxu0 0.0
        %4332 = vmatpush1.msra.mxu0 0.0
        %4333 = vmatprep.subr.mxu0 0.0
        %4334 = vmatpush1.msra.mxu0 0.0
        %4335 = vmatprep.subr.mxu0 0.0
        %4336 = vmatpush1.msra.mxu0 0.0
        %4337 = vmatprep.subr.mxu0 0.0
        %4338 = vmatpush1.msra.mxu0 0.0
        %4339 = vmatprep.subr.mxu0 0.0
        %4340 = vmatpush1.msra.mxu0 0.0
        %4341 = vmatprep.subr.mxu0 0.0
        %4342 = vmatpush1.msra.mxu0 0.0
        %4343 = vmatprep.subr.mxu0 0.0
        %4344 = vmatpush1.msra.mxu0 0.0
        %4345 = vmatprep.subr.mxu0 0.0
        %4346 = vmatpush1.msra.mxu0 0.0
        %4347 = vmatprep.subr.mxu0 0.0
        %4348 = vmatpush1.msra.mxu0 0.0
        %4349 = vmatprep.subr.mxu0 0.0
        %4350 = vmatpush1.msra.mxu0 0.0
        %4351 = vmatprep.subr.mxu0 0.0
        %4352 = vmatpush1.msra.mxu0 0.0
        %4353 = vmatprep.subr.mxu0 0.0
        %4354 = vmatpush1.msra.mxu0 0.0
        %4355 = vmatprep.subr.mxu0 0.0
        %4356 = vmatpush1.msra.mxu0 0.0
        %4357 = vmatprep.subr.mxu0 0.0
        %4358 = vmatpush1.msra.mxu0 0.0
        %4359 = vmatprep.subr.mxu0 0.0
        %4360 = vmatpush1.msra.mxu0 0.0
        %4361 = vmatprep.subr.mxu0 0.0
        %4362 = vmatpush1.msra.mxu0 0.0
        %4363 = vmatprep.subr.mxu0 0.0
        %4364 = vmatpush1.msra.mxu0 0.0
        %4365 = vmatprep.subr.mxu0 0.0
        %4366 = vmatpush1.msra.mxu0 0.0
        %4367 = vmatprep.subr.mxu0 0.0
        %4368 = vmatpush1.msra.mxu0 0.0
        %4369 = vmatprep.subr.mxu0 0.0
        %4370 = vmatpush1.msra.mxu0 0.0
        %4371 = vmatprep.subr.mxu0 0.0
        %4372 = vmatpush1.msra.mxu0 0.0
        %4373 = vmatprep.subr.mxu0 0.0
        %4374 = vmatpush1.msra.mxu0 0.0
        %4375 = vmatprep.mubr.f32.mxu0 0.0
        %4376 = vmatmul.mubr.f32.gmra.mrb[0].mxu0 %v4232
        %v4377 = vpop.f32.mrb[0].mxu0
        %v4378 = vadd.f32 0.0, %v4377
        %v4379 = vpop.f32.mrb[0].mxu0
        %4380 = vdwg.mxu0
        %v4381 = vadd.f32 %v4213, %v4307
        %v4382 = vadd.f32 %v4214, %v4309
        %v4383 = vadd.f32 %v4215, %v4378
        %v4384 = vld [vmem:[%s7] sm:$0xf]
        %4386 = vset.pattern.permute.xlu0 0
        %4387 = vperm.xlu0 %4386, %v4384
        %v4388 = vpop.permute.xlu0 %4387
        %v4390 = vadd.f32 %v4381, %v4388
        %v4391 = vadd.f32 %v4382, %v4388
        %v4392 = vadd.f32 %v4383, %v4388
        %v4393 = vmax.f32 %v4390, 0.0
        %v4394 = vmax.f32 %v4391, 0.0
        %v4395 = vmax.f32 %v4392, 0.0
        %v4398 = vcombine.low %v4393, %v4394
        %4400 = vst [vmem:[%s363] sm:$0xff] %v4398
        %vm4401 = vcmask 240640
        %4402 = vst.msk [vmem:[%s363 + $0x8] sm:$0xf] %vm4401, %v4395
        %s4403 = sand.u32 %s212, 1
        %s4404 = scalar_lea.sflag [#allocation7], %s4403
        %s4405 = sand.u32 %s212, 1
        %s4406 = smul.addr %s4405, 12
        %s4407 = scalar_lea.vmem [#allocation11], %s4406
        // Predicated region
        $region65: #{tpu_custom_call.1} parent=51 // pred_check
          %p4408 = pneg %p222
        $region66: #{tpu_custom_call.1} parent=51 // pred_check_branch
          %4410 = sbr.rel (%p4408) target = $region68
        $region67: #{tpu_custom_call.1} parent=51 // pred_region
          %s4412 = ssub.s32 192, 192
          %4413 = vsyncadd %s4404, %s4412
          %s4414 = smul.addr %s26, 3
          %s4415 = smul.addr %s4414, 64
          %s4416 = scalar_lea.hbm %s8, %s4415
          %s4418 = sshll.u32 %s4407, 4
          %s4419 = int_to_ptr.vmem [resolvable:$true] %s4418
          %4421 = dma.vmem_to_hbm [thread:$0]  %s4419, 192, %s4416, %s4404
        $region68: #{tpu_custom_call.1} parent=51 // pred_fallthru
          _
      $region52: #{tpu_custom_call.1} parent=5 // pred_fallthru
        _
      %p4422 = scmp.le.s32.totalorder 2, %s21
      // Predicated region
      $region69: #{tpu_custom_call.1} parent=5 // pred_check
        %p4423 = pneg %p4422
      $region70: #{tpu_custom_call.1} parent=5 // pred_check_branch
        %4425 = sbr.rel (%p4423) target = $region72
      $region71: #{tpu_custom_call.1} parent=5 // pred_region
        %s4426 = ssub.s32 %s21, 2
        // Predicated region
        $region73: #{tpu_custom_call.1} parent=71 // pred_check
          %p4427 = pneg %p228
        $region74: #{tpu_custom_call.1} parent=71 // pred_check_branch
          %4429 = sbr.rel (%p4427) target = $region76
        $region75: #{tpu_custom_call.1} parent=71 // pred_region
          %s4430 = sand.u32 %s213, 1
          %s4431 = scalar_lea.sflag [#allocation7], %s4430
          %s4432 = sand.u32 %s213, 1
          %s4433 = smul.addr %s4432, 12
          %s4434 = scalar_lea.vmem [#allocation11], %s4433
          %4435 = dma.done %s4431, 192
        $region76: #{tpu_custom_call.1} parent=71 // pred_fallthru
          _
      $region72: #{tpu_custom_call.1} parent=5 // pred_fallthru
        _
    $region6: #{tpu_custom_call.1} parent=1 // loop_footer
      %s25 = sadd.s32 1, %s21
    $region7: #{tpu_custom_call.1} parent=1 // loop_footer_branch
      %20 = sbr.rel target = $region3
    $region8: #{tpu_custom_call.1} parent=1 // loop_exit
      _
    %4436 = vsyncpa [#allocation6], 1
    %s4437 = scalar_lea.sflag [#allocation6], 1
    %4438 = vsyncpa %s4437, 1
    %4439 = vsyncpa [#allocation9], 1
    %4440 = vsyncpa [#allocation7], 1
    %s4441 = scalar_lea.sflag [#allocation7], 1
    %4442 = vsyncpa %s4441, 1

</llo_original>
